<compile_context>
chip_gen: v7x
topology: tpu7x:2x2x1
jax: 0.10.0
libtpu: 0.0.40
codegen_flags: <defaults>
</compile_context>

<pallas_src>
import functools

import jax
import jax.numpy as jnp
from jax.experimental import pallas as pl
from jax.experimental.pallas import tpu as pltpu


DEF_L_TILE = 128          # length tile (multiple of 128); raise to 512+ for long L


def _round_up(n, m):
    return (n + m - 1) // m * m


def _pick_cout_block(c_out, target=512):
    """Largest divisor of c_out <= target that is a multiple of 16 (keeps the
    weight/output blocks tiling-legal for bf16/f32); full c_out if small."""
    if c_out <= target:
        return c_out
    for d in range(target, 15, -1):
        if c_out % d == 0 and d % 16 == 0:
            return d
    return c_out


# ----------------------------------------------------------------------------
# Pallas kernels
# ----------------------------------------------------------------------------
def _conv_matmul_relu_kernel(cols_ref, w_ref, b_ref, o_ref):
    """One Conv1d output tile = a single MXU matmul + bias + ReLU.

    cols_ref : (1, K*C_in, TL)     bf16 im2col slab for this length tile
    w_ref    : (C_out_blk, K*C_in) bf16 (resident across L tiles)
    b_ref    : (C_out_blk, 1)      f32
    o_ref    : (1, C_out_blk, TL)  bf16/f32
    """
    acc = jnp.dot(w_ref[...], cols_ref[0],
                  preferred_element_type=jnp.float32)        # (C_out_blk, TL)
    acc = acc + b_ref[...]                                   # f32 epilogue
    o_ref[0] = jnp.maximum(acc, 0.0).astype(o_ref.dtype)


def _tail_1x1_logsoftmax_kernel(x_ref, w1_ref, b1_ref, w2_ref, b2_ref, o_ref):
    """Fused tail: 1x1 conv + ReLU + 1x1 conv + ReLU + channel log_softmax."""
    x = x_ref[0]                                             # (C_mid, TL) bf16
    h = jnp.dot(w1_ref[...], x, preferred_element_type=jnp.float32) + b1_ref[...]
    h = jnp.maximum(h, 0.0).astype(w2_ref.dtype)             # bf16 for 2nd matmul
    z = jnp.dot(w2_ref[...], h, preferred_element_type=jnp.float32) + b2_ref[...]
    z = jnp.maximum(z, 0.0)                                  # ReLU after last conv
    m = jnp.max(z, axis=0, keepdims=True)                    # log_softmax over channels (f32)
    s = z - m
    lse = jnp.log(jnp.sum(jnp.exp(s), axis=0, keepdims=True))
    o_ref[0] = s - lse


# ----------------------------------------------------------------------------
# Wrappers
# ----------------------------------------------------------------------------
def conv1d_relu(x, w_kio, b, *, stride, padding, l_true,
                out_dtype=jnp.bfloat16, compute_dtype=jnp.bfloat16,
                l_tile=DEF_L_TILE):
    """torch.nn.Conv1d(stride, padding, dilation=1) + ReLU, NCL layout.

    x       : (B, C_in, L_buf) -- only the first `l_true` frames are valid.
    w_kio   : (K, C_out, C_in)
    b       : (C_out, 1)
    returns : ((B, C_out, L_out_pad) with L_out_pad % 128 == 0, new l_true)
    """
    B, C_in, _ = x.shape
    K, C_out, _ = w_kio.shape

    # torch output length (integer arithmetic, dilation = 1)
    l_out = (l_true + 2 * padding - (K - 1) - 1) // stride + 1
    l_out_pad = _round_up(l_out, l_tile)                    # lane-dense tiles

    # Zero-pad exactly like torch (plus extra zeros on the right to cover the
    # rounded-up tile count).  The pad + strided tap gather + concat below are
    # fused by XLA into the im2col build.
    span = (l_out_pad - 1) * stride + K
    right = max(span - l_true - padding, 0)
    x_pad = jnp.pad(x[:, :, :l_true].astype(compute_dtype),
                    ((0, 0), (0, 0), (padding, right)))

    # im2col: taps folded into the contraction -> (B, K*C_in, L_out_pad).
    # Row order is tap-major (t * C_in + c), matching the weight reshape below.
    cols = jnp.concatenate(
        [x_pad[:, :, t:t + stride * l_out_pad:stride] for t in range(K)],
        axis=1)

    # (K, C_out, C_in) -> (C_out, K*C_in), same tap-major ordering.
    w2d = jnp.transpose(w_kio, (1, 0, 2)).reshape(C_out, K * C_in)
    w2d = w2d.astype(compute_dtype)
    b = b.astype(jnp.float32)

    KC = K * C_in
    co_blk = _pick_cout_block(C_out)
    n_lt = l_out_pad // l_tile
    n_co = C_out // co_blk

    isz = jnp.dtype(compute_dtype).itemsize
    osz = jnp.dtype(out_dtype).itemsize
    tile_bytes = (KC * l_tile * isz + co_blk * KC * isz
                  + co_blk * 4 + co_blk * l_tile * osz)
    vmem_limit = int(min(64 * 1024 * 1024, 2 * tile_bytes + 8 * 1024 * 1024))

    out = pl.pallas_call(
        _conv_matmul_relu_kernel,
        out_shape=jax.ShapeDtypeStruct((B, C_out, l_out_pad), out_dtype),
        grid=(B, n_lt, n_co),
        in_specs=[
            pl.BlockSpec((1, KC, l_tile), lambda bi, li, ci: (bi, 0, li)),
            pl.BlockSpec((co_blk, KC), lambda bi, li, ci: (ci, 0)),
            pl.BlockSpec((co_blk, 1), lambda bi, li, ci: (ci, 0)),
        ],
        out_specs=pl.BlockSpec((1, co_blk, l_tile),
                               lambda bi, li, ci: (bi, ci, li)),
        compiler_params=pltpu.CompilerParams(
            dimension_semantics=("parallel", "parallel", "parallel"),
            vmem_limit_bytes=vmem_limit),
    )(cols, w2d, b)
    return out, l_out


def fused_tail_logsoftmax(x, w1_kio, b1, w2_kio, b2, *,
                          compute_dtype=jnp.bfloat16, l_tile=DEF_L_TILE):
    """Two 1x1 convs (+ReLU) and the channel log_softmax fused in one kernel."""
    B, C_mid, L_pad = x.shape
    C_cls = w2_kio.shape[1]
    assert L_pad % l_tile == 0
    n_lt = L_pad // l_tile

    x = x.astype(compute_dtype)
    w1 = w1_kio[0].astype(compute_dtype)      # (C_mid, C_mid)
    w2 = w2_kio[0].astype(compute_dtype)      # (C_cls, C_mid)
    b1 = b1.astype(jnp.float32)
    b2 = b2.astype(jnp.float32)

    isz = jnp.dtype(compute_dtype).itemsize
    tile_bytes = (C_mid * l_tile * isz + C_mid * C_mid * isz
                  + C_cls * C_mid * isz + (C_mid + C_cls) * 4
                  + C_cls * l_tile * 4)
    vmem_limit = int(min(64 * 1024 * 1024, 2 * tile_bytes + 8 * 1024 * 1024))

    return pl.pallas_call(
        _tail_1x1_logsoftmax_kernel,
        out_shape=jax.ShapeDtypeStruct((B, C_cls, L_pad), jnp.float32),
        grid=(B, n_lt),
        in_specs=[
            pl.BlockSpec((1, C_mid, l_tile), lambda bi, li: (bi, 0, li)),
            pl.BlockSpec((C_mid, C_mid), lambda bi, li: (0, 0)),
            pl.BlockSpec((C_mid, 1), lambda bi, li: (0, 0)),
            pl.BlockSpec((C_cls, C_mid), lambda bi, li: (0, 0)),
            pl.BlockSpec((C_cls, 1), lambda bi, li: (0, 0)),
        ],
        out_specs=pl.BlockSpec((1, C_cls, l_tile), lambda bi, li: (bi, 0, li)),
        compiler_params=pltpu.CompilerParams(
            dimension_semantics=("parallel", "parallel"),
            vmem_limit_bytes=vmem_limit),
    )(x, w1, b1, w2, b2)


# ----------------------------------------------------------------------------
# Model definition (architecture of the 'wav2vec' acoustic model, channel
# counts scaled down for the small demo: 250->HIDDEN, 2000->BIG, 40->NUM_CLASSES)
# ----------------------------------------------------------------------------
def make_layer_cfg(num_features, hidden, big, num_classes):
    # (C_in, C_out, kernel_size, stride, padding)  -- dilation is always 1
    cfg = [(num_features, hidden, 48, 2, 23)]
    cfg += [(hidden, hidden, 7, 1, 3)] * 7
    cfg += [(hidden, big, 32, 1, 16),
            (big, big, 1, 1, 0),
            (big, num_classes, 1, 1, 0)]
    return tuple(cfg)


def init_params(key, cfg):
    """Deterministic init matching torch Conv1d default (uniform +-1/sqrt(fan_in))."""
    params = []
    for i, (cin, cout, k, _s, _p) in enumerate(cfg):
        kw, kb = jax.random.split(jax.random.fold_in(key, i))
        bound = 1.0 / float(cin * k) ** 0.5
        w = jax.random.uniform(kw, (k, cout, cin), jnp.float32, -bound, bound)
        b = jax.random.uniform(kb, (cout, 1), jnp.float32, -bound, bound)
        params.append((w, b))
    return params


def get_conv1d_outlens(src_lengths, cfg):
    # Matches torch: true (float) division per layer, truncation to int32 at the end.
    lens = src_lengths.astype(jnp.float32)
    for (_cin, _cout, k, s, p) in cfg:
        d = 1
        lens = (lens + 2 * p - d * (k - 1) - 1) / s + 1
    return lens.astype(jnp.int32)


def make_pad_mask(lengths, max_len):
    # mask[b, 0, t] = t >= lengths[b]   (shape (B, 1, max_len), bool)
    seq = jnp.arange(max_len, dtype=jnp.int32)
    mask = seq[None, :] >= lengths[:, None]
    return mask[:, None, :]


@functools.partial(jax.jit, static_argnums=(3, 4))
def wav2letter_forward(params, x, src_lengths, cfg, max_len):
    """x: (B, num_features, L) -> (log_probs (B, num_classes, L_out), mask (B,1,max_len))."""
    assert cfg[-2][2] == 1 and cfg[-1][2] == 1          # tail is two 1x1 convs
    h = x
    l_true = x.shape[2]
    # All kernel_size > 1 convs via the im2col single-matmul kernel.
    for (w, b), (_cin, _cout, _k, s, p) in zip(params[:-2], cfg[:-2]):
        h, l_true = conv1d_relu(h, w, b, stride=s, padding=p, l_true=l_true)
    # Fused tail: the two 1x1 convs + ReLU + channel log_softmax (f32).
    (w1, b1), (w2, b2) = params[-2], params[-1]
    logp = fused_tail_logsoftmax(h, w1, b1, w2, b2)
    logp = logp[:, :, :l_true]                          # trim lane padding to true length
    out_lengths = get_conv1d_outlens(src_lengths, cfg)
    mask = make_pad_mask(out_lengths, max_len)
    return logp, mask


# ----------------------------------------------------------------------------
# Demo
# ----------------------------------------------------------------------------
if __name__ == "__main__":
    B, NUM_FEATURES, L = 2, 8, 64
    HIDDEN, BIG, NUM_CLASSES = 32, 64, 16
    MAX_LEN = 40

    cfg = make_layer_cfg(NUM_FEATURES, HIDDEN, BIG, NUM_CLASSES)

    key = jax.random.PRNGKey(0)
    kx, kp = jax.random.split(key)
    x = jax.random.normal(kx, (B, NUM_FEATURES, L), jnp.float32)
    src_lengths = jnp.array([64, 50], dtype=jnp.int32)
    params = init_params(kp, cfg)

    logp, mask = wav2letter_forward(params, x, src_lengths, cfg, MAX_LEN)
    logp = jax.block_until_ready(logp)
    mask = jax.block_until_ready(mask)

    # Light sanity checks: shapes and that log_softmax rows exponentiate to ~1.
    assert logp.shape == (B, NUM_CLASSES, 33), logp.shape
    assert mask.shape == (B, 1, MAX_LEN) and mask.dtype == jnp.bool_, (mask.shape, mask.dtype)
    probs_sum = jnp.exp(logp).sum(axis=1)
    assert bool(jnp.all(jnp.abs(probs_sum - 1.0) < 1e-3))

    print("KERNEL_OK")
</pallas_src>

<mosaic_0001>
module attributes {stable_mosaic.version = 11 : i64} {
  func.func @_conv_matmul_relu_kernel(%arg0: i32, %arg1: i32, %arg2: i32, %arg3: memref<1x384x128xbf16, #tpu.memory_space<vmem>>, %arg4: memref<32x384xbf16, #tpu.memory_space<vmem>>, %arg5: memref<32x1xf32, #tpu.memory_space<vmem>>, %arg6: memref<1x32x128xbf16, #tpu.memory_space<vmem>>) attributes {dimension_semantics = [#tpu.dimension_semantics<parallel>, #tpu.dimension_semantics<parallel>, #tpu.dimension_semantics<parallel>], iteration_bounds = array<i64: 2, 1, 1>, scalar_prefetch = 0 : i64, scratch_operands = 0 : i64, tpu.core_type = #tpu.core_type<tc>, window_params = [{transform_indices = @transform_0, window_bounds = array<i64: 1, 384, 128>}, {transform_indices = @transform_1, window_bounds = array<i64: 32, 384>}, {transform_indices = @transform_2, window_bounds = array<i64: 32, 1>}, {transform_indices = @transform_3, window_bounds = array<i64: 1, 32, 128>}]} {
    %c0 = arith.constant 0 : index
    %c0_0 = arith.constant 0 : index
    %0 = vector.load %arg4[%c0, %c0_0] : memref<32x384xbf16, #tpu.memory_space<vmem>>, vector<32x384xbf16>
    %c0_1 = arith.constant 0 : index
    %c0_2 = arith.constant 0 : index
    %c0_3 = arith.constant 0 : index
    %1 = vector.load %arg3[%c0_1, %c0_2, %c0_3] : memref<1x384x128xbf16, #tpu.memory_space<vmem>>, vector<1x384x128xbf16>
    %2 = vector.shape_cast %1 : vector<1x384x128xbf16> to vector<384x128xbf16>
    %cst = arith.constant dense<0.000000e+00> : vector<32x128xf32>
    %3 = tpu.matmul %0, %2, %cst {dimension_numbers = #tpu.dot_dimension_numbers<[1], [0], [0], [1], [0, 0, 1, 1], [], []>} : vector<32x384xbf16>, vector<384x128xbf16>, vector<32x128xf32> -> vector<32x128xf32>
    %c0_4 = arith.constant 0 : index
    %c0_5 = arith.constant 0 : index
    %4 = vector.load %arg5[%c0_4, %c0_5] : memref<32x1xf32, #tpu.memory_space<vmem>>, vector<32x1xf32>
    %5 = vector.broadcast %4 : vector<32x1xf32> to vector<32x128xf32>
    %6 = arith.addf %3, %5 : vector<32x128xf32>
    %cst_6 = arith.constant 0.000000e+00 : f32
    %7 = vector.broadcast %cst_6 : f32 to vector<32x128xf32>
    %8 = arith.maximumf %6, %7 : vector<32x128xf32>
    %9 = arith.truncf %8 : vector<32x128xf32> to vector<32x128xbf16>
    %c0_7 = arith.constant 0 : index
    %c0_8 = arith.constant 0 : index
    %c0_9 = arith.constant 0 : index
    %10 = vector.load %arg6[%c0_7, %c0_8, %c0_9] : memref<1x32x128xbf16, #tpu.memory_space<vmem>>, vector<1x32x128xbf16>
    %11 = vector.shape_cast %10 : vector<1x32x128xbf16> to vector<32x128xbf16>
    %12 = vector.shape_cast %9 : vector<32x128xbf16> to vector<1x32x128xbf16>
    tpu.vector_store %arg6[%c0_7, %c0_8, %c0_9], %12 {strides = array<i32>} : memref<1x32x128xbf16, #tpu.memory_space<vmem>>, vector<1x32x128xbf16>,
    return
  }
  func.func @transform_0(%arg0: i32, %arg1: i32, %arg2: i32) -> (i32, i32, i32) {
    %c0_i32 = arith.constant 0 : i32
    %c0_i32_0 = arith.constant 0 : i32
    return %arg0, %c0_i32, %arg1 : i32, i32, i32
  }
  func.func @transform_1(%arg0: i32, %arg1: i32, %arg2: i32) -> (i32, i32) {
    %c0_i32 = arith.constant 0 : i32
    %c0_i32_0 = arith.constant 0 : i32
    return %arg2, %c0_i32 : i32, i32
  }
  func.func @transform_2(%arg0: i32, %arg1: i32, %arg2: i32) -> (i32, i32) {
    %c0_i32 = arith.constant 0 : i32
    %c0_i32_0 = arith.constant 0 : i32
    return %arg2, %c0_i32 : i32, i32
  }
  func.func @transform_3(%arg0: i32, %arg1: i32, %arg2: i32) -> (i32, i32, i32) {
    %c0_i32 = arith.constant 0 : i32
    return %arg0, %arg2, %arg1 : i32, i32, i32
  }
}

module attributes {stable_mosaic.version = 11 : i64} {
  func.func @_conv_matmul_relu_kernel(%arg0: i32, %arg1: i32, %arg2: i32, %arg3: memref<1x224x128xbf16, #tpu.memory_space<vmem>>, %arg4: memref<32x224xbf16, #tpu.memory_space<vmem>>, %arg5: memref<32x1xf32, #tpu.memory_space<vmem>>, %arg6: memref<1x32x128xbf16, #tpu.memory_space<vmem>>) attributes {dimension_semantics = [#tpu.dimension_semantics<parallel>, #tpu.dimension_semantics<parallel>, #tpu.dimension_semantics<parallel>], iteration_bounds = array<i64: 2, 1, 1>, scalar_prefetch = 0 : i64, scratch_operands = 0 : i64, tpu.core_type = #tpu.core_type<tc>, window_params = [{transform_indices = @transform_0, window_bounds = array<i64: 1, 224, 128>}, {transform_indices = @transform_1, window_bounds = array<i64: 32, 224>}, {transform_indices = @transform_2, window_bounds = array<i64: 32, 1>}, {transform_indices = @transform_3, window_bounds = array<i64: 1, 32, 128>}]} {
    %c0 = arith.constant 0 : index
    %c0_0 = arith.constant 0 : index
    %0 = vector.load %arg4[%c0, %c0_0] : memref<32x224xbf16, #tpu.memory_space<vmem>>, vector<32x224xbf16>
    %c0_1 = arith.constant 0 : index
    %c0_2 = arith.constant 0 : index
    %c0_3 = arith.constant 0 : index
    %1 = vector.load %arg3[%c0_1, %c0_2, %c0_3] : memref<1x224x128xbf16, #tpu.memory_space<vmem>>, vector<1x224x128xbf16>
    %2 = vector.shape_cast %1 : vector<1x224x128xbf16> to vector<224x128xbf16>
    %cst = arith.constant dense<0.000000e+00> : vector<32x128xf32>
    %3 = tpu.matmul %0, %2, %cst {dimension_numbers = #tpu.dot_dimension_numbers<[1], [0], [0], [1], [0, 0, 1, 1], [], []>} : vector<32x224xbf16>, vector<224x128xbf16>, vector<32x128xf32> -> vector<32x128xf32>
    %c0_4 = arith.constant 0 : index
    %c0_5 = arith.constant 0 : index
    %4 = vector.load %arg5[%c0_4, %c0_5] : memref<32x1xf32, #tpu.memory_space<vmem>>, vector<32x1xf32>
    %5 = vector.broadcast %4 : vector<32x1xf32> to vector<32x128xf32>
    %6 = arith.addf %3, %5 : vector<32x128xf32>
    %cst_6 = arith.constant 0.000000e+00 : f32
    %7 = vector.broadcast %cst_6 : f32 to vector<32x128xf32>
    %8 = arith.maximumf %6, %7 : vector<32x128xf32>
    %9 = arith.truncf %8 : vector<32x128xf32> to vector<32x128xbf16>
    %c0_7 = arith.constant 0 : index
    %c0_8 = arith.constant 0 : index
    %c0_9 = arith.constant 0 : index
    %10 = vector.load %arg6[%c0_7, %c0_8, %c0_9] : memref<1x32x128xbf16, #tpu.memory_space<vmem>>, vector<1x32x128xbf16>
    %11 = vector.shape_cast %10 : vector<1x32x128xbf16> to vector<32x128xbf16>
    %12 = vector.shape_cast %9 : vector<32x128xbf16> to vector<1x32x128xbf16>
    tpu.vector_store %arg6[%c0_7, %c0_8, %c0_9], %12 {strides = array<i32>} : memref<1x32x128xbf16, #tpu.memory_space<vmem>>, vector<1x32x128xbf16>,
    return
  }
  func.func @transform_0(%arg0: i32, %arg1: i32, %arg2: i32) -> (i32, i32, i32) {
    %c0_i32 = arith.constant 0 : i32
    %c0_i32_0 = arith.constant 0 : i32
    return %arg0, %c0_i32, %arg1 : i32, i32, i32
  }
  func.func @transform_1(%arg0: i32, %arg1: i32, %arg2: i32) -> (i32, i32) {
    %c0_i32 = arith.constant 0 : i32
    %c0_i32_0 = arith.constant 0 : i32
    return %arg2, %c0_i32 : i32, i32
  }
  func.func @transform_2(%arg0: i32, %arg1: i32, %arg2: i32) -> (i32, i32) {
    %c0_i32 = arith.constant 0 : i32
    %c0_i32_0 = arith.constant 0 : i32
    return %arg2, %c0_i32 : i32, i32
  }
  func.func @transform_3(%arg0: i32, %arg1: i32, %arg2: i32) -> (i32, i32, i32) {
    %c0_i32 = arith.constant 0 : i32
    return %arg0, %arg2, %arg1 : i32, i32, i32
  }
}

module attributes {stable_mosaic.version = 11 : i64} {
  func.func @_conv_matmul_relu_kernel(%arg0: i32, %arg1: i32, %arg2: i32, %arg3: memref<1x1024x128xbf16, #tpu.memory_space<vmem>>, %arg4: memref<64x1024xbf16, #tpu.memory_space<vmem>>, %arg5: memref<64x1xf32, #tpu.memory_space<vmem>>, %arg6: memref<1x64x128xbf16, #tpu.memory_space<vmem>>) attributes {dimension_semantics = [#tpu.dimension_semantics<parallel>, #tpu.dimension_semantics<parallel>, #tpu.dimension_semantics<parallel>], iteration_bounds = array<i64: 2, 1, 1>, scalar_prefetch = 0 : i64, scratch_operands = 0 : i64, tpu.core_type = #tpu.core_type<tc>, window_params = [{transform_indices = @transform_0, window_bounds = array<i64: 1, 1024, 128>}, {transform_indices = @transform_1, window_bounds = array<i64: 64, 1024>}, {transform_indices = @transform_2, window_bounds = array<i64: 64, 1>}, {transform_indices = @transform_3, window_bounds = array<i64: 1, 64, 128>}]} {
    %c0 = arith.constant 0 : index
    %c0_0 = arith.constant 0 : index
    %0 = vector.load %arg4[%c0, %c0_0] : memref<64x1024xbf16, #tpu.memory_space<vmem>>, vector<64x1024xbf16>
    %c0_1 = arith.constant 0 : index
    %c0_2 = arith.constant 0 : index
    %c0_3 = arith.constant 0 : index
    %1 = vector.load %arg3[%c0_1, %c0_2, %c0_3] : memref<1x1024x128xbf16, #tpu.memory_space<vmem>>, vector<1x1024x128xbf16>
    %2 = vector.shape_cast %1 : vector<1x1024x128xbf16> to vector<1024x128xbf16>
    %cst = arith.constant dense<0.000000e+00> : vector<64x128xf32>
    %3 = tpu.matmul %0, %2, %cst {dimension_numbers = #tpu.dot_dimension_numbers<[1], [0], [0], [1], [0, 0, 1, 1], [], []>} : vector<64x1024xbf16>, vector<1024x128xbf16>, vector<64x128xf32> -> vector<64x128xf32>
    %c0_4 = arith.constant 0 : index
    %c0_5 = arith.constant 0 : index
    %4 = vector.load %arg5[%c0_4, %c0_5] : memref<64x1xf32, #tpu.memory_space<vmem>>, vector<64x1xf32>
    %5 = vector.broadcast %4 : vector<64x1xf32> to vector<64x128xf32>
    %6 = arith.addf %3, %5 : vector<64x128xf32>
    %cst_6 = arith.constant 0.000000e+00 : f32
    %7 = vector.broadcast %cst_6 : f32 to vector<64x128xf32>
    %8 = arith.maximumf %6, %7 : vector<64x128xf32>
    %9 = arith.truncf %8 : vector<64x128xf32> to vector<64x128xbf16>
    %c0_7 = arith.constant 0 : index
    %c0_8 = arith.constant 0 : index
    %c0_9 = arith.constant 0 : index
    %10 = vector.load %arg6[%c0_7, %c0_8, %c0_9] : memref<1x64x128xbf16, #tpu.memory_space<vmem>>, vector<1x64x128xbf16>
    %11 = vector.shape_cast %10 : vector<1x64x128xbf16> to vector<64x128xbf16>
    %12 = vector.shape_cast %9 : vector<64x128xbf16> to vector<1x64x128xbf16>
    tpu.vector_store %arg6[%c0_7, %c0_8, %c0_9], %12 {strides = array<i32>} : memref<1x64x128xbf16, #tpu.memory_space<vmem>>, vector<1x64x128xbf16>,
    return
  }
  func.func @transform_0(%arg0: i32, %arg1: i32, %arg2: i32) -> (i32, i32, i32) {
    %c0_i32 = arith.constant 0 : i32
    %c0_i32_0 = arith.constant 0 : i32
    return %arg0, %c0_i32, %arg1 : i32, i32, i32
  }
  func.func @transform_1(%arg0: i32, %arg1: i32, %arg2: i32) -> (i32, i32) {
    %c0_i32 = arith.constant 0 : i32
    %c0_i32_0 = arith.constant 0 : i32
    return %arg2, %c0_i32 : i32, i32
  }
  func.func @transform_2(%arg0: i32, %arg1: i32, %arg2: i32) -> (i32, i32) {
    %c0_i32 = arith.constant 0 : i32
    %c0_i32_0 = arith.constant 0 : i32
    return %arg2, %c0_i32 : i32, i32
  }
  func.func @transform_3(%arg0: i32, %arg1: i32, %arg2: i32) -> (i32, i32, i32) {
    %c0_i32 = arith.constant 0 : i32
    return %arg0, %arg2, %arg1 : i32, i32, i32
  }
}

module attributes {stable_mosaic.version = 11 : i64} {
  func.func @_tail_1x1_logsoftmax_kernel(%arg0: i32, %arg1: i32, %arg2: memref<1x64x128xbf16, #tpu.memory_space<vmem>>, %arg3: memref<64x64xbf16, #tpu.memory_space<vmem>>, %arg4: memref<64x1xf32, #tpu.memory_space<vmem>>, %arg5: memref<16x64xbf16, #tpu.memory_space<vmem>>, %arg6: memref<16x1xf32, #tpu.memory_space<vmem>>, %arg7: memref<1x16x128xf32, #tpu.memory_space<vmem>>) attributes {dimension_semantics = [#tpu.dimension_semantics<parallel>, #tpu.dimension_semantics<parallel>], iteration_bounds = array<i64: 2, 1>, scalar_prefetch = 0 : i64, scratch_operands = 0 : i64, tpu.core_type = #tpu.core_type<tc>, window_params = [{transform_indices = @transform_0, window_bounds = array<i64: 1, 64, 128>}, {pipeline_mode = #tpu.pipeline_mode<synchronous>, transform_indices = @transform_1, window_bounds = array<i64: 64, 64>}, {pipeline_mode = #tpu.pipeline_mode<synchronous>, transform_indices = @transform_2, window_bounds = array<i64: 64, 1>}, {pipeline_mode = #tpu.pipeline_mode<synchronous>, transform_indices = @transform_3, window_bounds = array<i64: 16, 64>}, {pipeline_mode = #tpu.pipeline_mode<synchronous>, transform_indices = @transform_4, window_bounds = array<i64: 16, 1>}, {transform_indices = @transform_5, window_bounds = array<i64: 1, 16, 128>}]} {
    %c0 = arith.constant 0 : index
    %c0_0 = arith.constant 0 : index
    %c0_1 = arith.constant 0 : index
    %0 = vector.load %arg2[%c0, %c0_0, %c0_1] : memref<1x64x128xbf16, #tpu.memory_space<vmem>>, vector<1x64x128xbf16>
    %1 = vector.shape_cast %0 : vector<1x64x128xbf16> to vector<64x128xbf16>
    %c0_2 = arith.constant 0 : index
    %c0_3 = arith.constant 0 : index
    %2 = vector.load %arg3[%c0_2, %c0_3] : memref<64x64xbf16, #tpu.memory_space<vmem>>, vector<64x64xbf16>
    %cst = arith.constant dense<0.000000e+00> : vector<64x128xf32>
    %3 = tpu.matmul %2, %1, %cst {dimension_numbers = #tpu.dot_dimension_numbers<[1], [0], [0], [1], [0, 0, 1, 1], [], []>} : vector<64x64xbf16>, vector<64x128xbf16>, vector<64x128xf32> -> vector<64x128xf32>
    %c0_4 = arith.constant 0 : index
    %c0_5 = arith.constant 0 : index
    %4 = vector.load %arg4[%c0_4, %c0_5] : memref<64x1xf32, #tpu.memory_space<vmem>>, vector<64x1xf32>
    %5 = vector.broadcast %4 : vector<64x1xf32> to vector<64x128xf32>
    %6 = arith.addf %3, %5 : vector<64x128xf32>
    %cst_6 = arith.constant 0.000000e+00 : f32
    %7 = vector.broadcast %cst_6 : f32 to vector<64x128xf32>
    %8 = arith.maximumf %6, %7 : vector<64x128xf32>
    %9 = arith.truncf %8 : vector<64x128xf32> to vector<64x128xbf16>
    %c0_7 = arith.constant 0 : index
    %c0_8 = arith.constant 0 : index
    %10 = vector.load %arg5[%c0_7, %c0_8] : memref<16x64xbf16, #tpu.memory_space<vmem>>, vector<16x64xbf16>
    %cst_9 = arith.constant dense<0.000000e+00> : vector<16x128xf32>
    %11 = tpu.matmul %10, %9, %cst_9 {dimension_numbers = #tpu.dot_dimension_numbers<[1], [0], [0], [1], [0, 0, 1, 1], [], []>} : vector<16x64xbf16>, vector<64x128xbf16>, vector<16x128xf32> -> vector<16x128xf32>
    %c0_10 = arith.constant 0 : index
    %c0_11 = arith.constant 0 : index
    %12 = vector.load %arg6[%c0_10, %c0_11] : memref<16x1xf32, #tpu.memory_space<vmem>>, vector<16x1xf32>
    %13 = vector.broadcast %12 : vector<16x1xf32> to vector<16x128xf32>
    %14 = arith.addf %11, %13 : vector<16x128xf32>
    %cst_12 = arith.constant 0.000000e+00 : f32
    %15 = vector.broadcast %cst_12 : f32 to vector<16x128xf32>
    %16 = arith.maximumf %14, %15 : vector<16x128xf32>
    %cst_13 = arith.constant dense<0xFF800000> : vector<128xf32>
    %17 = vector.multi_reduction <maximumf>, %16, %cst_13 [0] : vector<16x128xf32> to vector<128xf32>
    %18 = vector.shape_cast %17 : vector<128xf32> to vector<1x128xf32>
    %19 = vector.broadcast %18 : vector<1x128xf32> to vector<16x128xf32>
    %20 = arith.subf %16, %19 : vector<16x128xf32>
    %21 = math.exp %20 : vector<16x128xf32>
    %cst_14 = arith.constant dense<0.000000e+00> : vector<128xf32>
    %22 = vector.multi_reduction <add>, %21, %cst_14 [0] : vector<16x128xf32> to vector<128xf32>
    %23 = vector.shape_cast %22 : vector<128xf32> to vector<1x128xf32>
    %24 = math.log %23 : vector<1x128xf32>
    %25 = vector.broadcast %24 : vector<1x128xf32> to vector<16x128xf32>
    %26 = arith.subf %20, %25 : vector<16x128xf32>
    %c0_15 = arith.constant 0 : index
    %c0_16 = arith.constant 0 : index
    %c0_17 = arith.constant 0 : index
    %27 = vector.load %arg7[%c0_15, %c0_16, %c0_17] : memref<1x16x128xf32, #tpu.memory_space<vmem>>, vector<1x16x128xf32>
    %28 = vector.shape_cast %27 : vector<1x16x128xf32> to vector<16x128xf32>
    %29 = vector.shape_cast %26 : vector<16x128xf32> to vector<1x16x128xf32>
    tpu.vector_store %arg7[%c0_15, %c0_16, %c0_17], %29 {strides = array<i32>} : memref<1x16x128xf32, #tpu.memory_space<vmem>>, vector<1x16x128xf32>,
    return
  }
  func.func @transform_0(%arg0: i32, %arg1: i32) -> (i32, i32, i32) {
    %c0_i32 = arith.constant 0 : i32
    %c0_i32_0 = arith.constant 0 : i32
    return %arg0, %c0_i32, %arg1 : i32, i32, i32
  }
  func.func @transform_1(%arg0: i32, %arg1: i32) -> (i32, i32) {
    %c0_i32 = arith.constant 0 : i32
    %c0_i32_0 = arith.constant 0 : i32
    %c0_i32_1 = arith.constant 0 : i32
    return %c0_i32, %c0_i32_0 : i32, i32
  }
  func.func @transform_2(%arg0: i32, %arg1: i32) -> (i32, i32) {
    %c0_i32 = arith.constant 0 : i32
    %c0_i32_0 = arith.constant 0 : i32
    %c0_i32_1 = arith.constant 0 : i32
    return %c0_i32, %c0_i32_0 : i32, i32
  }
  func.func @transform_3(%arg0: i32, %arg1: i32) -> (i32, i32) {
    %c0_i32 = arith.constant 0 : i32
    %c0_i32_0 = arith.constant 0 : i32
    %c0_i32_1 = arith.constant 0 : i32
    return %c0_i32, %c0_i32_0 : i32, i32
  }
  func.func @transform_4(%arg0: i32, %arg1: i32) -> (i32, i32) {
    %c0_i32 = arith.constant 0 : i32
    %c0_i32_0 = arith.constant 0 : i32
    %c0_i32_1 = arith.constant 0 : i32
    return %c0_i32, %c0_i32_0 : i32, i32
  }
  func.func @transform_5(%arg0: i32, %arg1: i32) -> (i32, i32, i32) {
    %c0_i32 = arith.constant 0 : i32
    %c0_i32_0 = arith.constant 0 : i32
    return %arg0, %c0_i32, %arg1 : i32, i32, i32
  }
}

</mosaic_0001>

<llo_original>
// kernel: wav2letter_forward.10
$region0: #{wav2letter_forward.10}
  #allocation0 [shape = 'u32[]', space=smem, size = 0x4, offset = 0x4, fixed_abs, tag = 'smem constant byte address 0x4 - core index']
  #allocation1 [shape = 'u32[144,128]{1,0:T(1,128)}', space=vmem, size = 0x12000, scoped, tag = 'internal scratch']
  %s0 = inlined_call_operand.vmem [shape: bf16[2,384,128], index: 0, kind: input, shape index: {}]
  %s1 = inlined_call_operand.vmem [shape: bf16[32,384], index: 1, kind: input, shape index: {}]
  %s2 = inlined_call_operand.vmem [shape: f32[32,1], index: 2, kind: input, shape index: {}]
  %s3 = inlined_call_operand.vmem [shape: bf16[2,32,128], index: 3, kind: output, shape index: {}]
  %s4 = sld [smem:[#allocation0]]
  $region45: #{wav2letter_forward.10} parent=0
    _
  %s6 = ssub.s32 1, %s4
  %s7 = scalar_select 0, %s6, %s4
  loop: start=0, step=1, limit=4
  $region2: #{wav2letter_forward.10} parent=0 // loop_pre_header
    _
  $region3: #{wav2letter_forward.10} parent=0 // loop_header
    %s9 = sphi 0, %s13
    %p10 = scmp.ge.s32.totalorder %s9, 4
    %s16 = sphi 0, %s35
    %s17 = sphi 0, %s31
    %s18 = sphi 0, %s27
    %s19 = sphi 0, %s16
    %s20 = sphi 0, %s17
    %s21 = sphi 0, %s18
    %s22 = sphi 0, %s19
    %s23 = sphi 0, %s20
    %s24 = sphi 0, %s21
    %s40 = sphi 0, %s42
    %s43 = sphi 0, %s40
    %s44 = sphi 0, %s43
    %s60 = sphi 0, %s44
    %s66 = sphi 0, %s68
    %s69 = sphi 0, %s66
    %s70 = sphi 0, %s69
    %s86 = sphi 0, %s70
    %s92 = sphi 0, %s94
    %s95 = sphi 0, %s92
    %s96 = sphi 0, %s95
    %s112 = sphi 0, %s96
    %s122 = sphi 0, %s124
    %s125 = sphi 0, %s122
    %s126 = sphi 0, %s125
    %s142 = sphi 0, %s126
  $region4: #{wav2letter_forward.10} parent=0 // loop_header_branch
    %12 = sbr.rel (%p10) target = $region8
  $region5: #{wav2letter_forward.10} parent=0 // loop_body
    %s14 = ssub.s32 %s9, 1
    %s15 = ssub.s32 %s9, 2
    %s25 = sadd.s32 1, %s18
    %p26 = scmp.ge.s32.totalorder %s25, 1
    %s27 = scalar_select %p26, 0, %s25
    %s28 = sadd.s32 1, %s17
    %s29 = scalar_select %p26, %s28, %s17
    %p30 = scmp.ge.s32.totalorder %s29, 1
    %s31 = scalar_select %p30, 0, %s29
    %s32 = sadd.s32 1, %s16
    %s33 = scalar_select %p30, %s32, %s16
    %p34 = scmp.ge.s32.totalorder %s33, 2
    %s35 = scalar_select %p34, 0, %s33
    %s36 = ssub.s32 %s16, %s35
    %s37 = ssub.s32 %s17, %s31
    %s38 = sor.u32 %s36, %s37
    %p39 = scmp.eq.s32.totalorder %s38, 0
    %s41 = sadd.s32 %s40, 1
    %s42 = scalar_select %p39, %s40, %s41
    %p45 = pneg %p39
    %p46 = scmp.eq.s32.totalorder %s9, 1
    %p47 = por %p45, %p46
    %p48 = scmp.ne.s32.totalorder %s40, %s43
    %p49 = scmp.eq.s32.totalorder %s9, 0
    %p50 = por %p48, %p49
    %p51 = scmp.ne.s32.totalorder %s40, %s43
    %p52 = scmp.eq.s32.totalorder %s14, 1
    %p53 = por %p51, %p52
    %p54 = scmp.ne.s32.totalorder %s43, %s44
    %p55 = scmp.eq.s32.totalorder %s14, 0
    %p56 = por %p54, %p55
    %p57 = scmp.ne.s32.totalorder %s43, %s44
    %p58 = scmp.eq.s32.totalorder %s15, 1
    %p59 = por %p57, %p58
    %p61 = scmp.ne.s32.totalorder %s44, %s60
    %p62 = scmp.eq.s32.totalorder %s15, 0
    %p63 = por %p61, %p62
    %s64 = ssub.s32 %s18, %s27
    %p65 = scmp.eq.s32.totalorder %s64, 0
    %s67 = sadd.s32 %s66, 1
    %s68 = scalar_select %p65, %s66, %s67
    %p71 = pneg %p65
    %p72 = scmp.eq.s32.totalorder %s9, 1
    %p73 = por %p71, %p72
    %p74 = scmp.ne.s32.totalorder %s66, %s69
    %p75 = scmp.eq.s32.totalorder %s9, 0
    %p76 = por %p74, %p75
    %p77 = scmp.ne.s32.totalorder %s66, %s69
    %p78 = scmp.eq.s32.totalorder %s14, 1
    %p79 = por %p77, %p78
    %p80 = scmp.ne.s32.totalorder %s69, %s70
    %p81 = scmp.eq.s32.totalorder %s14, 0
    %p82 = por %p80, %p81
    %p83 = scmp.ne.s32.totalorder %s69, %s70
    %p84 = scmp.eq.s32.totalorder %s15, 1
    %p85 = por %p83, %p84
    %p87 = scmp.ne.s32.totalorder %s70, %s86
    %p88 = scmp.eq.s32.totalorder %s15, 0
    %p89 = por %p87, %p88
    %s90 = ssub.s32 %s18, %s27
    %p91 = scmp.eq.s32.totalorder %s90, 0
    %s93 = sadd.s32 %s92, 1
    %s94 = scalar_select %p91, %s92, %s93
    %p97 = pneg %p91
    %p98 = scmp.eq.s32.totalorder %s9, 1
    %p99 = por %p97, %p98
    %p100 = scmp.ne.s32.totalorder %s92, %s95
    %p101 = scmp.eq.s32.totalorder %s9, 0
    %p102 = por %p100, %p101
    %p103 = scmp.ne.s32.totalorder %s92, %s95
    %p104 = scmp.eq.s32.totalorder %s14, 1
    %p105 = por %p103, %p104
    %p106 = scmp.ne.s32.totalorder %s95, %s96
    %p107 = scmp.eq.s32.totalorder %s14, 0
    %p108 = por %p106, %p107
    %p109 = scmp.ne.s32.totalorder %s95, %s96
    %p110 = scmp.eq.s32.totalorder %s15, 1
    %p111 = por %p109, %p110
    %p113 = scmp.ne.s32.totalorder %s96, %s112
    %p114 = scmp.eq.s32.totalorder %s15, 0
    %p115 = por %p113, %p114
    %s116 = ssub.s32 %s16, %s35
    %s117 = ssub.s32 %s18, %s27
    %s118 = sor.u32 %s116, %s117
    %s119 = ssub.s32 %s17, %s31
    %s120 = sor.u32 %s118, %s119
    %p121 = scmp.eq.s32.totalorder %s120, 0
    %s123 = sadd.s32 %s122, 1
    %s124 = scalar_select %p121, %s122, %s123
    %p127 = pneg %p121
    %p128 = scmp.eq.s32.totalorder %s9, 1
    %p129 = por %p127, %p128
    %p130 = scmp.ne.s32.totalorder %s122, %s125
    %p131 = scmp.eq.s32.totalorder %s9, 0
    %p132 = por %p130, %p131
    %p133 = scmp.ne.s32.totalorder %s122, %s125
    %p134 = scmp.eq.s32.totalorder %s14, 1
    %p135 = por %p133, %p134
    %p136 = scmp.ne.s32.totalorder %s125, %s126
    %p137 = scmp.eq.s32.totalorder %s14, 0
    %p138 = por %p136, %p137
    %p139 = scmp.ne.s32.totalorder %s125, %s126
    %p140 = scmp.eq.s32.totalorder %s15, 1
    %p141 = por %p139, %p140
    %p143 = scmp.ne.s32.totalorder %s126, %s142
    %p144 = scmp.eq.s32.totalorder %s15, 0
    %p145 = por %p143, %p144
    %p146 = scmp.le.s32.totalorder 1, %s9
    %p147 = scmp.lt.s32.totalorder %s9, 3
    %p148 = pnand %p146, %p147
    %p149 = pneg %p148
    // Predicated region
    $region9: #{wav2letter_forward.10} parent=5 // pred_check
      _
    $region10: #{wav2letter_forward.10} parent=5 // pred_check_branch
      %151 = sbr.rel (%p148) target = $region12
    $region11: #{wav2letter_forward.10} parent=5 // pred_region
      %s152 = ssub.s32 %s9, 1
      // Predicated region
      $region13: #{wav2letter_forward.10} parent=11 // pred_check
        %p153 = pneg %p82
      $region14: #{wav2letter_forward.10} parent=11 // pred_check_branch
        %155 = sbr.rel (%p153) target = $region16
      $region15: #{wav2letter_forward.10} parent=11 // pred_region
        %s156 = smul.u32 4, %s21
        %p157 = scmp.lt.s32.totalorder %s156, 3
        %s158 = scalar_select %p157, %s156, 3
        %s159 = smul.addr %s158, 3
        %s160 = smul.addr %s159, 4
        %s161 = scalar_lea.vmem %s1, %s160
        %s162 = smul.u32 4, %s21
      $region16: #{wav2letter_forward.10} parent=11 // pred_fallthru
        _
      // Predicated region
      $region17: #{wav2letter_forward.10} parent=11 // pred_check
        %p163 = pneg %p108
      $region18: #{wav2letter_forward.10} parent=11 // pred_check_branch
        %165 = sbr.rel (%p163) target = $region20
      $region19: #{wav2letter_forward.10} parent=11 // pred_region
        %s166 = smul.u32 4, %s21
        %p167 = scmp.lt.s32.totalorder %s166, 3
        %s168 = scalar_select %p167, %s166, 3
        %s169 = smul.addr %s168, 8
        %s170 = scalar_lea.vmem %s2, %s169
        %s171 = smul.u32 4, %s21
      $region20: #{wav2letter_forward.10} parent=11 // pred_fallthru
        _
    $region12: #{wav2letter_forward.10} parent=5 // pred_fallthru
      _
    %p172 = scmp.lt.s32.totalorder %s9, 2
    // Predicated region
    $region21: #{wav2letter_forward.10} parent=5 // pred_check
      %p173 = pneg %p172
    $region22: #{wav2letter_forward.10} parent=5 // pred_check_branch
      %175 = sbr.rel (%p173) target = $region24
    $region23: #{wav2letter_forward.10} parent=5 // pred_region
      // Predicated region
      $region25: #{wav2letter_forward.10} parent=23 // pred_check
        %p176 = pneg %p50
      $region26: #{wav2letter_forward.10} parent=23 // pred_check_branch
        %178 = sbr.rel (%p176) target = $region28
      $region27: #{wav2letter_forward.10} parent=23 // pred_region
        %p179 = scmp.lt.s32.totalorder %s16, 1
        %s180 = scalar_select %p179, %s16, 1
        %p181 = scmp.lt.s32.totalorder %s17, 0
        %s182 = scalar_select %p181, %s17, 0
        %s183 = smul.addr %s180, 48
        %s184 = sadd.s32 %s182, %s183
        %s185 = smul.addr %s184, 4
        %s186 = scalar_lea.vmem %s0, %s185
      $region28: #{wav2letter_forward.10} parent=23 // pred_fallthru
        _
    $region24: #{wav2letter_forward.10} parent=5 // pred_fallthru
      _
    %p187 = scmp.le.s32.totalorder 1, %s9
    %p188 = scmp.lt.s32.totalorder %s9, 3
    %p189 = pnand %p187, %p188
    %p190 = pneg %p189
    // Predicated region
    $region29: #{wav2letter_forward.10} parent=5 // pred_check
      _
    $region30: #{wav2letter_forward.10} parent=5 // pred_check_branch
      %192 = sbr.rel (%p189) target = $region32
    $region31: #{wav2letter_forward.10} parent=5 // pred_region
      %s193 = ssub.s32 %s9, 1
      %p194 = scmp.lt.s32.totalorder %s19, 1
      %s195 = scalar_select %p194, %s19, 1
      %p196 = scmp.lt.s32.totalorder %s20, 0
      %s197 = scalar_select %p196, %s20, 0
      %s198 = smul.addr %s195, 48
      %s199 = sadd.s32 %s197, %s198
      %s200 = smul.addr %s199, 4
      %s201 = scalar_lea.vmem %s0, %s200
      %p202 = pneg %p56
      %p203 = pneg %p53
      %s204 = smul.u32 4, %s21
      %p205 = scmp.lt.s32.totalorder %s204, 3
      %s206 = scalar_select %p205, %s204, 3
      %s207 = smul.addr %s206, 3
      %s208 = smul.addr %s207, 4
      %s209 = scalar_lea.vmem %s1, %s208
      %p210 = pneg %p82
      %p211 = pneg %p79
      %s212 = smul.u32 4, %s21
      %p213 = scmp.lt.s32.totalorder %s212, 3
      %s214 = scalar_select %p213, %s212, 3
      %s215 = smul.addr %s214, 8
      %s216 = scalar_lea.vmem %s2, %s215
      %p217 = pneg %p108
      %p218 = pneg %p105
      %p219 = pneg %p138
      %p220 = pneg %p135
      %s221 = smul.u32 4, %s21
      %p222 = scmp.lt.s32.totalorder %s19, 1
      %s223 = scalar_select %p222, %s19, 1
      %p224 = scmp.lt.s32.totalorder %s221, 3
      %s225 = scalar_select %p224, %s221, 3
      %p226 = scmp.lt.s32.totalorder %s20, 0
      %s227 = scalar_select %p226, %s20, 0
      %s228 = sadd.s32 %s227, %s225
      %s229 = smul.addr %s223, 4
      %s230 = sadd.s32 %s228, %s229
      %s231 = smul.addr %s230, 4
      %s232 = scalar_lea.vmem %s3, %s231
      %p233 = scmp.lt.s32.totalorder %s19, 1
      %s234 = scalar_select %p233, %s19, 1
      %p235 = scmp.lt.s32.totalorder %s20, 0
      %s236 = scalar_select %p235, %s20, 0
      %s237 = smul.addr %s234, 48
      %s238 = sadd.s32 %s236, %s237
      %s239 = smul.addr %s238, 4
      %s240 = scalar_lea.vmem %s0, %s239
      %s241 = smul.u32 4, %s21
      %p242 = scmp.lt.s32.totalorder %s241, 3
      %s243 = scalar_select %p242, %s241, 3
      %s244 = smul.addr %s243, 3
      %s245 = smul.addr %s244, 4
      %s246 = scalar_lea.vmem %s1, %s245
      %s247 = smul.u32 4, %s21
      %s248 = smul.u32 4, %s21
      %p249 = scmp.lt.s32.totalorder %s248, 3
      %s250 = scalar_select %p249, %s248, 3
      %s251 = smul.addr %s250, 8
      %s252 = scalar_lea.vmem %s2, %s251
      %s253 = smul.u32 4, %s21
      %s254 = smul.u32 4, %s21
      %p255 = scmp.lt.s32.totalorder %s19, 1
      %s256 = scalar_select %p255, %s19, 1
      %p257 = scmp.lt.s32.totalorder %s254, 3
      %s258 = scalar_select %p257, %s254, 3
      %p259 = scmp.lt.s32.totalorder %s20, 0
      %s260 = scalar_select %p259, %s20, 0
      %s261 = sadd.s32 %s260, %s258
      %s262 = smul.addr %s256, 4
      %s263 = sadd.s32 %s261, %s262
      %s264 = smul.addr %s263, 4
      %s265 = scalar_lea.vmem %s3, %s264
      %s266 = smul.u32 4, %s21
      %v268 = vld [vmem:[%s246] sm:$0xff]
      %v269 = vld [vmem:[%s246 + $0x8] sm:$0xf]
      %v270 = vld [vmem:[%s246 + $0xc] sm:$0xff]
      %v271 = vld [vmem:[%s246 + $0x14] sm:$0xf]
      %v272 = vld [vmem:[%s246 + $0x18] sm:$0xff]
      %v273 = vld [vmem:[%s246 + $0x20] sm:$0xf]
      %v274 = vld [vmem:[%s246 + $0x24] sm:$0xff]
      %v275 = vld [vmem:[%s246 + $0x2c] sm:$0xf]
      %v276 = vld [vmem:[%s240] sm:$0xf]
      %v277 = vld [vmem:[%s240 + $0x4] sm:$0xf]
      %v278 = vld [vmem:[%s240 + $0x8] sm:$0xf]
      %v279 = vld [vmem:[%s240 + $0xc] sm:$0xf]
      %v280 = vld [vmem:[%s240 + $0x10] sm:$0xf]
      %v281 = vld [vmem:[%s240 + $0x14] sm:$0xf]
      %v282 = vld [vmem:[%s240 + $0x18] sm:$0xf]
      %v283 = vld [vmem:[%s240 + $0x1c] sm:$0xf]
      %v284 = vld [vmem:[%s240 + $0x20] sm:$0xf]
      %v285 = vld [vmem:[%s240 + $0x24] sm:$0xf]
      %v286 = vld [vmem:[%s240 + $0x28] sm:$0xf]
      %v287 = vld [vmem:[%s240 + $0x2c] sm:$0xf]
      %v288 = vld [vmem:[%s240 + $0x30] sm:$0xf]
      %v289 = vld [vmem:[%s240 + $0x34] sm:$0xf]
      %v290 = vld [vmem:[%s240 + $0x38] sm:$0xf]
      %v291 = vld [vmem:[%s240 + $0x3c] sm:$0xf]
      %v292 = vld [vmem:[%s240 + $0x40] sm:$0xf]
      %v293 = vld [vmem:[%s240 + $0x44] sm:$0xf]
      %v294 = vld [vmem:[%s240 + $0x48] sm:$0xf]
      %v295 = vld [vmem:[%s240 + $0x4c] sm:$0xf]
      %v296 = vld [vmem:[%s240 + $0x50] sm:$0xf]
      %v297 = vld [vmem:[%s240 + $0x54] sm:$0xf]
      %v298 = vld [vmem:[%s240 + $0x58] sm:$0xf]
      %v299 = vld [vmem:[%s240 + $0x5c] sm:$0xf]
      %v300 = vld [vmem:[%s240 + $0x60] sm:$0xf]
      %v301 = vld [vmem:[%s240 + $0x64] sm:$0xf]
      %v302 = vld [vmem:[%s240 + $0x68] sm:$0xf]
      %v303 = vld [vmem:[%s240 + $0x6c] sm:$0xf]
      %v304 = vld [vmem:[%s240 + $0x70] sm:$0xf]
      %v305 = vld [vmem:[%s240 + $0x74] sm:$0xf]
      %v306 = vld [vmem:[%s240 + $0x78] sm:$0xf]
      %v307 = vld [vmem:[%s240 + $0x7c] sm:$0xf]
      %v308 = vld [vmem:[%s240 + $0x80] sm:$0xf]
      %v309 = vld [vmem:[%s240 + $0x84] sm:$0xf]
      %v310 = vld [vmem:[%s240 + $0x88] sm:$0xf]
      %v311 = vld [vmem:[%s240 + $0x8c] sm:$0xf]
      %v312 = vld [vmem:[%s240 + $0x90] sm:$0xf]
      %v313 = vld [vmem:[%s240 + $0x94] sm:$0xf]
      %v314 = vld [vmem:[%s240 + $0x98] sm:$0xf]
      %v315 = vld [vmem:[%s240 + $0x9c] sm:$0xf]
      %v316 = vld [vmem:[%s240 + $0xa0] sm:$0xf]
      %v317 = vld [vmem:[%s240 + $0xa4] sm:$0xf]
      %v318 = vld [vmem:[%s240 + $0xa8] sm:$0xf]
      %v319 = vld [vmem:[%s240 + $0xac] sm:$0xf]
      %v320 = vld [vmem:[%s240 + $0xb0] sm:$0xf]
      %v321 = vld [vmem:[%s240 + $0xb4] sm:$0xf]
      %v322 = vld [vmem:[%s240 + $0xb8] sm:$0xf]
      %v323 = vld [vmem:[%s240 + $0xbc] sm:$0xf]
      %v324 = vld [vmem:[%s252] sm:$0xff]
      %v325 = vld [vmem:[%s252 + $0x8] sm:$0xff]
      %v326 = vld [vmem:[%s252 + $0x10] sm:$0xff]
      %v327 = vld [vmem:[%s252 + $0x18] sm:$0xff]
      %329 = vset.pattern.permute.xlu0 0
      %330 = vperm.xlu0 %329, %v324
      %v331 = vpop.permute.xlu0 %330
      %334 = vset.pattern.permute.xlu0 0
      %335 = vperm.xlu0 %334, %v325
      %v336 = vpop.permute.xlu0 %335
      %339 = vset.pattern.permute.xlu0 0
      %340 = vperm.xlu0 %339, %v326
      %v341 = vpop.permute.xlu0 %340
      %344 = vset.pattern.permute.xlu0 0
      %345 = vperm.xlu0 %344, %v327
      %v346 = vpop.permute.xlu0 %345
      %v356 = vunpack.c.l.b16 %v268
      %v357 = vunpack.c.h.b16 %v268
      %v358 = vunpack.c.l.b16 %v269
      %v359 = vunpack.c.l.b16 %v270
      %v360 = vunpack.c.h.b16 %v270
      %v361 = vunpack.c.l.b16 %v271
      %v362 = vunpack.c.l.b16 %v272
      %v363 = vunpack.c.h.b16 %v272
      %v364 = vunpack.c.l.b16 %v273
      %v365 = vunpack.c.l.b16 %v274
      %v366 = vunpack.c.h.b16 %v274
      %v367 = vunpack.c.l.b16 %v275
      %v368 = vpack.c.b16 %v359, %v356
      %v369 = vpack.c.b16 %v360, %v357
      %v370 = vpack.c.b16 %v361, %v358
      %v371 = vpack.c.b16 %v365, %v362
      %v372 = vpack.c.b16 %v366, %v363
      %v373 = vpack.c.b16 %v367, %v364
      %v428 = vunpack.c.l.b16 %v276
      %v429 = vunpack.c.l.b16 %v277
      %v430 = vunpack.c.l.b16 %v278
      %v431 = vunpack.c.l.b16 %v279
      %v432 = vunpack.c.l.b16 %v280
      %v433 = vunpack.c.l.b16 %v281
      %v434 = vunpack.c.l.b16 %v282
      %v435 = vunpack.c.l.b16 %v283
      %v436 = vunpack.c.l.b16 %v284
      %v437 = vunpack.c.l.b16 %v285
      %v438 = vunpack.c.l.b16 %v286
      %v439 = vunpack.c.l.b16 %v287
      %v440 = vunpack.c.l.b16 %v288
      %v441 = vunpack.c.l.b16 %v289
      %v442 = vunpack.c.l.b16 %v290
      %v443 = vunpack.c.l.b16 %v291
      %v444 = vunpack.c.l.b16 %v292
      %v445 = vunpack.c.l.b16 %v293
      %v446 = vunpack.c.l.b16 %v294
      %v447 = vunpack.c.l.b16 %v295
      %v448 = vunpack.c.l.b16 %v296
      %v449 = vunpack.c.l.b16 %v297
      %v450 = vunpack.c.l.b16 %v298
      %v451 = vunpack.c.l.b16 %v299
      %v452 = vunpack.c.l.b16 %v300
      %v453 = vunpack.c.l.b16 %v301
      %v454 = vunpack.c.l.b16 %v302
      %v455 = vunpack.c.l.b16 %v303
      %v456 = vunpack.c.l.b16 %v304
      %v457 = vunpack.c.l.b16 %v305
      %v458 = vunpack.c.l.b16 %v306
      %v459 = vunpack.c.l.b16 %v307
      %v460 = vunpack.c.l.b16 %v308
      %v461 = vunpack.c.l.b16 %v309
      %v462 = vunpack.c.l.b16 %v310
      %v463 = vunpack.c.l.b16 %v311
      %v464 = vunpack.c.l.b16 %v312
      %v465 = vunpack.c.l.b16 %v313
      %v466 = vunpack.c.l.b16 %v314
      %v467 = vunpack.c.l.b16 %v315
      %v468 = vunpack.c.l.b16 %v316
      %v469 = vunpack.c.l.b16 %v317
      %v470 = vunpack.c.l.b16 %v318
      %v471 = vunpack.c.l.b16 %v319
      %v472 = vunpack.c.l.b16 %v320
      %v473 = vunpack.c.l.b16 %v321
      %v474 = vunpack.c.l.b16 %v322
      %v475 = vunpack.c.l.b16 %v323
      %v476 = vpack.c.b16 %v429, %v428
      %v477 = vpack.c.b16 %v431, %v430
      %v478 = vpack.c.b16 %v433, %v432
      %v479 = vpack.c.b16 %v435, %v434
      %v480 = vpack.c.b16 %v437, %v436
      %v481 = vpack.c.b16 %v439, %v438
      %v482 = vpack.c.b16 %v441, %v440
      %v483 = vpack.c.b16 %v443, %v442
      %v484 = vpack.c.b16 %v445, %v444
      %v485 = vpack.c.b16 %v447, %v446
      %v486 = vpack.c.b16 %v449, %v448
      %v487 = vpack.c.b16 %v451, %v450
      %v488 = vpack.c.b16 %v453, %v452
      %v489 = vpack.c.b16 %v455, %v454
      %v490 = vpack.c.b16 %v457, %v456
      %v491 = vpack.c.b16 %v459, %v458
      %v492 = vpack.c.b16 %v461, %v460
      %v493 = vpack.c.b16 %v463, %v462
      %v494 = vpack.c.b16 %v465, %v464
      %v495 = vpack.c.b16 %v467, %v466
      %v496 = vpack.c.b16 %v469, %v468
      %v497 = vpack.c.b16 %v471, %v470
      %v498 = vpack.c.b16 %v473, %v472
      %v499 = vpack.c.b16 %v475, %v474
      %524 = vmatprep.subr.bf16.mxu0 0
      %525 = vmatpush1.bf16.msra.mxu0 %v476
      %526 = vmatprep.subr.bf16.mxu0 0
      %527 = vmatpush1.bf16.msra.mxu0 %v477
      %528 = vmatprep.subr.bf16.mxu0 0
      %529 = vmatpush1.bf16.msra.mxu0 %v478
      %530 = vmatprep.subr.bf16.mxu0 0
      %531 = vmatpush1.bf16.msra.mxu0 %v479
      %532 = vmatprep.subr.bf16.mxu0 0
      %533 = vmatpush1.bf16.msra.mxu0 %v480
      %534 = vmatprep.subr.bf16.mxu0 0
      %535 = vmatpush1.bf16.msra.mxu0 %v481
      %536 = vmatprep.subr.bf16.mxu0 0
      %537 = vmatpush1.bf16.msra.mxu0 %v482
      %538 = vmatprep.subr.bf16.mxu0 0
      %539 = vmatpush1.bf16.msra.mxu0 %v483
      %540 = vmatprep.subr.bf16.mxu0 0
      %541 = vmatpush1.bf16.msra.mxu0 %v484
      %542 = vmatprep.subr.bf16.mxu0 0
      %543 = vmatpush1.bf16.msra.mxu0 %v485
      %544 = vmatprep.subr.bf16.mxu0 0
      %545 = vmatpush1.bf16.msra.mxu0 %v486
      %546 = vmatprep.subr.bf16.mxu0 0
      %547 = vmatpush1.bf16.msra.mxu0 %v487
      %548 = vmatprep.subr.bf16.mxu0 0
      %549 = vmatpush1.bf16.msra.mxu0 %v488
      %550 = vmatprep.subr.bf16.mxu0 0
      %551 = vmatpush1.bf16.msra.mxu0 %v489
      %552 = vmatprep.subr.bf16.mxu0 0
      %553 = vmatpush1.bf16.msra.mxu0 %v490
      %554 = vmatprep.subr.bf16.mxu0 0
      %555 = vmatpush1.bf16.msra.mxu0 %v491
      %556 = vmatprep.mubr.bf16.mxu0 %v369
      %557 = vmatmul.mubr.bf16.gmra.mrb[0].mxu0 %v368
      %v558 = vpop.f32.mrb[0].mxu0
      %v559 = vadd.f32 %v331, %v558
      %v560 = vpop.f32.mrb[0].mxu0
      %v561 = vpop.f32.mrb[0].mxu0
      %v562 = vadd.f32 %v336, %v561
      %v563 = vpop.f32.mrb[0].mxu0
      %564 = vmatprep.mubr.bf16.mxu0 %v372
      %565 = vmatmul.mubr.bf16.gmra.mrb[0].mxu0 %v371
      %v566 = vpop.f32.mrb[0].mxu0
      %v567 = vadd.f32 %v341, %v566
      %v568 = vpop.f32.mrb[0].mxu0
      %v569 = vpop.f32.mrb[0].mxu0
      %v570 = vadd.f32 %v346, %v569
      %v571 = vpop.f32.mrb[0].mxu0
      %572 = vdwg.mxu0
      %573 = vmatprep.subr.bf16.mxu0 0
      %574 = vmatpush1.bf16.msra.mxu0 %v492
      %575 = vmatprep.subr.bf16.mxu0 0
      %576 = vmatpush1.bf16.msra.mxu0 %v493
      %577 = vmatprep.subr.bf16.mxu0 0
      %578 = vmatpush1.bf16.msra.mxu0 %v494
      %579 = vmatprep.subr.bf16.mxu0 0
      %580 = vmatpush1.bf16.msra.mxu0 %v495
      %581 = vmatprep.subr.bf16.mxu0 0
      %582 = vmatpush1.bf16.msra.mxu0 %v496
      %583 = vmatprep.subr.bf16.mxu0 0
      %584 = vmatpush1.bf16.msra.mxu0 %v497
      %585 = vmatprep.subr.bf16.mxu0 0
      %586 = vmatpush1.bf16.msra.mxu0 %v498
      %587 = vmatprep.subr.bf16.mxu0 0
      %588 = vmatpush1.bf16.msra.mxu0 %v499
      %589 = vmatprep.subr.bf16.mxu0 0
      %590 = vmatpush1.bf16.msra.mxu0 0
      %591 = vmatprep.subr.bf16.mxu0 0
      %592 = vmatpush1.bf16.msra.mxu0 0
      %593 = vmatprep.subr.bf16.mxu0 0
      %594 = vmatpush1.bf16.msra.mxu0 0
      %595 = vmatprep.subr.bf16.mxu0 0
      %596 = vmatpush1.bf16.msra.mxu0 0
      %597 = vmatprep.subr.bf16.mxu0 0
      %598 = vmatpush1.bf16.msra.mxu0 0
      %599 = vmatprep.subr.bf16.mxu0 0
      %600 = vmatpush1.bf16.msra.mxu0 0
      %601 = vmatprep.subr.bf16.mxu0 0
      %602 = vmatpush1.bf16.msra.mxu0 0
      %603 = vmatprep.subr.bf16.mxu0 0
      %604 = vmatpush1.bf16.msra.mxu0 0
      %605 = vmatprep.mubr.bf16.mxu0 0
      %606 = vmatmul.mubr.bf16.gmra.mrb[0].mxu0 %v370
      %v607 = vpop.f32.mrb[0].mxu0
      %v608 = vadd.f32 %v559, %v607
      %v609 = vpop.f32.mrb[0].mxu0
      %v610 = vpop.f32.mrb[0].mxu0
      %v611 = vadd.f32 %v562, %v610
      %v612 = vpop.f32.mrb[0].mxu0
      %613 = vmatprep.mubr.bf16.mxu0 0
      %614 = vmatmul.mubr.bf16.gmra.mrb[0].mxu0 %v373
      %v615 = vpop.f32.mrb[0].mxu0
      %v616 = vadd.f32 %v567, %v615
      %v617 = vpop.f32.mrb[0].mxu0
      %v618 = vpop.f32.mrb[0].mxu0
      %v619 = vadd.f32 %v570, %v618
      %v620 = vpop.f32.mrb[0].mxu0
      %621 = vdwg.mxu0
      %v622 = vmax.f32 %v608, 0.0
      %v623 = vmax.f32 %v611, 0.0
      %v624 = vmax.f32 %v616, 0.0
      %v625 = vmax.f32 %v619, 0.0
      %v626 = vpack.c.bf16 %v623, %v622
      %v627 = vpack.c.bf16 %v625, %v624
      %v630 = vunpack.c.l.b16 %v626
      %v631 = vunpack.c.h.b16 %v626
      %v632 = vunpack.c.l.b16 %v627
      %v633 = vunpack.c.h.b16 %v627
      %v634 = vpack.c.b16 %v630, %v630
      %v635 = vpack.c.b16 %v631, %v631
      %v636 = vpack.c.b16 %v632, %v632
      %v637 = vpack.c.b16 %v633, %v633
      %642 = vst [vmem:[%s265] sm:$0xf] %v634
      %643 = vst [vmem:[%s265 + $0x4] sm:$0xf] %v635
      %644 = vst [vmem:[%s265 + $0x8] sm:$0xf] %v636
      %645 = vst [vmem:[%s265 + $0xc] sm:$0xf] %v637
      %s646 = smul.u32 4, %s21
      %p647 = scmp.lt.s32.totalorder %s19, 1
      %s648 = scalar_select %p647, %s19, 1
      %p649 = scmp.lt.s32.totalorder %s646, 3
      %s650 = scalar_select %p649, %s646, 3
      %p651 = scmp.lt.s32.totalorder %s20, 0
      %s652 = scalar_select %p651, %s20, 0
      %s653 = sadd.s32 %s652, %s650
      %s654 = smul.addr %s648, 4
      %s655 = sadd.s32 %s653, %s654
      %s656 = smul.addr %s655, 4
      %s657 = scalar_lea.vmem %s3, %s656
      // Predicated region
      $region33: #{wav2letter_forward.10} parent=31 // pred_check
        %p658 = pneg %p135
      $region34: #{wav2letter_forward.10} parent=31 // pred_check_branch
        %660 = sbr.rel (%p658) target = $region36
      $region35: #{wav2letter_forward.10} parent=31 // pred_region
        %s661 = smul.u32 4, %s21
      $region36: #{wav2letter_forward.10} parent=31 // pred_fallthru
        _
    $region32: #{wav2letter_forward.10} parent=5 // pred_fallthru
      _
    %p662 = scmp.le.s32.totalorder 2, %s9
    // Predicated region
    $region37: #{wav2letter_forward.10} parent=5 // pred_check
      %p663 = pneg %p662
    $region38: #{wav2letter_forward.10} parent=5 // pred_check_branch
      %665 = sbr.rel (%p663) target = $region40
    $region39: #{wav2letter_forward.10} parent=5 // pred_region
      %s666 = ssub.s32 %s9, 2
      // Predicated region
      $region41: #{wav2letter_forward.10} parent=39 // pred_check
        %p667 = pneg %p141
      $region42: #{wav2letter_forward.10} parent=39 // pred_check_branch
        %669 = sbr.rel (%p667) target = $region44
      $region43: #{wav2letter_forward.10} parent=39 // pred_region
        %s670 = smul.u32 4, %s24
        %p671 = scmp.lt.s32.totalorder %s22, 1
        %s672 = scalar_select %p671, %s22, 1
        %p673 = scmp.lt.s32.totalorder %s670, 3
        %s674 = scalar_select %p673, %s670, 3
        %p675 = scmp.lt.s32.totalorder %s23, 0
        %s676 = scalar_select %p675, %s23, 0
        %s677 = sadd.s32 %s676, %s674
        %s678 = smul.addr %s672, 4
        %s679 = sadd.s32 %s677, %s678
        %s680 = smul.addr %s679, 4
        %s681 = scalar_lea.vmem %s3, %s680
      $region44: #{wav2letter_forward.10} parent=39 // pred_fallthru
        _
    $region40: #{wav2letter_forward.10} parent=5 // pred_fallthru
      _
  $region6: #{wav2letter_forward.10} parent=0 // loop_footer
    %s13 = sadd.s32 1, %s9
  $region7: #{wav2letter_forward.10} parent=0 // loop_footer_branch
    %8 = sbr.rel target = $region3
  $region8: #{wav2letter_forward.10} parent=0 // loop_exit
    _

// kernel: wav2letter_forward.11
$region0: #{wav2letter_forward.11}
  #allocation0 [shape = 'u32[]', space=smem, size = 0x4, offset = 0x4, fixed_abs, tag = 'smem constant byte address 0x4 - core index']
  #allocation1 [shape = 'u32[144,128]{1,0:T(1,128)}', space=vmem, size = 0x12000, scoped, tag = 'internal scratch']
  %s0 = inlined_call_operand.hbm [shape: bf16[2,224,128], index: 0, kind: input, shape index: {}]
  %s1 = inlined_call_operand.vmem [shape: bf16[32,224], index: 1, kind: input, shape index: {}]
  %s2 = inlined_call_operand.vmem [shape: f32[32,1], index: 2, kind: input, shape index: {}]
  %s3 = inlined_call_operand.vmem [shape: bf16[2,32,128], index: 3, kind: output, shape index: {}]
  %s4 = sld [smem:[#allocation0]]
  $region49: #{wav2letter_forward.11} parent=0
    _
  %s6 = ssub.s32 1, %s4
  %s7 = scalar_select 0, %s6, %s4
  $region1: #{wav2letter_forward.11} parent=0
    #allocation2 [shape = 'u8[114688]{0}', space=vmem, size = 0x1c000, scoped, tag = 'input window, operand 0']
    #allocation3 [shape = 's32[2]{0}', space=sflag, size = 0x8, scoped, tag = 'scoped memory for wav2letter_forward.11']
    %8 = vsyncpa [#allocation3], 0
    %s9 = scalar_lea.sflag [#allocation3], 1
    %10 = vsyncpa %s9, 0
    loop: start=0, step=1, limit=4
    $region2: #{wav2letter_forward.11} parent=1 // loop_pre_header
      _
    $region3: #{wav2letter_forward.11} parent=1 // loop_header
      %s12 = sphi 0, %s16
      %p13 = scmp.ge.s32.totalorder %s12, 4
      %s19 = sphi 0, %s38
      %s20 = sphi 0, %s34
      %s21 = sphi 0, %s30
      %s22 = sphi 0, %s19
      %s23 = sphi 0, %s20
      %s24 = sphi 0, %s21
      %s25 = sphi 0, %s22
      %s26 = sphi 0, %s23
      %s27 = sphi 0, %s24
      %s43 = sphi 0, %s45
      %s46 = sphi 0, %s43
      %s47 = sphi 0, %s46
      %s63 = sphi 0, %s47
      %s69 = sphi 0, %s71
      %s72 = sphi 0, %s69
      %s73 = sphi 0, %s72
      %s89 = sphi 0, %s73
      %s95 = sphi 0, %s97
      %s98 = sphi 0, %s95
      %s99 = sphi 0, %s98
      %s115 = sphi 0, %s99
      %s125 = sphi 0, %s127
      %s128 = sphi 0, %s125
      %s129 = sphi 0, %s128
      %s145 = sphi 0, %s129
    $region4: #{wav2letter_forward.11} parent=1 // loop_header_branch
      %15 = sbr.rel (%p13) target = $region8
    $region5: #{wav2letter_forward.11} parent=1 // loop_body
      %s17 = ssub.s32 %s12, 1
      %s18 = ssub.s32 %s12, 2
      %s28 = sadd.s32 1, %s21
      %p29 = scmp.ge.s32.totalorder %s28, 1
      %s30 = scalar_select %p29, 0, %s28
      %s31 = sadd.s32 1, %s20
      %s32 = scalar_select %p29, %s31, %s20
      %p33 = scmp.ge.s32.totalorder %s32, 1
      %s34 = scalar_select %p33, 0, %s32
      %s35 = sadd.s32 1, %s19
      %s36 = scalar_select %p33, %s35, %s19
      %p37 = scmp.ge.s32.totalorder %s36, 2
      %s38 = scalar_select %p37, 0, %s36
      %s39 = ssub.s32 %s19, %s38
      %s40 = ssub.s32 %s20, %s34
      %s41 = sor.u32 %s39, %s40
      %p42 = scmp.eq.s32.totalorder %s41, 0
      %s44 = sadd.s32 %s43, 1
      %s45 = scalar_select %p42, %s43, %s44
      %p48 = pneg %p42
      %p49 = scmp.eq.s32.totalorder %s12, 1
      %p50 = por %p48, %p49
      %p51 = scmp.ne.s32.totalorder %s43, %s46
      %p52 = scmp.eq.s32.totalorder %s12, 0
      %p53 = por %p51, %p52
      %p54 = scmp.ne.s32.totalorder %s43, %s46
      %p55 = scmp.eq.s32.totalorder %s17, 1
      %p56 = por %p54, %p55
      %p57 = scmp.ne.s32.totalorder %s46, %s47
      %p58 = scmp.eq.s32.totalorder %s17, 0
      %p59 = por %p57, %p58
      %p60 = scmp.ne.s32.totalorder %s46, %s47
      %p61 = scmp.eq.s32.totalorder %s18, 1
      %p62 = por %p60, %p61
      %p64 = scmp.ne.s32.totalorder %s47, %s63
      %p65 = scmp.eq.s32.totalorder %s18, 0
      %p66 = por %p64, %p65
      %s67 = ssub.s32 %s21, %s30
      %p68 = scmp.eq.s32.totalorder %s67, 0
      %s70 = sadd.s32 %s69, 1
      %s71 = scalar_select %p68, %s69, %s70
      %p74 = pneg %p68
      %p75 = scmp.eq.s32.totalorder %s12, 1
      %p76 = por %p74, %p75
      %p77 = scmp.ne.s32.totalorder %s69, %s72
      %p78 = scmp.eq.s32.totalorder %s12, 0
      %p79 = por %p77, %p78
      %p80 = scmp.ne.s32.totalorder %s69, %s72
      %p81 = scmp.eq.s32.totalorder %s17, 1
      %p82 = por %p80, %p81
      %p83 = scmp.ne.s32.totalorder %s72, %s73
      %p84 = scmp.eq.s32.totalorder %s17, 0
      %p85 = por %p83, %p84
      %p86 = scmp.ne.s32.totalorder %s72, %s73
      %p87 = scmp.eq.s32.totalorder %s18, 1
      %p88 = por %p86, %p87
      %p90 = scmp.ne.s32.totalorder %s73, %s89
      %p91 = scmp.eq.s32.totalorder %s18, 0
      %p92 = por %p90, %p91
      %s93 = ssub.s32 %s21, %s30
      %p94 = scmp.eq.s32.totalorder %s93, 0
      %s96 = sadd.s32 %s95, 1
      %s97 = scalar_select %p94, %s95, %s96
      %p100 = pneg %p94
      %p101 = scmp.eq.s32.totalorder %s12, 1
      %p102 = por %p100, %p101
      %p103 = scmp.ne.s32.totalorder %s95, %s98
      %p104 = scmp.eq.s32.totalorder %s12, 0
      %p105 = por %p103, %p104
      %p106 = scmp.ne.s32.totalorder %s95, %s98
      %p107 = scmp.eq.s32.totalorder %s17, 1
      %p108 = por %p106, %p107
      %p109 = scmp.ne.s32.totalorder %s98, %s99
      %p110 = scmp.eq.s32.totalorder %s17, 0
      %p111 = por %p109, %p110
      %p112 = scmp.ne.s32.totalorder %s98, %s99
      %p113 = scmp.eq.s32.totalorder %s18, 1
      %p114 = por %p112, %p113
      %p116 = scmp.ne.s32.totalorder %s99, %s115
      %p117 = scmp.eq.s32.totalorder %s18, 0
      %p118 = por %p116, %p117
      %s119 = ssub.s32 %s19, %s38
      %s120 = ssub.s32 %s21, %s30
      %s121 = sor.u32 %s119, %s120
      %s122 = ssub.s32 %s20, %s34
      %s123 = sor.u32 %s121, %s122
      %p124 = scmp.eq.s32.totalorder %s123, 0
      %s126 = sadd.s32 %s125, 1
      %s127 = scalar_select %p124, %s125, %s126
      %p130 = pneg %p124
      %p131 = scmp.eq.s32.totalorder %s12, 1
      %p132 = por %p130, %p131
      %p133 = scmp.ne.s32.totalorder %s125, %s128
      %p134 = scmp.eq.s32.totalorder %s12, 0
      %p135 = por %p133, %p134
      %p136 = scmp.ne.s32.totalorder %s125, %s128
      %p137 = scmp.eq.s32.totalorder %s17, 1
      %p138 = por %p136, %p137
      %p139 = scmp.ne.s32.totalorder %s128, %s129
      %p140 = scmp.eq.s32.totalorder %s17, 0
      %p141 = por %p139, %p140
      %p142 = scmp.ne.s32.totalorder %s128, %s129
      %p143 = scmp.eq.s32.totalorder %s18, 1
      %p144 = por %p142, %p143
      %p146 = scmp.ne.s32.totalorder %s129, %s145
      %p147 = scmp.eq.s32.totalorder %s18, 0
      %p148 = por %p146, %p147
      %p149 = scmp.le.s32.totalorder 1, %s12
      %p150 = scmp.lt.s32.totalorder %s12, 3
      %p151 = pnand %p149, %p150
      %p152 = pneg %p151
      // Predicated region
      $region9: #{wav2letter_forward.11} parent=5 // pred_check
        _
      $region10: #{wav2letter_forward.11} parent=5 // pred_check_branch
        %154 = sbr.rel (%p151) target = $region12
      $region11: #{wav2letter_forward.11} parent=5 // pred_region
        %s155 = ssub.s32 %s12, 1
        // Predicated region
        $region13: #{wav2letter_forward.11} parent=11 // pred_check
          %p156 = pneg %p85
        $region14: #{wav2letter_forward.11} parent=11 // pred_check_branch
          %158 = sbr.rel (%p156) target = $region16
        $region15: #{wav2letter_forward.11} parent=11 // pred_region
          %s159 = smul.u32 4, %s24
          %p160 = scmp.lt.s32.totalorder %s159, 3
          %s161 = scalar_select %p160, %s159, 3
          %s162 = smul.addr %s161, 2
          %s163 = smul.addr %s162, 4
          %s164 = scalar_lea.vmem %s1, %s163
          %s165 = smul.u32 4, %s24
        $region16: #{wav2letter_forward.11} parent=11 // pred_fallthru
          _
        // Predicated region
        $region17: #{wav2letter_forward.11} parent=11 // pred_check
          %p166 = pneg %p111
        $region18: #{wav2letter_forward.11} parent=11 // pred_check_branch
          %168 = sbr.rel (%p166) target = $region20
        $region19: #{wav2letter_forward.11} parent=11 // pred_region
          %s169 = smul.u32 4, %s24
          %p170 = scmp.lt.s32.totalorder %s169, 3
          %s171 = scalar_select %p170, %s169, 3
          %s172 = smul.addr %s171, 8
          %s173 = scalar_lea.vmem %s2, %s172
          %s174 = smul.u32 4, %s24
        $region20: #{wav2letter_forward.11} parent=11 // pred_fallthru
          _
      $region12: #{wav2letter_forward.11} parent=5 // pred_fallthru
        _
      %p175 = scmp.lt.s32.totalorder %s12, 2
      // Predicated region
      $region21: #{wav2letter_forward.11} parent=5 // pred_check
        %p176 = pneg %p175
      $region22: #{wav2letter_forward.11} parent=5 // pred_check_branch
        %178 = sbr.rel (%p176) target = $region24
      $region23: #{wav2letter_forward.11} parent=5 // pred_region
        // Predicated region
        $region25: #{wav2letter_forward.11} parent=23 // pred_check
          %p179 = pneg %p53
        $region26: #{wav2letter_forward.11} parent=23 // pred_check_branch
          %181 = sbr.rel (%p179) target = $region28
        $region27: #{wav2letter_forward.11} parent=23 // pred_region
          %s182 = sand.u32 %s43, 1
          %s183 = scalar_lea.sflag [#allocation3], %s182
          %s184 = sand.u32 %s43, 1
          %s185 = smul.addr %s184, 112
          %s186 = scalar_lea.vmem [#allocation2], %s185
          %s188 = ssub.s32 1792, 1792
          %189 = vsyncadd %s183, %s188
          %s190 = smul.addr %s19, 28
          %s191 = sadd.s32 %s20, %s190
          %s192 = smul.addr %s191, 64
          %s193 = scalar_lea.hbm %s0, %s192
          %s194 = sshll.u32 %s186, 4
          %s195 = int_to_ptr.vmem [resolvable:$true] %s194
          %200 = dma.hbm_to_vmem [thread:$0]  %s193, 1792, %s195, %s183, 64, 64, 4
        $region28: #{wav2letter_forward.11} parent=23 // pred_fallthru
          _
      $region24: #{wav2letter_forward.11} parent=5 // pred_fallthru
        _
      %p201 = scmp.le.s32.totalorder 1, %s12
      %p202 = scmp.lt.s32.totalorder %s12, 3
      %p203 = pnand %p201, %p202
      %p204 = pneg %p203
      // Predicated region
      $region29: #{wav2letter_forward.11} parent=5 // pred_check
        _
      $region30: #{wav2letter_forward.11} parent=5 // pred_check_branch
        %206 = sbr.rel (%p203) target = $region32
      $region31: #{wav2letter_forward.11} parent=5 // pred_region
        %s207 = ssub.s32 %s12, 1
        %s208 = sand.u32 %s46, 1
        %s209 = scalar_lea.sflag [#allocation3], %s208
        %s210 = sand.u32 %s46, 1
        %s211 = smul.addr %s210, 112
        %s212 = scalar_lea.vmem [#allocation2], %s211
        // Predicated region
        $region33: #{wav2letter_forward.11} parent=31 // pred_check
          %p213 = pneg %p59
        $region34: #{wav2letter_forward.11} parent=31 // pred_check_branch
          %215 = sbr.rel (%p213) target = $region36
        $region35: #{wav2letter_forward.11} parent=31 // pred_region
          %216 = dma.done %s209, 1792
        $region36: #{wav2letter_forward.11} parent=31 // pred_fallthru
          _
        %s217 = sand.u32 %s46, 1
        %s218 = scalar_lea.sflag [#allocation3], %s217
        %s219 = sand.u32 %s46, 1
        %s220 = smul.addr %s219, 112
        %s221 = scalar_lea.vmem [#allocation2], %s220
        %p222 = pneg %p59
        %p223 = pneg %p56
        %s224 = smul.u32 4, %s24
        %p225 = scmp.lt.s32.totalorder %s224, 3
        %s226 = scalar_select %p225, %s224, 3
        %s227 = smul.addr %s226, 2
        %s228 = smul.addr %s227, 4
        %s229 = scalar_lea.vmem %s1, %s228
        %p230 = pneg %p85
        %p231 = pneg %p82
        %s232 = smul.u32 4, %s24
        %p233 = scmp.lt.s32.totalorder %s232, 3
        %s234 = scalar_select %p233, %s232, 3
        %s235 = smul.addr %s234, 8
        %s236 = scalar_lea.vmem %s2, %s235
        %p237 = pneg %p111
        %p238 = pneg %p108
        %p239 = pneg %p141
        %p240 = pneg %p138
        %s241 = smul.u32 4, %s24
        %p242 = scmp.lt.s32.totalorder %s22, 1
        %s243 = scalar_select %p242, %s22, 1
        %p244 = scmp.lt.s32.totalorder %s241, 3
        %s245 = scalar_select %p244, %s241, 3
        %p246 = scmp.lt.s32.totalorder %s23, 0
        %s247 = scalar_select %p246, %s23, 0
        %s248 = sadd.s32 %s247, %s245
        %s249 = smul.addr %s243, 4
        %s250 = sadd.s32 %s248, %s249
        %s251 = smul.addr %s250, 4
        %s252 = scalar_lea.vmem %s3, %s251
        %s253 = smul.u32 4, %s24
        %p254 = scmp.lt.s32.totalorder %s253, 3
        %s255 = scalar_select %p254, %s253, 3
        %s256 = smul.addr %s255, 2
        %s257 = smul.addr %s256, 4
        %s258 = scalar_lea.vmem %s1, %s257
        %s259 = smul.u32 4, %s24
        %s260 = smul.u32 4, %s24
        %p261 = scmp.lt.s32.totalorder %s260, 3
        %s262 = scalar_select %p261, %s260, 3
        %s263 = smul.addr %s262, 8
        %s264 = scalar_lea.vmem %s2, %s263
        %s265 = smul.u32 4, %s24
        %s266 = smul.u32 4, %s24
        %p267 = scmp.lt.s32.totalorder %s22, 1
        %s268 = scalar_select %p267, %s22, 1
        %p269 = scmp.lt.s32.totalorder %s266, 3
        %s270 = scalar_select %p269, %s266, 3
        %p271 = scmp.lt.s32.totalorder %s23, 0
        %s272 = scalar_select %p271, %s23, 0
        %s273 = sadd.s32 %s272, %s270
        %s274 = smul.addr %s268, 4
        %s275 = sadd.s32 %s273, %s274
        %s276 = smul.addr %s275, 4
        %s277 = scalar_lea.vmem %s3, %s276
        %s278 = smul.u32 4, %s24
        %v280 = vld [vmem:[%s258] sm:$0xff]
        %v281 = vld [vmem:[%s258 + $0x8] sm:$0xff]
        %v282 = vld [vmem:[%s258 + $0x10] sm:$0xff]
        %v283 = vld [vmem:[%s258 + $0x18] sm:$0xff]
        %v284 = vld [vmem:[%s212] sm:$0xf]
        %v285 = vld [vmem:[%s212 + $0x4] sm:$0xf]
        %v286 = vld [vmem:[%s212 + $0x8] sm:$0xf]
        %v287 = vld [vmem:[%s212 + $0xc] sm:$0xf]
        %v288 = vld [vmem:[%s212 + $0x10] sm:$0xf]
        %v289 = vld [vmem:[%s212 + $0x14] sm:$0xf]
        %v290 = vld [vmem:[%s212 + $0x18] sm:$0xf]
        %v291 = vld [vmem:[%s212 + $0x1c] sm:$0xf]
        %v292 = vld [vmem:[%s212 + $0x20] sm:$0xf]
        %v293 = vld [vmem:[%s212 + $0x24] sm:$0xf]
        %v294 = vld [vmem:[%s212 + $0x28] sm:$0xf]
        %v295 = vld [vmem:[%s212 + $0x2c] sm:$0xf]
        %v296 = vld [vmem:[%s212 + $0x30] sm:$0xf]
        %v297 = vld [vmem:[%s212 + $0x34] sm:$0xf]
        %v298 = vld [vmem:[%s212 + $0x38] sm:$0xf]
        %v299 = vld [vmem:[%s212 + $0x3c] sm:$0xf]
        %v300 = vld [vmem:[%s212 + $0x40] sm:$0xf]
        %v301 = vld [vmem:[%s212 + $0x44] sm:$0xf]
        %v302 = vld [vmem:[%s212 + $0x48] sm:$0xf]
        %v303 = vld [vmem:[%s212 + $0x4c] sm:$0xf]
        %v304 = vld [vmem:[%s212 + $0x50] sm:$0xf]
        %v305 = vld [vmem:[%s212 + $0x54] sm:$0xf]
        %v306 = vld [vmem:[%s212 + $0x58] sm:$0xf]
        %v307 = vld [vmem:[%s212 + $0x5c] sm:$0xf]
        %v308 = vld [vmem:[%s212 + $0x60] sm:$0xf]
        %v309 = vld [vmem:[%s212 + $0x64] sm:$0xf]
        %v310 = vld [vmem:[%s212 + $0x68] sm:$0xf]
        %v311 = vld [vmem:[%s212 + $0x6c] sm:$0xf]
        %v312 = vld [vmem:[%s264] sm:$0xff]
        %v313 = vld [vmem:[%s264 + $0x8] sm:$0xff]
        %v314 = vld [vmem:[%s264 + $0x10] sm:$0xff]
        %v315 = vld [vmem:[%s264 + $0x18] sm:$0xff]
        %317 = vset.pattern.permute.xlu0 0
        %318 = vperm.xlu0 %317, %v312
        %v319 = vpop.permute.xlu0 %318
        %322 = vset.pattern.permute.xlu0 0
        %323 = vperm.xlu0 %322, %v313
        %v324 = vpop.permute.xlu0 %323
        %327 = vset.pattern.permute.xlu0 0
        %328 = vperm.xlu0 %327, %v314
        %v329 = vpop.permute.xlu0 %328
        %332 = vset.pattern.permute.xlu0 0
        %333 = vperm.xlu0 %332, %v315
        %v334 = vpop.permute.xlu0 %333
        %v340 = vunpack.c.l.b16 %v280
        %v341 = vunpack.c.h.b16 %v280
        %v342 = vunpack.c.l.b16 %v281
        %v343 = vunpack.c.h.b16 %v281
        %v344 = vunpack.c.l.b16 %v282
        %v345 = vunpack.c.h.b16 %v282
        %v346 = vunpack.c.l.b16 %v283
        %v347 = vunpack.c.h.b16 %v283
        %v348 = vpack.c.b16 %v342, %v340
        %v349 = vpack.c.b16 %v343, %v341
        %v350 = vpack.c.b16 %v346, %v344
        %v351 = vpack.c.b16 %v347, %v345
        %v382 = vunpack.c.l.b16 %v284
        %v383 = vunpack.c.l.b16 %v285
        %v384 = vunpack.c.l.b16 %v286
        %v385 = vunpack.c.l.b16 %v287
        %v386 = vunpack.c.l.b16 %v288
        %v387 = vunpack.c.l.b16 %v289
        %v388 = vunpack.c.l.b16 %v290
        %v389 = vunpack.c.l.b16 %v291
        %v390 = vunpack.c.l.b16 %v292
        %v391 = vunpack.c.l.b16 %v293
        %v392 = vunpack.c.l.b16 %v294
        %v393 = vunpack.c.l.b16 %v295
        %v394 = vunpack.c.l.b16 %v296
        %v395 = vunpack.c.l.b16 %v297
        %v396 = vunpack.c.l.b16 %v298
        %v397 = vunpack.c.l.b16 %v299
        %v398 = vunpack.c.l.b16 %v300
        %v399 = vunpack.c.l.b16 %v301
        %v400 = vunpack.c.l.b16 %v302
        %v401 = vunpack.c.l.b16 %v303
        %v402 = vunpack.c.l.b16 %v304
        %v403 = vunpack.c.l.b16 %v305
        %v404 = vunpack.c.l.b16 %v306
        %v405 = vunpack.c.l.b16 %v307
        %v406 = vunpack.c.l.b16 %v308
        %v407 = vunpack.c.l.b16 %v309
        %v408 = vunpack.c.l.b16 %v310
        %v409 = vunpack.c.l.b16 %v311
        %v410 = vpack.c.b16 %v383, %v382
        %v411 = vpack.c.b16 %v385, %v384
        %v412 = vpack.c.b16 %v387, %v386
        %v413 = vpack.c.b16 %v389, %v388
        %v414 = vpack.c.b16 %v391, %v390
        %v415 = vpack.c.b16 %v393, %v392
        %v416 = vpack.c.b16 %v395, %v394
        %v417 = vpack.c.b16 %v397, %v396
        %v418 = vpack.c.b16 %v399, %v398
        %v419 = vpack.c.b16 %v401, %v400
        %v420 = vpack.c.b16 %v403, %v402
        %v421 = vpack.c.b16 %v405, %v404
        %v422 = vpack.c.b16 %v407, %v406
        %v423 = vpack.c.b16 %v409, %v408
        %vm438 = vcmask 785408
        %v440 = vsel %vm438, %v349, 0
        %v443 = vsel %vm438, %v351, 0
        %445 = vmatprep.subr.bf16.mxu0 0
        %446 = vmatpush1.bf16.msra.mxu0 %v410
        %447 = vmatprep.subr.bf16.mxu0 0
        %448 = vmatpush1.bf16.msra.mxu0 %v411
        %449 = vmatprep.subr.bf16.mxu0 0
        %450 = vmatpush1.bf16.msra.mxu0 %v412
        %451 = vmatprep.subr.bf16.mxu0 0
        %452 = vmatpush1.bf16.msra.mxu0 %v413
        %453 = vmatprep.subr.bf16.mxu0 0
        %454 = vmatpush1.bf16.msra.mxu0 %v414
        %455 = vmatprep.subr.bf16.mxu0 0
        %456 = vmatpush1.bf16.msra.mxu0 %v415
        %457 = vmatprep.subr.bf16.mxu0 0
        %458 = vmatpush1.bf16.msra.mxu0 %v416
        %459 = vmatprep.subr.bf16.mxu0 0
        %460 = vmatpush1.bf16.msra.mxu0 %v417
        %461 = vmatprep.subr.bf16.mxu0 0
        %462 = vmatpush1.bf16.msra.mxu0 %v418
        %463 = vmatprep.subr.bf16.mxu0 0
        %464 = vmatpush1.bf16.msra.mxu0 %v419
        %465 = vmatprep.subr.bf16.mxu0 0
        %466 = vmatpush1.bf16.msra.mxu0 %v420
        %467 = vmatprep.subr.bf16.mxu0 0
        %468 = vmatpush1.bf16.msra.mxu0 %v421
        %469 = vmatprep.subr.bf16.mxu0 0
        %470 = vmatpush1.bf16.msra.mxu0 %v422
        %471 = vmatprep.subr.bf16.mxu0 0
        %472 = vmatpush1.bf16.msra.mxu0 %v423
        %473 = vmatprep.subr.bf16.mxu0 0
        %474 = vmatpush1.bf16.msra.mxu0 0
        %475 = vmatprep.subr.bf16.mxu0 0
        %476 = vmatpush1.bf16.msra.mxu0 0
        %477 = vmatprep.mubr.bf16.mxu0 %v440
        %478 = vmatmul.mubr.bf16.gmra.mrb[0].mxu0 %v348
        %v479 = vpop.f32.mrb[0].mxu0
        %v480 = vadd.f32 %v319, %v479
        %v481 = vpop.f32.mrb[0].mxu0
        %v482 = vpop.f32.mrb[0].mxu0
        %v483 = vadd.f32 %v324, %v482
        %v484 = vpop.f32.mrb[0].mxu0
        %485 = vmatprep.mubr.bf16.mxu0 %v443
        %486 = vmatmul.mubr.bf16.gmra.mrb[0].mxu0 %v350
        %v487 = vpop.f32.mrb[0].mxu0
        %v488 = vadd.f32 %v329, %v487
        %v489 = vpop.f32.mrb[0].mxu0
        %v490 = vpop.f32.mrb[0].mxu0
        %v491 = vadd.f32 %v334, %v490
        %v492 = vpop.f32.mrb[0].mxu0
        %493 = vdwg.mxu0
        %v494 = vmax.f32 %v480, 0.0
        %v495 = vmax.f32 %v483, 0.0
        %v496 = vmax.f32 %v488, 0.0
        %v497 = vmax.f32 %v491, 0.0
        %v498 = vpack.c.bf16 %v495, %v494
        %v499 = vpack.c.bf16 %v497, %v496
        %v502 = vunpack.c.l.b16 %v498
        %v503 = vunpack.c.h.b16 %v498
        %v504 = vunpack.c.l.b16 %v499
        %v505 = vunpack.c.h.b16 %v499
        %v506 = vpack.c.b16 %v502, %v502
        %v507 = vpack.c.b16 %v503, %v503
        %v508 = vpack.c.b16 %v504, %v504
        %v509 = vpack.c.b16 %v505, %v505
        %514 = vst [vmem:[%s277] sm:$0xf] %v506
        %515 = vst [vmem:[%s277 + $0x4] sm:$0xf] %v507
        %516 = vst [vmem:[%s277 + $0x8] sm:$0xf] %v508
        %517 = vst [vmem:[%s277 + $0xc] sm:$0xf] %v509
        %s518 = smul.u32 4, %s24
        %p519 = scmp.lt.s32.totalorder %s22, 1
        %s520 = scalar_select %p519, %s22, 1
        %p521 = scmp.lt.s32.totalorder %s518, 3
        %s522 = scalar_select %p521, %s518, 3
        %p523 = scmp.lt.s32.totalorder %s23, 0
        %s524 = scalar_select %p523, %s23, 0
        %s525 = sadd.s32 %s524, %s522
        %s526 = smul.addr %s520, 4
        %s527 = sadd.s32 %s525, %s526
        %s528 = smul.addr %s527, 4
        %s529 = scalar_lea.vmem %s3, %s528
        // Predicated region
        $region37: #{wav2letter_forward.11} parent=31 // pred_check
          %p530 = pneg %p138
        $region38: #{wav2letter_forward.11} parent=31 // pred_check_branch
          %532 = sbr.rel (%p530) target = $region40
        $region39: #{wav2letter_forward.11} parent=31 // pred_region
          %s533 = smul.u32 4, %s24
        $region40: #{wav2letter_forward.11} parent=31 // pred_fallthru
          _
      $region32: #{wav2letter_forward.11} parent=5 // pred_fallthru
        _
      %p534 = scmp.le.s32.totalorder 2, %s12
      // Predicated region
      $region41: #{wav2letter_forward.11} parent=5 // pred_check
        %p535 = pneg %p534
      $region42: #{wav2letter_forward.11} parent=5 // pred_check_branch
        %537 = sbr.rel (%p535) target = $region44
      $region43: #{wav2letter_forward.11} parent=5 // pred_region
        %s538 = ssub.s32 %s12, 2
        // Predicated region
        $region45: #{wav2letter_forward.11} parent=43 // pred_check
          %p539 = pneg %p144
        $region46: #{wav2letter_forward.11} parent=43 // pred_check_branch
          %541 = sbr.rel (%p539) target = $region48
        $region47: #{wav2letter_forward.11} parent=43 // pred_region
          %s542 = smul.u32 4, %s27
          %p543 = scmp.lt.s32.totalorder %s25, 1
          %s544 = scalar_select %p543, %s25, 1
          %p545 = scmp.lt.s32.totalorder %s542, 3
          %s546 = scalar_select %p545, %s542, 3
          %p547 = scmp.lt.s32.totalorder %s26, 0
          %s548 = scalar_select %p547, %s26, 0
          %s549 = sadd.s32 %s548, %s546
          %s550 = smul.addr %s544, 4
          %s551 = sadd.s32 %s549, %s550
          %s552 = smul.addr %s551, 4
          %s553 = scalar_lea.vmem %s3, %s552
        $region48: #{wav2letter_forward.11} parent=43 // pred_fallthru
          _
      $region44: #{wav2letter_forward.11} parent=5 // pred_fallthru
        _
    $region6: #{wav2letter_forward.11} parent=1 // loop_footer
      %s16 = sadd.s32 1, %s12
    $region7: #{wav2letter_forward.11} parent=1 // loop_footer_branch
      %11 = sbr.rel target = $region3
    $region8: #{wav2letter_forward.11} parent=1 // loop_exit
      _
    %554 = vsyncpa [#allocation3], 1
    %s555 = scalar_lea.sflag [#allocation3], 1
    %556 = vsyncpa %s555, 1

// kernel: wav2letter_forward.19
$region0: #{wav2letter_forward.19}
  #allocation0 [shape = 'u32[]', space=smem, size = 0x4, offset = 0x4, fixed_abs, tag = 'smem constant byte address 0x4 - core index']
  #allocation1 [shape = 'u32[144,128]{1,0:T(1,128)}', space=vmem, size = 0x12000, scoped, tag = 'internal scratch']
  %s0 = inlined_call_operand.vmem [shape: bf16[2,64,128], index: 0, kind: input, shape index: {}]
  %s1 = inlined_call_operand.vmem [shape: bf16[64,64], index: 1, kind: input, shape index: {}]
  %s2 = inlined_call_operand.vmem [shape: f32[64,1], index: 2, kind: input, shape index: {}]
  %s3 = inlined_call_operand.vmem [shape: bf16[16,64], index: 3, kind: input, shape index: {}]
  %s4 = inlined_call_operand.vmem [shape: f32[16,1], index: 4, kind: input, shape index: {}]
  %s5 = inlined_call_operand.hbm [shape: f32[2,16,128], index: 5, kind: output, shape index: {}]
  %s6 = sld [smem:[#allocation0]]
  $region53: #{wav2letter_forward.19} parent=0
    _
  %s8 = ssub.s32 1, %s6
  %s9 = scalar_select 0, %s8, %s6
  $region1: #{wav2letter_forward.19} parent=0
    #allocation2 [shape = 'u8[16384]{0}', space=vmem, size = 0x4000, scoped, tag = 'output window, operand 0']
    #allocation3 [shape = 's32[2]{0}', space=sflag, size = 0x8, scoped, tag = 'scoped memory for wav2letter_forward.19']
    %10 = vsyncpa [#allocation3], 0
    %s11 = scalar_lea.sflag [#allocation3], 1
    %12 = vsyncpa %s11, 0
    loop: start=0, step=1, limit=4
    $region2: #{wav2letter_forward.19} parent=1 // loop_pre_header
      _
    $region3: #{wav2letter_forward.19} parent=1 // loop_header
      %s14 = sphi 0, %s18
      %p15 = scmp.ge.s32.totalorder %s14, 4
      %s21 = sphi 0, %s33
      %s22 = sphi 0, %s29
      %s23 = sphi 0, %s21
      %s24 = sphi 0, %s22
      %s25 = sphi 0, %s23
      %s26 = sphi 0, %s24
      %s38 = sphi 0, %s40
      %s41 = sphi 0, %s38
      %s42 = sphi 0, %s41
      %s58 = sphi 0, %s42
      %s62 = sphi 0, %s62
      %s64 = sphi 0, %s62
      %s65 = sphi 0, %s64
      %s79 = sphi 0, %s65
      %s83 = sphi 0, %s83
      %s85 = sphi 0, %s83
      %s86 = sphi 0, %s85
      %s100 = sphi 0, %s86
      %s104 = sphi 0, %s104
      %s106 = sphi 0, %s104
      %s107 = sphi 0, %s106
      %s121 = sphi 0, %s107
      %s125 = sphi 0, %s125
      %s127 = sphi 0, %s125
      %s128 = sphi 0, %s127
      %s142 = sphi 0, %s128
      %s150 = sphi 0, %s152
      %s153 = sphi 0, %s150
      %s154 = sphi 0, %s153
      %s170 = sphi 0, %s154
    $region4: #{wav2letter_forward.19} parent=1 // loop_header_branch
      %17 = sbr.rel (%p15) target = $region8
    $region5: #{wav2letter_forward.19} parent=1 // loop_body
      %s19 = ssub.s32 %s14, 1
      %s20 = ssub.s32 %s14, 2
      %s27 = sadd.s32 1, %s22
      %p28 = scmp.ge.s32.totalorder %s27, 1
      %s29 = scalar_select %p28, 0, %s27
      %s30 = sadd.s32 1, %s21
      %s31 = scalar_select %p28, %s30, %s21
      %p32 = scmp.ge.s32.totalorder %s31, 2
      %s33 = scalar_select %p32, 0, %s31
      %s34 = ssub.s32 %s21, %s33
      %s35 = ssub.s32 %s22, %s29
      %s36 = sor.u32 %s34, %s35
      %p37 = scmp.eq.s32.totalorder %s36, 0
      %s39 = sadd.s32 %s38, 1
      %s40 = scalar_select %p37, %s38, %s39
      %p43 = pneg %p37
      %p44 = scmp.eq.s32.totalorder %s14, 1
      %p45 = por %p43, %p44
      %p46 = scmp.ne.s32.totalorder %s38, %s41
      %p47 = scmp.eq.s32.totalorder %s14, 0
      %p48 = por %p46, %p47
      %p49 = scmp.ne.s32.totalorder %s38, %s41
      %p50 = scmp.eq.s32.totalorder %s19, 1
      %p51 = por %p49, %p50
      %p52 = scmp.ne.s32.totalorder %s41, %s42
      %p53 = scmp.eq.s32.totalorder %s19, 0
      %p54 = por %p52, %p53
      %p55 = scmp.ne.s32.totalorder %s41, %s42
      %p56 = scmp.eq.s32.totalorder %s20, 1
      %p57 = por %p55, %p56
      %p59 = scmp.ne.s32.totalorder %s42, %s58
      %p60 = scmp.eq.s32.totalorder %s20, 0
      %p61 = por %p59, %p60
      %s63 = sadd.s32 %s62, 1
      %p66 = scmp.eq.s32.totalorder %s14, 1
      %p67 = scmp.ne.s32.totalorder %s62, %s64
      %p68 = scmp.eq.s32.totalorder %s14, 0
      %p69 = por %p67, %p68
      %p70 = scmp.ne.s32.totalorder %s62, %s64
      %p71 = scmp.eq.s32.totalorder %s19, 1
      %p72 = por %p70, %p71
      %p73 = scmp.ne.s32.totalorder %s64, %s65
      %p74 = scmp.eq.s32.totalorder %s19, 0
      %p75 = por %p73, %p74
      %p76 = scmp.ne.s32.totalorder %s64, %s65
      %p77 = scmp.eq.s32.totalorder %s20, 1
      %p78 = por %p76, %p77
      %p80 = scmp.ne.s32.totalorder %s65, %s79
      %p81 = scmp.eq.s32.totalorder %s20, 0
      %p82 = por %p80, %p81
      %s84 = sadd.s32 %s83, 1
      %p87 = scmp.eq.s32.totalorder %s14, 1
      %p88 = scmp.ne.s32.totalorder %s83, %s85
      %p89 = scmp.eq.s32.totalorder %s14, 0
      %p90 = por %p88, %p89
      %p91 = scmp.ne.s32.totalorder %s83, %s85
      %p92 = scmp.eq.s32.totalorder %s19, 1
      %p93 = por %p91, %p92
      %p94 = scmp.ne.s32.totalorder %s85, %s86
      %p95 = scmp.eq.s32.totalorder %s19, 0
      %p96 = por %p94, %p95
      %p97 = scmp.ne.s32.totalorder %s85, %s86
      %p98 = scmp.eq.s32.totalorder %s20, 1
      %p99 = por %p97, %p98
      %p101 = scmp.ne.s32.totalorder %s86, %s100
      %p102 = scmp.eq.s32.totalorder %s20, 0
      %p103 = por %p101, %p102
      %s105 = sadd.s32 %s104, 1
      %p108 = scmp.eq.s32.totalorder %s14, 1
      %p109 = scmp.ne.s32.totalorder %s104, %s106
      %p110 = scmp.eq.s32.totalorder %s14, 0
      %p111 = por %p109, %p110
      %p112 = scmp.ne.s32.totalorder %s104, %s106
      %p113 = scmp.eq.s32.totalorder %s19, 1
      %p114 = por %p112, %p113
      %p115 = scmp.ne.s32.totalorder %s106, %s107
      %p116 = scmp.eq.s32.totalorder %s19, 0
      %p117 = por %p115, %p116
      %p118 = scmp.ne.s32.totalorder %s106, %s107
      %p119 = scmp.eq.s32.totalorder %s20, 1
      %p120 = por %p118, %p119
      %p122 = scmp.ne.s32.totalorder %s107, %s121
      %p123 = scmp.eq.s32.totalorder %s20, 0
      %p124 = por %p122, %p123
      %s126 = sadd.s32 %s125, 1
      %p129 = scmp.eq.s32.totalorder %s14, 1
      %p130 = scmp.ne.s32.totalorder %s125, %s127
      %p131 = scmp.eq.s32.totalorder %s14, 0
      %p132 = por %p130, %p131
      %p133 = scmp.ne.s32.totalorder %s125, %s127
      %p134 = scmp.eq.s32.totalorder %s19, 1
      %p135 = por %p133, %p134
      %p136 = scmp.ne.s32.totalorder %s127, %s128
      %p137 = scmp.eq.s32.totalorder %s19, 0
      %p138 = por %p136, %p137
      %p139 = scmp.ne.s32.totalorder %s127, %s128
      %p140 = scmp.eq.s32.totalorder %s20, 1
      %p141 = por %p139, %p140
      %p143 = scmp.ne.s32.totalorder %s128, %s142
      %p144 = scmp.eq.s32.totalorder %s20, 0
      %p145 = por %p143, %p144
      %s146 = ssub.s32 %s21, %s33
      %s147 = ssub.s32 %s22, %s29
      %s148 = sor.u32 %s146, %s147
      %p149 = scmp.eq.s32.totalorder %s148, 0
      %s151 = sadd.s32 %s150, 1
      %s152 = scalar_select %p149, %s150, %s151
      %p155 = pneg %p149
      %p156 = scmp.eq.s32.totalorder %s14, 1
      %p157 = por %p155, %p156
      %p158 = scmp.ne.s32.totalorder %s150, %s153
      %p159 = scmp.eq.s32.totalorder %s14, 0
      %p160 = por %p158, %p159
      %p161 = scmp.ne.s32.totalorder %s150, %s153
      %p162 = scmp.eq.s32.totalorder %s19, 1
      %p163 = por %p161, %p162
      %p164 = scmp.ne.s32.totalorder %s153, %s154
      %p165 = scmp.eq.s32.totalorder %s19, 0
      %p166 = por %p164, %p165
      %p167 = scmp.ne.s32.totalorder %s153, %s154
      %p168 = scmp.eq.s32.totalorder %s20, 1
      %p169 = por %p167, %p168
      %p171 = scmp.ne.s32.totalorder %s154, %s170
      %p172 = scmp.eq.s32.totalorder %s20, 0
      %p173 = por %p171, %p172
      %p174 = scmp.le.s32.totalorder 1, %s14
      %p175 = scmp.lt.s32.totalorder %s14, 3
      %p176 = pnand %p174, %p175
      %p177 = pneg %p176
      // Predicated region
      $region9: #{wav2letter_forward.19} parent=5 // pred_check
        _
      $region10: #{wav2letter_forward.19} parent=5 // pred_check_branch
        %179 = sbr.rel (%p176) target = $region12
      $region11: #{wav2letter_forward.19} parent=5 // pred_region
        %s180 = ssub.s32 %s14, 1
        // Predicated region
        $region13: #{wav2letter_forward.19} parent=11 // pred_check
          %p181 = pneg %p75
        $region14: #{wav2letter_forward.19} parent=11 // pred_check_branch
          %183 = sbr.rel (%p181) target = $region16
        $region15: #{wav2letter_forward.19} parent=11 // pred_region
          _
        $region16: #{wav2letter_forward.19} parent=11 // pred_fallthru
          _
        // Predicated region
        $region17: #{wav2letter_forward.19} parent=11 // pred_check
          %p184 = pneg %p96
        $region18: #{wav2letter_forward.19} parent=11 // pred_check_branch
          %186 = sbr.rel (%p184) target = $region20
        $region19: #{wav2letter_forward.19} parent=11 // pred_region
          _
        $region20: #{wav2letter_forward.19} parent=11 // pred_fallthru
          _
        // Predicated region
        $region21: #{wav2letter_forward.19} parent=11 // pred_check
          %p187 = pneg %p117
        $region22: #{wav2letter_forward.19} parent=11 // pred_check_branch
          %189 = sbr.rel (%p187) target = $region24
        $region23: #{wav2letter_forward.19} parent=11 // pred_region
          _
        $region24: #{wav2letter_forward.19} parent=11 // pred_fallthru
          _
        // Predicated region
        $region25: #{wav2letter_forward.19} parent=11 // pred_check
          %p190 = pneg %p138
        $region26: #{wav2letter_forward.19} parent=11 // pred_check_branch
          %192 = sbr.rel (%p190) target = $region28
        $region27: #{wav2letter_forward.19} parent=11 // pred_region
          _
        $region28: #{wav2letter_forward.19} parent=11 // pred_fallthru
          _
      $region12: #{wav2letter_forward.19} parent=5 // pred_fallthru
        _
      %p193 = scmp.lt.s32.totalorder %s14, 2
      // Predicated region
      $region29: #{wav2letter_forward.19} parent=5 // pred_check
        %p194 = pneg %p193
      $region30: #{wav2letter_forward.19} parent=5 // pred_check_branch
        %196 = sbr.rel (%p194) target = $region32
      $region31: #{wav2letter_forward.19} parent=5 // pred_region
        // Predicated region
        $region33: #{wav2letter_forward.19} parent=31 // pred_check
          %p197 = pneg %p48
        $region34: #{wav2letter_forward.19} parent=31 // pred_check_branch
          %199 = sbr.rel (%p197) target = $region36
        $region35: #{wav2letter_forward.19} parent=31 // pred_region
          %p200 = scmp.lt.s32.totalorder %s21, 1
          %s201 = scalar_select %p200, %s21, 1
          %p202 = scmp.lt.s32.totalorder %s22, 0
          %s203 = scalar_select %p202, %s22, 0
          %s204 = smul.addr %s201, 8
          %s205 = sadd.s32 %s203, %s204
          %s206 = smul.addr %s205, 4
          %s207 = scalar_lea.vmem %s0, %s206
        $region36: #{wav2letter_forward.19} parent=31 // pred_fallthru
          _
      $region32: #{wav2letter_forward.19} parent=5 // pred_fallthru
        _
      %p208 = scmp.le.s32.totalorder 1, %s14
      %p209 = scmp.lt.s32.totalorder %s14, 3
      %p210 = pnand %p208, %p209
      %p211 = pneg %p210
      // Predicated region
      $region37: #{wav2letter_forward.19} parent=5 // pred_check
        _
      $region38: #{wav2letter_forward.19} parent=5 // pred_check_branch
        %213 = sbr.rel (%p210) target = $region40
      $region39: #{wav2letter_forward.19} parent=5 // pred_region
        %s214 = ssub.s32 %s14, 1
        %p215 = scmp.lt.s32.totalorder %s23, 1
        %s216 = scalar_select %p215, %s23, 1
        %p217 = scmp.lt.s32.totalorder %s24, 0
        %s218 = scalar_select %p217, %s24, 0
        %s219 = smul.addr %s216, 8
        %s220 = sadd.s32 %s218, %s219
        %s221 = smul.addr %s220, 4
        %s222 = scalar_lea.vmem %s0, %s221
        %p223 = pneg %p54
        %p224 = pneg %p51
        %p225 = pneg %p75
        %p226 = pneg %p72
        %p227 = pneg %p96
        %p228 = pneg %p93
        %p229 = pneg %p117
        %p230 = pneg %p114
        %p231 = pneg %p138
        %p232 = pneg %p135
        %p233 = pneg %p166
        %p234 = pneg %p163
        %s235 = sand.u32 %s153, 1
        %s236 = scalar_lea.sflag [#allocation3], %s235
        %s237 = sand.u32 %s153, 1
        %s238 = smul.addr %s237, 16
        %s239 = scalar_lea.vmem [#allocation2], %s238
        %p240 = scmp.lt.s32.totalorder %s23, 1
        %s241 = scalar_select %p240, %s23, 1
        %p242 = scmp.lt.s32.totalorder %s24, 0
        %s243 = scalar_select %p242, %s24, 0
        %s244 = smul.addr %s241, 8
        %s245 = sadd.s32 %s243, %s244
        %s246 = smul.addr %s245, 4
        %s247 = scalar_lea.vmem %s0, %s246
        %v249 = vld [vmem:[%s247] sm:$0xf]
        %v250 = vld [vmem:[%s247 + $0x4] sm:$0xf]
        %v251 = vld [vmem:[%s247 + $0x8] sm:$0xf]
        %v252 = vld [vmem:[%s247 + $0xc] sm:$0xf]
        %v253 = vld [vmem:[%s247 + $0x10] sm:$0xf]
        %v254 = vld [vmem:[%s247 + $0x14] sm:$0xf]
        %v255 = vld [vmem:[%s247 + $0x18] sm:$0xf]
        %v256 = vld [vmem:[%s247 + $0x1c] sm:$0xf]
        %v257 = vld [vmem:[%s1] sm:$0xf]
        %v258 = vld [vmem:[%s1 + $0x4] sm:$0xf]
        %v259 = vld [vmem:[%s1 + $0x8] sm:$0xf]
        %v260 = vld [vmem:[%s1 + $0xc] sm:$0xf]
        %v261 = vld [vmem:[%s1 + $0x10] sm:$0xf]
        %v262 = vld [vmem:[%s1 + $0x14] sm:$0xf]
        %v263 = vld [vmem:[%s1 + $0x18] sm:$0xf]
        %v264 = vld [vmem:[%s1 + $0x1c] sm:$0xf]
        %v265 = vld [vmem:[%s2] sm:$0xff]
        %v266 = vld [vmem:[%s2 + $0x8] sm:$0xff]
        %v267 = vld [vmem:[%s2 + $0x10] sm:$0xff]
        %v268 = vld [vmem:[%s2 + $0x18] sm:$0xff]
        %v269 = vld [vmem:[%s2 + $0x20] sm:$0xff]
        %v270 = vld [vmem:[%s2 + $0x28] sm:$0xff]
        %v271 = vld [vmem:[%s2 + $0x30] sm:$0xff]
        %v272 = vld [vmem:[%s2 + $0x38] sm:$0xff]
        %274 = vset.pattern.permute.xlu0 0
        %275 = vperm.xlu0 %274, %v265
        %v276 = vpop.permute.xlu0 %275
        %279 = vset.pattern.permute.xlu0 0
        %280 = vperm.xlu0 %279, %v266
        %v281 = vpop.permute.xlu0 %280
        %284 = vset.pattern.permute.xlu0 0
        %285 = vperm.xlu0 %284, %v267
        %v286 = vpop.permute.xlu0 %285
        %289 = vset.pattern.permute.xlu0 0
        %290 = vperm.xlu0 %289, %v268
        %v291 = vpop.permute.xlu0 %290
        %294 = vset.pattern.permute.xlu0 0
        %295 = vperm.xlu0 %294, %v269
        %v296 = vpop.permute.xlu0 %295
        %299 = vset.pattern.permute.xlu0 0
        %300 = vperm.xlu0 %299, %v270
        %v301 = vpop.permute.xlu0 %300
        %304 = vset.pattern.permute.xlu0 0
        %305 = vperm.xlu0 %304, %v271
        %v306 = vpop.permute.xlu0 %305
        %309 = vset.pattern.permute.xlu0 0
        %310 = vperm.xlu0 %309, %v272
        %v311 = vpop.permute.xlu0 %310
        %v321 = vunpack.c.l.b16 %v257
        %v322 = vunpack.c.l.b16 %v258
        %v323 = vunpack.c.l.b16 %v259
        %v324 = vunpack.c.l.b16 %v260
        %v325 = vunpack.c.l.b16 %v261
        %v326 = vunpack.c.l.b16 %v262
        %v327 = vunpack.c.l.b16 %v263
        %v328 = vunpack.c.l.b16 %v264
        %v329 = vpack.c.b16 %v322, %v321
        %v330 = vpack.c.b16 %v324, %v323
        %v331 = vpack.c.b16 %v326, %v325
        %v332 = vpack.c.b16 %v328, %v327
        %v341 = vunpack.c.l.b16 %v249
        %v342 = vunpack.c.l.b16 %v250
        %v343 = vunpack.c.l.b16 %v251
        %v344 = vunpack.c.l.b16 %v252
        %v345 = vunpack.c.l.b16 %v253
        %v346 = vunpack.c.l.b16 %v254
        %v347 = vunpack.c.l.b16 %v255
        %v348 = vunpack.c.l.b16 %v256
        %v349 = vpack.c.b16 %v342, %v341
        %v350 = vpack.c.b16 %v344, %v343
        %v351 = vpack.c.b16 %v346, %v345
        %v352 = vpack.c.b16 %v348, %v347
        %vm357 = vcmask 523264
        %v359 = vsel %vm357, %v329, 0
        %v362 = vsel %vm357, %v330, 0
        %v365 = vsel %vm357, %v331, 0
        %v368 = vsel %vm357, %v332, 0
        %370 = vmatprep.subr.bf16.mxu0 0
        %371 = vmatpush1.bf16.msra.mxu0 %v349
        %372 = vmatprep.subr.bf16.mxu0 0
        %373 = vmatpush1.bf16.msra.mxu0 %v350
        %374 = vmatprep.subr.bf16.mxu0 0
        %375 = vmatpush1.bf16.msra.mxu0 %v351
        %376 = vmatprep.subr.bf16.mxu0 0
        %377 = vmatpush1.bf16.msra.mxu0 %v352
        %378 = vmatprep.subr.bf16.mxu0 0
        %379 = vmatpush1.bf16.msra.mxu0 0
        %380 = vmatprep.subr.bf16.mxu0 0
        %381 = vmatpush1.bf16.msra.mxu0 0
        %382 = vmatprep.subr.bf16.mxu0 0
        %383 = vmatpush1.bf16.msra.mxu0 0
        %384 = vmatprep.subr.bf16.mxu0 0
        %385 = vmatpush1.bf16.msra.mxu0 0
        %386 = vmatprep.subr.bf16.mxu0 0
        %387 = vmatpush1.bf16.msra.mxu0 0
        %388 = vmatprep.subr.bf16.mxu0 0
        %389 = vmatpush1.bf16.msra.mxu0 0
        %390 = vmatprep.subr.bf16.mxu0 0
        %391 = vmatpush1.bf16.msra.mxu0 0
        %392 = vmatprep.subr.bf16.mxu0 0
        %393 = vmatpush1.bf16.msra.mxu0 0
        %394 = vmatprep.subr.bf16.mxu0 0
        %395 = vmatpush1.bf16.msra.mxu0 0
        %396 = vmatprep.subr.bf16.mxu0 0
        %397 = vmatpush1.bf16.msra.mxu0 0
        %398 = vmatprep.subr.bf16.mxu0 0
        %399 = vmatpush1.bf16.msra.mxu0 0
        %400 = vmatprep.subr.bf16.mxu0 0
        %401 = vmatpush1.bf16.msra.mxu0 0
        %402 = vmatprep.mubr.bf16.mxu0 0
        %403 = vmatmul.mubr.bf16.gmra.mrb[0].mxu0 %v359
        %v404 = vpop.f32.mrb[0].mxu0
        %v405 = vadd.f32 %v276, %v404
        %v406 = vpop.f32.mrb[0].mxu0
        %v407 = vpop.f32.mrb[0].mxu0
        %v408 = vadd.f32 %v281, %v407
        %v409 = vpop.f32.mrb[0].mxu0
        %410 = vmatprep.mubr.bf16.mxu0 0
        %411 = vmatmul.mubr.bf16.gmra.mrb[0].mxu0 %v362
        %v412 = vpop.f32.mrb[0].mxu0
        %v413 = vadd.f32 %v286, %v412
        %v414 = vpop.f32.mrb[0].mxu0
        %v415 = vpop.f32.mrb[0].mxu0
        %v416 = vadd.f32 %v291, %v415
        %v417 = vpop.f32.mrb[0].mxu0
        %418 = vmatprep.mubr.bf16.mxu0 0
        %419 = vmatmul.mubr.bf16.gmra.mrb[0].mxu0 %v365
        %v420 = vpop.f32.mrb[0].mxu0
        %v421 = vadd.f32 %v296, %v420
        %v422 = vpop.f32.mrb[0].mxu0
        %v423 = vpop.f32.mrb[0].mxu0
        %v424 = vadd.f32 %v301, %v423
        %v425 = vpop.f32.mrb[0].mxu0
        %426 = vmatprep.mubr.bf16.mxu0 0
        %427 = vmatmul.mubr.bf16.gmra.mrb[0].mxu0 %v368
        %v428 = vpop.f32.mrb[0].mxu0
        %v429 = vadd.f32 %v306, %v428
        %v430 = vpop.f32.mrb[0].mxu0
        %v431 = vpop.f32.mrb[0].mxu0
        %v432 = vadd.f32 %v311, %v431
        %v433 = vpop.f32.mrb[0].mxu0
        %434 = vdwg.mxu0
        %v435 = vmax.f32 %v405, 0.0
        %v436 = vmax.f32 %v408, 0.0
        %v437 = vmax.f32 %v413, 0.0
        %v438 = vmax.f32 %v416, 0.0
        %v439 = vmax.f32 %v421, 0.0
        %v440 = vmax.f32 %v424, 0.0
        %v441 = vmax.f32 %v429, 0.0
        %v442 = vmax.f32 %v432, 0.0
        %v443 = vpack.c.bf16 %v436, %v435
        %v444 = vpack.c.bf16 %v438, %v437
        %v445 = vpack.c.bf16 %v440, %v439
        %v446 = vpack.c.bf16 %v442, %v441
        %v447 = vld [vmem:[%s3] sm:$0xf]
        %v448 = vld [vmem:[%s3 + $0x4] sm:$0xf]
        %v449 = vld [vmem:[%s4] sm:$0xff]
        %v450 = vld [vmem:[%s4 + $0x8] sm:$0xff]
        %452 = vset.pattern.permute.xlu0 0
        %453 = vperm.xlu0 %452, %v449
        %v454 = vpop.permute.xlu0 %453
        %457 = vset.pattern.permute.xlu0 0
        %458 = vperm.xlu0 %457, %v450
        %v459 = vpop.permute.xlu0 %458
        %v463 = vunpack.c.l.b16 %v447
        %v464 = vunpack.c.l.b16 %v448
        %v465 = vpack.c.b16 %v464, %v463
        %v467 = vsel %vm357, %v465, 0
        %469 = vmatprep.subr.bf16.mxu0 0
        %470 = vmatpush1.bf16.msra.mxu0 %v443
        %471 = vmatprep.subr.bf16.mxu0 0
        %472 = vmatpush1.bf16.msra.mxu0 %v444
        %473 = vmatprep.subr.bf16.mxu0 0
        %474 = vmatpush1.bf16.msra.mxu0 %v445
        %475 = vmatprep.subr.bf16.mxu0 0
        %476 = vmatpush1.bf16.msra.mxu0 %v446
        %477 = vmatprep.subr.bf16.mxu0 0
        %478 = vmatpush1.bf16.msra.mxu0 0
        %479 = vmatprep.subr.bf16.mxu0 0
        %480 = vmatpush1.bf16.msra.mxu0 0
        %481 = vmatprep.subr.bf16.mxu0 0
        %482 = vmatpush1.bf16.msra.mxu0 0
        %483 = vmatprep.subr.bf16.mxu0 0
        %484 = vmatpush1.bf16.msra.mxu0 0
        %485 = vmatprep.subr.bf16.mxu0 0
        %486 = vmatpush1.bf16.msra.mxu0 0
        %487 = vmatprep.subr.bf16.mxu0 0
        %488 = vmatpush1.bf16.msra.mxu0 0
        %489 = vmatprep.subr.bf16.mxu0 0
        %490 = vmatpush1.bf16.msra.mxu0 0
        %491 = vmatprep.subr.bf16.mxu0 0
        %492 = vmatpush1.bf16.msra.mxu0 0
        %493 = vmatprep.subr.bf16.mxu0 0
        %494 = vmatpush1.bf16.msra.mxu0 0
        %495 = vmatprep.subr.bf16.mxu0 0
        %496 = vmatpush1.bf16.msra.mxu0 0
        %497 = vmatprep.subr.bf16.mxu0 0
        %498 = vmatpush1.bf16.msra.mxu0 0
        %499 = vmatprep.subr.bf16.mxu0 0
        %500 = vmatpush1.bf16.msra.mxu0 0
        %501 = vmatprep.mubr.bf16.mxu0 0
        %502 = vmatmul.mubr.bf16.gmra.mrb[0].mxu0 %v467
        %v503 = vpop.f32.mrb[0].mxu0
        %v504 = vadd.f32 %v454, %v503
        %v505 = vpop.f32.mrb[0].mxu0
        %v506 = vpop.f32.mrb[0].mxu0
        %v507 = vadd.f32 %v459, %v506
        %v508 = vpop.f32.mrb[0].mxu0
        %509 = vdwg.mxu0
        %v510 = vmax.f32 %v504, 0.0
        %v511 = vmax.f32 %v507, 0.0
        %v512 = vmax.f32 %v510, %v511
        %v513 = vrot.slane %v512, 4
        %v514 = vmax.f32 %v512, %v513
        %v515 = vrot.slane %v514, 2
        %v516 = vmax.f32 %v514, %v515
        %v517 = vrot.slane %v516, 1
        %v518 = vmax.f32 %v516, %v517
        %v519 = vsub.f32 %v510, %v518
        %v520 = vsub.f32 %v511, %v518
        %v521 = vmul.f32 %v519, 1.442695
        %v522 = vpow.pop %v521
        %v523 = vmul.f32 %v520, 1.442695
        %v524 = vpow.pop %v523
        %v525 = vadd.f32 %v522, %v524
        %v526 = vrot.slane %v525, 4
        %v527 = vadd.f32 %v525, %v526
        %v528 = vrot.slane %v527, 2
        %v529 = vadd.f32 %v527, %v528
        %v530 = vrot.slane %v529, 1
        %v531 = vadd.f32 %v529, %v530
        %v532 = vlog2.pop %v531
        %v533 = vmul.f32 %v532, 0.6931472
        %v534 = vsub.f32 %v519, %v533
        %v535 = vsub.f32 %v520, %v533
        %536 = vst [vmem:[%s239] sm:$0xff] %v534
        %537 = vst [vmem:[%s239 + $0x8] sm:$0xff] %v535
        %s538 = sand.u32 %s153, 1
        %s539 = scalar_lea.sflag [#allocation3], %s538
        %s540 = sand.u32 %s153, 1
        %s541 = smul.addr %s540, 16
        %s542 = scalar_lea.vmem [#allocation2], %s541
        // Predicated region
        $region41: #{wav2letter_forward.19} parent=39 // pred_check
          %p543 = pneg %p163
        $region42: #{wav2letter_forward.19} parent=39 // pred_check_branch
          %545 = sbr.rel (%p543) target = $region44
        $region43: #{wav2letter_forward.19} parent=39 // pred_region
          %s547 = ssub.s32 256, 256
          %548 = vsyncadd %s539, %s547
          %s549 = smul.addr %s23, 2
          %s550 = sadd.s32 %s24, %s549
          %s551 = smul.addr %s550, 128
          %s552 = scalar_lea.hbm %s5, %s551
          %s553 = sshll.u32 %s542, 4
          %s554 = int_to_ptr.vmem [resolvable:$true] %s553
          %559 = dma.vmem_to_hbm [thread:$0]  %s554, 256, %s552, %s539, 128, 128, 8
        $region44: #{wav2letter_forward.19} parent=39 // pred_fallthru
          _
      $region40: #{wav2letter_forward.19} parent=5 // pred_fallthru
        _
      %p560 = scmp.le.s32.totalorder 2, %s14
      // Predicated region
      $region45: #{wav2letter_forward.19} parent=5 // pred_check
        %p561 = pneg %p560
      $region46: #{wav2letter_forward.19} parent=5 // pred_check_branch
        %563 = sbr.rel (%p561) target = $region48
      $region47: #{wav2letter_forward.19} parent=5 // pred_region
        %s564 = ssub.s32 %s14, 2
        // Predicated region
        $region49: #{wav2letter_forward.19} parent=47 // pred_check
          %p565 = pneg %p169
        $region50: #{wav2letter_forward.19} parent=47 // pred_check_branch
          %567 = sbr.rel (%p565) target = $region52
        $region51: #{wav2letter_forward.19} parent=47 // pred_region
          %s568 = sand.u32 %s154, 1
          %s569 = scalar_lea.sflag [#allocation3], %s568
          %s570 = sand.u32 %s154, 1
          %s571 = smul.addr %s570, 16
          %s572 = scalar_lea.vmem [#allocation2], %s571
          %573 = dma.done %s569, 256
        $region52: #{wav2letter_forward.19} parent=47 // pred_fallthru
          _
      $region48: #{wav2letter_forward.19} parent=5 // pred_fallthru
        _
    $region6: #{wav2letter_forward.19} parent=1 // loop_footer
      %s18 = sadd.s32 1, %s14
    $region7: #{wav2letter_forward.19} parent=1 // loop_footer_branch
      %13 = sbr.rel target = $region3
    $region8: #{wav2letter_forward.19} parent=1 // loop_exit
      _
    %574 = vsyncpa [#allocation3], 1
    %s575 = scalar_lea.sflag [#allocation3], 1
    %576 = vsyncpa %s575, 1

// kernel: wav2letter_forward.18
$region0: #{wav2letter_forward.18}
  #allocation0 [shape = 'u32[]', space=smem, size = 0x4, offset = 0x4, fixed_abs, tag = 'smem constant byte address 0x4 - core index']
  #allocation1 [shape = 'u32[144,128]{1,0:T(1,128)}', space=vmem, size = 0x12000, scoped, tag = 'internal scratch']
  %s0 = inlined_call_operand.vmem [shape: bf16[2,1024,128], index: 0, kind: input, shape index: {}]
  %s1 = inlined_call_operand.vmem [shape: bf16[64,1024], index: 1, kind: input, shape index: {}]
  %s2 = inlined_call_operand.vmem [shape: f32[64,1], index: 2, kind: input, shape index: {}]
  %s3 = inlined_call_operand.vmem [shape: bf16[2,64,128], index: 3, kind: output, shape index: {}]
  %s4 = sld [smem:[#allocation0]]
  $region45: #{wav2letter_forward.18} parent=0
    _
  %s6 = ssub.s32 1, %s4
  %s7 = scalar_select 0, %s6, %s4
  loop: start=0, step=1, limit=4
  $region2: #{wav2letter_forward.18} parent=0 // loop_pre_header
    _
  $region3: #{wav2letter_forward.18} parent=0 // loop_header
    %s9 = sphi 0, %s13
    %p10 = scmp.ge.s32.totalorder %s9, 4
    %s16 = sphi 0, %s35
    %s17 = sphi 0, %s31
    %s18 = sphi 0, %s27
    %s19 = sphi 0, %s16
    %s20 = sphi 0, %s17
    %s21 = sphi 0, %s18
    %s22 = sphi 0, %s19
    %s23 = sphi 0, %s20
    %s24 = sphi 0, %s21
    %s40 = sphi 0, %s42
    %s43 = sphi 0, %s40
    %s44 = sphi 0, %s43
    %s60 = sphi 0, %s44
    %s66 = sphi 0, %s68
    %s69 = sphi 0, %s66
    %s70 = sphi 0, %s69
    %s86 = sphi 0, %s70
    %s92 = sphi 0, %s94
    %s95 = sphi 0, %s92
    %s96 = sphi 0, %s95
    %s112 = sphi 0, %s96
    %s122 = sphi 0, %s124
    %s125 = sphi 0, %s122
    %s126 = sphi 0, %s125
    %s142 = sphi 0, %s126
  $region4: #{wav2letter_forward.18} parent=0 // loop_header_branch
    %12 = sbr.rel (%p10) target = $region8
  $region5: #{wav2letter_forward.18} parent=0 // loop_body
    %s14 = ssub.s32 %s9, 1
    %s15 = ssub.s32 %s9, 2
    %s25 = sadd.s32 1, %s18
    %p26 = scmp.ge.s32.totalorder %s25, 1
    %s27 = scalar_select %p26, 0, %s25
    %s28 = sadd.s32 1, %s17
    %s29 = scalar_select %p26, %s28, %s17
    %p30 = scmp.ge.s32.totalorder %s29, 1
    %s31 = scalar_select %p30, 0, %s29
    %s32 = sadd.s32 1, %s16
    %s33 = scalar_select %p30, %s32, %s16
    %p34 = scmp.ge.s32.totalorder %s33, 2
    %s35 = scalar_select %p34, 0, %s33
    %s36 = ssub.s32 %s16, %s35
    %s37 = ssub.s32 %s17, %s31
    %s38 = sor.u32 %s36, %s37
    %p39 = scmp.eq.s32.totalorder %s38, 0
    %s41 = sadd.s32 %s40, 1
    %s42 = scalar_select %p39, %s40, %s41
    %p45 = pneg %p39
    %p46 = scmp.eq.s32.totalorder %s9, 1
    %p47 = por %p45, %p46
    %p48 = scmp.ne.s32.totalorder %s40, %s43
    %p49 = scmp.eq.s32.totalorder %s9, 0
    %p50 = por %p48, %p49
    %p51 = scmp.ne.s32.totalorder %s40, %s43
    %p52 = scmp.eq.s32.totalorder %s14, 1
    %p53 = por %p51, %p52
    %p54 = scmp.ne.s32.totalorder %s43, %s44
    %p55 = scmp.eq.s32.totalorder %s14, 0
    %p56 = por %p54, %p55
    %p57 = scmp.ne.s32.totalorder %s43, %s44
    %p58 = scmp.eq.s32.totalorder %s15, 1
    %p59 = por %p57, %p58
    %p61 = scmp.ne.s32.totalorder %s44, %s60
    %p62 = scmp.eq.s32.totalorder %s15, 0
    %p63 = por %p61, %p62
    %s64 = ssub.s32 %s18, %s27
    %p65 = scmp.eq.s32.totalorder %s64, 0
    %s67 = sadd.s32 %s66, 1
    %s68 = scalar_select %p65, %s66, %s67
    %p71 = pneg %p65
    %p72 = scmp.eq.s32.totalorder %s9, 1
    %p73 = por %p71, %p72
    %p74 = scmp.ne.s32.totalorder %s66, %s69
    %p75 = scmp.eq.s32.totalorder %s9, 0
    %p76 = por %p74, %p75
    %p77 = scmp.ne.s32.totalorder %s66, %s69
    %p78 = scmp.eq.s32.totalorder %s14, 1
    %p79 = por %p77, %p78
    %p80 = scmp.ne.s32.totalorder %s69, %s70
    %p81 = scmp.eq.s32.totalorder %s14, 0
    %p82 = por %p80, %p81
    %p83 = scmp.ne.s32.totalorder %s69, %s70
    %p84 = scmp.eq.s32.totalorder %s15, 1
    %p85 = por %p83, %p84
    %p87 = scmp.ne.s32.totalorder %s70, %s86
    %p88 = scmp.eq.s32.totalorder %s15, 0
    %p89 = por %p87, %p88
    %s90 = ssub.s32 %s18, %s27
    %p91 = scmp.eq.s32.totalorder %s90, 0
    %s93 = sadd.s32 %s92, 1
    %s94 = scalar_select %p91, %s92, %s93
    %p97 = pneg %p91
    %p98 = scmp.eq.s32.totalorder %s9, 1
    %p99 = por %p97, %p98
    %p100 = scmp.ne.s32.totalorder %s92, %s95
    %p101 = scmp.eq.s32.totalorder %s9, 0
    %p102 = por %p100, %p101
    %p103 = scmp.ne.s32.totalorder %s92, %s95
    %p104 = scmp.eq.s32.totalorder %s14, 1
    %p105 = por %p103, %p104
    %p106 = scmp.ne.s32.totalorder %s95, %s96
    %p107 = scmp.eq.s32.totalorder %s14, 0
    %p108 = por %p106, %p107
    %p109 = scmp.ne.s32.totalorder %s95, %s96
    %p110 = scmp.eq.s32.totalorder %s15, 1
    %p111 = por %p109, %p110
    %p113 = scmp.ne.s32.totalorder %s96, %s112
    %p114 = scmp.eq.s32.totalorder %s15, 0
    %p115 = por %p113, %p114
    %s116 = ssub.s32 %s16, %s35
    %s117 = ssub.s32 %s18, %s27
    %s118 = sor.u32 %s116, %s117
    %s119 = ssub.s32 %s17, %s31
    %s120 = sor.u32 %s118, %s119
    %p121 = scmp.eq.s32.totalorder %s120, 0
    %s123 = sadd.s32 %s122, 1
    %s124 = scalar_select %p121, %s122, %s123
    %p127 = pneg %p121
    %p128 = scmp.eq.s32.totalorder %s9, 1
    %p129 = por %p127, %p128
    %p130 = scmp.ne.s32.totalorder %s122, %s125
    %p131 = scmp.eq.s32.totalorder %s9, 0
    %p132 = por %p130, %p131
    %p133 = scmp.ne.s32.totalorder %s122, %s125
    %p134 = scmp.eq.s32.totalorder %s14, 1
    %p135 = por %p133, %p134
    %p136 = scmp.ne.s32.totalorder %s125, %s126
    %p137 = scmp.eq.s32.totalorder %s14, 0
    %p138 = por %p136, %p137
    %p139 = scmp.ne.s32.totalorder %s125, %s126
    %p140 = scmp.eq.s32.totalorder %s15, 1
    %p141 = por %p139, %p140
    %p143 = scmp.ne.s32.totalorder %s126, %s142
    %p144 = scmp.eq.s32.totalorder %s15, 0
    %p145 = por %p143, %p144
    %p146 = scmp.le.s32.totalorder 1, %s9
    %p147 = scmp.lt.s32.totalorder %s9, 3
    %p148 = pnand %p146, %p147
    %p149 = pneg %p148
    // Predicated region
    $region9: #{wav2letter_forward.18} parent=5 // pred_check
      _
    $region10: #{wav2letter_forward.18} parent=5 // pred_check_branch
      %151 = sbr.rel (%p148) target = $region12
    $region11: #{wav2letter_forward.18} parent=5 // pred_region
      %s152 = ssub.s32 %s9, 1
      // Predicated region
      $region13: #{wav2letter_forward.18} parent=11 // pred_check
        %p153 = pneg %p82
      $region14: #{wav2letter_forward.18} parent=11 // pred_check_branch
        %155 = sbr.rel (%p153) target = $region16
      $region15: #{wav2letter_forward.18} parent=11 // pred_region
        %s156 = smul.u32 8, %s21
        %p157 = scmp.lt.s32.totalorder %s156, 7
        %s158 = scalar_select %p157, %s156, 7
        %s159 = smul.addr %s158, 8
        %s160 = smul.addr %s159, 4
        %s161 = scalar_lea.vmem %s1, %s160
        %s162 = smul.u32 8, %s21
      $region16: #{wav2letter_forward.18} parent=11 // pred_fallthru
        _
      // Predicated region
      $region17: #{wav2letter_forward.18} parent=11 // pred_check
        %p163 = pneg %p108
      $region18: #{wav2letter_forward.18} parent=11 // pred_check_branch
        %165 = sbr.rel (%p163) target = $region20
      $region19: #{wav2letter_forward.18} parent=11 // pred_region
        %s166 = smul.u32 8, %s21
        %p167 = scmp.lt.s32.totalorder %s166, 7
        %s168 = scalar_select %p167, %s166, 7
        %s169 = smul.addr %s168, 8
        %s170 = scalar_lea.vmem %s2, %s169
        %s171 = smul.u32 8, %s21
      $region20: #{wav2letter_forward.18} parent=11 // pred_fallthru
        _
    $region12: #{wav2letter_forward.18} parent=5 // pred_fallthru
      _
    %p172 = scmp.lt.s32.totalorder %s9, 2
    // Predicated region
    $region21: #{wav2letter_forward.18} parent=5 // pred_check
      %p173 = pneg %p172
    $region22: #{wav2letter_forward.18} parent=5 // pred_check_branch
      %175 = sbr.rel (%p173) target = $region24
    $region23: #{wav2letter_forward.18} parent=5 // pred_region
      // Predicated region
      $region25: #{wav2letter_forward.18} parent=23 // pred_check
        %p176 = pneg %p50
      $region26: #{wav2letter_forward.18} parent=23 // pred_check_branch
        %178 = sbr.rel (%p176) target = $region28
      $region27: #{wav2letter_forward.18} parent=23 // pred_region
        %p179 = scmp.lt.s32.totalorder %s16, 1
        %s180 = scalar_select %p179, %s16, 1
        %p181 = scmp.lt.s32.totalorder %s17, 0
        %s182 = scalar_select %p181, %s17, 0
        %s183 = smul.addr %s180, 128
        %s184 = sadd.s32 %s182, %s183
        %s185 = smul.addr %s184, 4
        %s186 = scalar_lea.vmem %s0, %s185
      $region28: #{wav2letter_forward.18} parent=23 // pred_fallthru
        _
    $region24: #{wav2letter_forward.18} parent=5 // pred_fallthru
      _
    %p187 = scmp.le.s32.totalorder 1, %s9
    %p188 = scmp.lt.s32.totalorder %s9, 3
    %p189 = pnand %p187, %p188
    %p190 = pneg %p189
    // Predicated region
    $region29: #{wav2letter_forward.18} parent=5 // pred_check
      _
    $region30: #{wav2letter_forward.18} parent=5 // pred_check_branch
      %192 = sbr.rel (%p189) target = $region32
    $region31: #{wav2letter_forward.18} parent=5 // pred_region
      %s193 = ssub.s32 %s9, 1
      %p194 = scmp.lt.s32.totalorder %s19, 1
      %s195 = scalar_select %p194, %s19, 1
      %p196 = scmp.lt.s32.totalorder %s20, 0
      %s197 = scalar_select %p196, %s20, 0
      %s198 = smul.addr %s195, 128
      %s199 = sadd.s32 %s197, %s198
      %s200 = smul.addr %s199, 4
      %s201 = scalar_lea.vmem %s0, %s200
      %p202 = pneg %p56
      %p203 = pneg %p53
      %s204 = smul.u32 8, %s21
      %p205 = scmp.lt.s32.totalorder %s204, 7
      %s206 = scalar_select %p205, %s204, 7
      %s207 = smul.addr %s206, 8
      %s208 = smul.addr %s207, 4
      %s209 = scalar_lea.vmem %s1, %s208
      %p210 = pneg %p82
      %p211 = pneg %p79
      %s212 = smul.u32 8, %s21
      %p213 = scmp.lt.s32.totalorder %s212, 7
      %s214 = scalar_select %p213, %s212, 7
      %s215 = smul.addr %s214, 8
      %s216 = scalar_lea.vmem %s2, %s215
      %p217 = pneg %p108
      %p218 = pneg %p105
      %p219 = pneg %p138
      %p220 = pneg %p135
      %s221 = smul.u32 8, %s21
      %p222 = scmp.lt.s32.totalorder %s19, 1
      %s223 = scalar_select %p222, %s19, 1
      %p224 = scmp.lt.s32.totalorder %s221, 7
      %s225 = scalar_select %p224, %s221, 7
      %p226 = scmp.lt.s32.totalorder %s20, 0
      %s227 = scalar_select %p226, %s20, 0
      %s228 = sadd.s32 %s227, %s225
      %s229 = smul.addr %s223, 8
      %s230 = sadd.s32 %s228, %s229
      %s231 = smul.addr %s230, 4
      %s232 = scalar_lea.vmem %s3, %s231
      %p233 = scmp.lt.s32.totalorder %s19, 1
      %s234 = scalar_select %p233, %s19, 1
      %p235 = scmp.lt.s32.totalorder %s20, 0
      %s236 = scalar_select %p235, %s20, 0
      %s237 = smul.addr %s234, 128
      %s238 = sadd.s32 %s236, %s237
      %s239 = smul.addr %s238, 4
      %s240 = scalar_lea.vmem %s0, %s239
      %s241 = smul.u32 8, %s21
      %p242 = scmp.lt.s32.totalorder %s241, 7
      %s243 = scalar_select %p242, %s241, 7
      %s244 = smul.addr %s243, 8
      %s245 = smul.addr %s244, 4
      %s246 = scalar_lea.vmem %s1, %s245
      %s247 = smul.u32 8, %s21
      %s248 = smul.u32 8, %s21
      %p249 = scmp.lt.s32.totalorder %s248, 7
      %s250 = scalar_select %p249, %s248, 7
      %s251 = smul.addr %s250, 8
      %s252 = scalar_lea.vmem %s2, %s251
      %s253 = smul.u32 8, %s21
      %s254 = smul.u32 8, %s21
      %p255 = scmp.lt.s32.totalorder %s19, 1
      %s256 = scalar_select %p255, %s19, 1
      %p257 = scmp.lt.s32.totalorder %s254, 7
      %s258 = scalar_select %p257, %s254, 7
      %p259 = scmp.lt.s32.totalorder %s20, 0
      %s260 = scalar_select %p259, %s20, 0
      %s261 = sadd.s32 %s260, %s258
      %s262 = smul.addr %s256, 8
      %s263 = sadd.s32 %s261, %s262
      %s264 = smul.addr %s263, 4
      %s265 = scalar_lea.vmem %s3, %s264
      %s266 = smul.u32 8, %s21
      %v268 = vld [vmem:[%s246] sm:$0xff]
      %v269 = vld [vmem:[%s246 + $0x8] sm:$0xff]
      %v270 = vld [vmem:[%s246 + $0x10] sm:$0xff]
      %v271 = vld [vmem:[%s246 + $0x18] sm:$0xff]
      %v272 = vld [vmem:[%s246 + $0x20] sm:$0xff]
      %v273 = vld [vmem:[%s246 + $0x28] sm:$0xff]
      %v274 = vld [vmem:[%s246 + $0x30] sm:$0xff]
      %v275 = vld [vmem:[%s246 + $0x38] sm:$0xff]
      %v276 = vld [vmem:[%s246 + $0x40] sm:$0xff]
      %v277 = vld [vmem:[%s246 + $0x48] sm:$0xff]
      %v278 = vld [vmem:[%s246 + $0x50] sm:$0xff]
      %v279 = vld [vmem:[%s246 + $0x58] sm:$0xff]
      %v280 = vld [vmem:[%s246 + $0x60] sm:$0xff]
      %v281 = vld [vmem:[%s246 + $0x68] sm:$0xff]
      %v282 = vld [vmem:[%s246 + $0x70] sm:$0xff]
      %v283 = vld [vmem:[%s246 + $0x78] sm:$0xff]
      %v284 = vld [vmem:[%s246 + $0x80] sm:$0xff]
      %v285 = vld [vmem:[%s246 + $0x88] sm:$0xff]
      %v286 = vld [vmem:[%s246 + $0x90] sm:$0xff]
      %v287 = vld [vmem:[%s246 + $0x98] sm:$0xff]
      %v288 = vld [vmem:[%s246 + $0xa0] sm:$0xff]
      %v289 = vld [vmem:[%s246 + $0xa8] sm:$0xff]
      %v290 = vld [vmem:[%s246 + $0xb0] sm:$0xff]
      %v291 = vld [vmem:[%s246 + $0xb8] sm:$0xff]
      %v292 = vld [vmem:[%s246 + $0xc0] sm:$0xff]
      %v293 = vld [vmem:[%s246 + $0xc8] sm:$0xff]
      %v294 = vld [vmem:[%s246 + $0xd0] sm:$0xff]
      %v295 = vld [vmem:[%s246 + $0xd8] sm:$0xff]
      %v296 = vld [vmem:[%s246 + $0xe0] sm:$0xff]
      %v297 = vld [vmem:[%s246 + $0xe8] sm:$0xff]
      %v298 = vld [vmem:[%s246 + $0xf0] sm:$0xff]
      %v299 = vld [vmem:[%s246 + $0xf8] sm:$0xff]
      %v300 = vld [vmem:[%s240] sm:$0xf]
      %v301 = vld [vmem:[%s240 + $0x4] sm:$0xf]
      %v302 = vld [vmem:[%s240 + $0x8] sm:$0xf]
      %v303 = vld [vmem:[%s240 + $0xc] sm:$0xf]
      %v304 = vld [vmem:[%s240 + $0x10] sm:$0xf]
      %v305 = vld [vmem:[%s240 + $0x14] sm:$0xf]
      %v306 = vld [vmem:[%s240 + $0x18] sm:$0xf]
      %v307 = vld [vmem:[%s240 + $0x1c] sm:$0xf]
      %v308 = vld [vmem:[%s240 + $0x20] sm:$0xf]
      %v309 = vld [vmem:[%s240 + $0x24] sm:$0xf]
      %v310 = vld [vmem:[%s240 + $0x28] sm:$0xf]
      %v311 = vld [vmem:[%s240 + $0x2c] sm:$0xf]
      %v312 = vld [vmem:[%s240 + $0x30] sm:$0xf]
      %v313 = vld [vmem:[%s240 + $0x34] sm:$0xf]
      %v314 = vld [vmem:[%s240 + $0x38] sm:$0xf]
      %v315 = vld [vmem:[%s240 + $0x3c] sm:$0xf]
      %v316 = vld [vmem:[%s240 + $0x40] sm:$0xf]
      %v317 = vld [vmem:[%s240 + $0x44] sm:$0xf]
      %v318 = vld [vmem:[%s240 + $0x48] sm:$0xf]
      %v319 = vld [vmem:[%s240 + $0x4c] sm:$0xf]
      %v320 = vld [vmem:[%s240 + $0x50] sm:$0xf]
      %v321 = vld [vmem:[%s240 + $0x54] sm:$0xf]
      %v322 = vld [vmem:[%s240 + $0x58] sm:$0xf]
      %v323 = vld [vmem:[%s240 + $0x5c] sm:$0xf]
      %v324 = vld [vmem:[%s240 + $0x60] sm:$0xf]
      %v325 = vld [vmem:[%s240 + $0x64] sm:$0xf]
      %v326 = vld [vmem:[%s240 + $0x68] sm:$0xf]
      %v327 = vld [vmem:[%s240 + $0x6c] sm:$0xf]
      %v328 = vld [vmem:[%s240 + $0x70] sm:$0xf]
      %v329 = vld [vmem:[%s240 + $0x74] sm:$0xf]
      %v330 = vld [vmem:[%s240 + $0x78] sm:$0xf]
      %v331 = vld [vmem:[%s240 + $0x7c] sm:$0xf]
      %v332 = vld [vmem:[%s240 + $0x80] sm:$0xf]
      %v333 = vld [vmem:[%s240 + $0x84] sm:$0xf]
      %v334 = vld [vmem:[%s240 + $0x88] sm:$0xf]
      %v335 = vld [vmem:[%s240 + $0x8c] sm:$0xf]
      %v336 = vld [vmem:[%s240 + $0x90] sm:$0xf]
      %v337 = vld [vmem:[%s240 + $0x94] sm:$0xf]
      %v338 = vld [vmem:[%s240 + $0x98] sm:$0xf]
      %v339 = vld [vmem:[%s240 + $0x9c] sm:$0xf]
      %v340 = vld [vmem:[%s240 + $0xa0] sm:$0xf]
      %v341 = vld [vmem:[%s240 + $0xa4] sm:$0xf]
      %v342 = vld [vmem:[%s240 + $0xa8] sm:$0xf]
      %v343 = vld [vmem:[%s240 + $0xac] sm:$0xf]
      %v344 = vld [vmem:[%s240 + $0xb0] sm:$0xf]
      %v345 = vld [vmem:[%s240 + $0xb4] sm:$0xf]
      %v346 = vld [vmem:[%s240 + $0xb8] sm:$0xf]
      %v347 = vld [vmem:[%s240 + $0xbc] sm:$0xf]
      %v348 = vld [vmem:[%s240 + $0xc0] sm:$0xf]
      %v349 = vld [vmem:[%s240 + $0xc4] sm:$0xf]
      %v350 = vld [vmem:[%s240 + $0xc8] sm:$0xf]
      %v351 = vld [vmem:[%s240 + $0xcc] sm:$0xf]
      %v352 = vld [vmem:[%s240 + $0xd0] sm:$0xf]
      %v353 = vld [vmem:[%s240 + $0xd4] sm:$0xf]
      %v354 = vld [vmem:[%s240 + $0xd8] sm:$0xf]
      %v355 = vld [vmem:[%s240 + $0xdc] sm:$0xf]
      %v356 = vld [vmem:[%s240 + $0xe0] sm:$0xf]
      %v357 = vld [vmem:[%s240 + $0xe4] sm:$0xf]
      %v358 = vld [vmem:[%s240 + $0xe8] sm:$0xf]
      %v359 = vld [vmem:[%s240 + $0xec] sm:$0xf]
      %v360 = vld [vmem:[%s240 + $0xf0] sm:$0xf]
      %v361 = vld [vmem:[%s240 + $0xf4] sm:$0xf]
      %v362 = vld [vmem:[%s240 + $0xf8] sm:$0xf]
      %v363 = vld [vmem:[%s240 + $0xfc] sm:$0xf]
      %v364 = vld [vmem:[%s240 + $0x100] sm:$0xf]
      %v365 = vld [vmem:[%s240 + $0x104] sm:$0xf]
      %v366 = vld [vmem:[%s240 + $0x108] sm:$0xf]
      %v367 = vld [vmem:[%s240 + $0x10c] sm:$0xf]
      %v368 = vld [vmem:[%s240 + $0x110] sm:$0xf]
      %v369 = vld [vmem:[%s240 + $0x114] sm:$0xf]
      %v370 = vld [vmem:[%s240 + $0x118] sm:$0xf]
      %v371 = vld [vmem:[%s240 + $0x11c] sm:$0xf]
      %v372 = vld [vmem:[%s240 + $0x120] sm:$0xf]
      %v373 = vld [vmem:[%s240 + $0x124] sm:$0xf]
      %v374 = vld [vmem:[%s240 + $0x128] sm:$0xf]
      %v375 = vld [vmem:[%s240 + $0x12c] sm:$0xf]
      %v376 = vld [vmem:[%s240 + $0x130] sm:$0xf]
      %v377 = vld [vmem:[%s240 + $0x134] sm:$0xf]
      %v378 = vld [vmem:[%s240 + $0x138] sm:$0xf]
      %v379 = vld [vmem:[%s240 + $0x13c] sm:$0xf]
      %v380 = vld [vmem:[%s240 + $0x140] sm:$0xf]
      %v381 = vld [vmem:[%s240 + $0x144] sm:$0xf]
      %v382 = vld [vmem:[%s240 + $0x148] sm:$0xf]
      %v383 = vld [vmem:[%s240 + $0x14c] sm:$0xf]
      %v384 = vld [vmem:[%s240 + $0x150] sm:$0xf]
      %v385 = vld [vmem:[%s240 + $0x154] sm:$0xf]
      %v386 = vld [vmem:[%s240 + $0x158] sm:$0xf]
      %v387 = vld [vmem:[%s240 + $0x15c] sm:$0xf]
      %v388 = vld [vmem:[%s240 + $0x160] sm:$0xf]
      %v389 = vld [vmem:[%s240 + $0x164] sm:$0xf]
      %v390 = vld [vmem:[%s240 + $0x168] sm:$0xf]
      %v391 = vld [vmem:[%s240 + $0x16c] sm:$0xf]
      %v392 = vld [vmem:[%s240 + $0x170] sm:$0xf]
      %v393 = vld [vmem:[%s240 + $0x174] sm:$0xf]
      %v394 = vld [vmem:[%s240 + $0x178] sm:$0xf]
      %v395 = vld [vmem:[%s240 + $0x17c] sm:$0xf]
      %v396 = vld [vmem:[%s240 + $0x180] sm:$0xf]
      %v397 = vld [vmem:[%s240 + $0x184] sm:$0xf]
      %v398 = vld [vmem:[%s240 + $0x188] sm:$0xf]
      %v399 = vld [vmem:[%s240 + $0x18c] sm:$0xf]
      %v400 = vld [vmem:[%s240 + $0x190] sm:$0xf]
      %v401 = vld [vmem:[%s240 + $0x194] sm:$0xf]
      %v402 = vld [vmem:[%s240 + $0x198] sm:$0xf]
      %v403 = vld [vmem:[%s240 + $0x19c] sm:$0xf]
      %v404 = vld [vmem:[%s240 + $0x1a0] sm:$0xf]
      %v405 = vld [vmem:[%s240 + $0x1a4] sm:$0xf]
      %v406 = vld [vmem:[%s240 + $0x1a8] sm:$0xf]
      %v407 = vld [vmem:[%s240 + $0x1ac] sm:$0xf]
      %v408 = vld [vmem:[%s240 + $0x1b0] sm:$0xf]
      %v409 = vld [vmem:[%s240 + $0x1b4] sm:$0xf]
      %v410 = vld [vmem:[%s240 + $0x1b8] sm:$0xf]
      %v411 = vld [vmem:[%s240 + $0x1bc] sm:$0xf]
      %v412 = vld [vmem:[%s240 + $0x1c0] sm:$0xf]
      %v413 = vld [vmem:[%s240 + $0x1c4] sm:$0xf]
      %v414 = vld [vmem:[%s240 + $0x1c8] sm:$0xf]
      %v415 = vld [vmem:[%s240 + $0x1cc] sm:$0xf]
      %v416 = vld [vmem:[%s240 + $0x1d0] sm:$0xf]
      %v417 = vld [vmem:[%s240 + $0x1d4] sm:$0xf]
      %v418 = vld [vmem:[%s240 + $0x1d8] sm:$0xf]
      %v419 = vld [vmem:[%s240 + $0x1dc] sm:$0xf]
      %v420 = vld [vmem:[%s240 + $0x1e0] sm:$0xf]
      %v421 = vld [vmem:[%s240 + $0x1e4] sm:$0xf]
      %v422 = vld [vmem:[%s240 + $0x1e8] sm:$0xf]
      %v423 = vld [vmem:[%s240 + $0x1ec] sm:$0xf]
      %v424 = vld [vmem:[%s240 + $0x1f0] sm:$0xf]
      %v425 = vld [vmem:[%s240 + $0x1f4] sm:$0xf]
      %v426 = vld [vmem:[%s240 + $0x1f8] sm:$0xf]
      %v427 = vld [vmem:[%s240 + $0x1fc] sm:$0xf]
      %v428 = vld [vmem:[%s252] sm:$0xff]
      %v429 = vld [vmem:[%s252 + $0x8] sm:$0xff]
      %v430 = vld [vmem:[%s252 + $0x10] sm:$0xff]
      %v431 = vld [vmem:[%s252 + $0x18] sm:$0xff]
      %v432 = vld [vmem:[%s252 + $0x20] sm:$0xff]
      %v433 = vld [vmem:[%s252 + $0x28] sm:$0xff]
      %v434 = vld [vmem:[%s252 + $0x30] sm:$0xff]
      %v435 = vld [vmem:[%s252 + $0x38] sm:$0xff]
      %437 = vset.pattern.permute.xlu0 0
      %438 = vperm.xlu0 %437, %v428
      %v439 = vpop.permute.xlu0 %438
      %442 = vset.pattern.permute.xlu0 0
      %443 = vperm.xlu0 %442, %v429
      %v444 = vpop.permute.xlu0 %443
      %447 = vset.pattern.permute.xlu0 0
      %448 = vperm.xlu0 %447, %v430
      %v449 = vpop.permute.xlu0 %448
      %452 = vset.pattern.permute.xlu0 0
      %453 = vperm.xlu0 %452, %v431
      %v454 = vpop.permute.xlu0 %453
      %457 = vset.pattern.permute.xlu0 0
      %458 = vperm.xlu0 %457, %v432
      %v459 = vpop.permute.xlu0 %458
      %462 = vset.pattern.permute.xlu0 0
      %463 = vperm.xlu0 %462, %v433
      %v464 = vpop.permute.xlu0 %463
      %467 = vset.pattern.permute.xlu0 0
      %468 = vperm.xlu0 %467, %v434
      %v469 = vpop.permute.xlu0 %468
      %472 = vset.pattern.permute.xlu0 0
      %473 = vperm.xlu0 %472, %v435
      %v474 = vpop.permute.xlu0 %473
      %v508 = vunpack.c.l.b16 %v268
      %v509 = vunpack.c.h.b16 %v268
      %v510 = vunpack.c.l.b16 %v269
      %v511 = vunpack.c.h.b16 %v269
      %v512 = vunpack.c.l.b16 %v270
      %v513 = vunpack.c.h.b16 %v270
      %v514 = vunpack.c.l.b16 %v271
      %v515 = vunpack.c.h.b16 %v271
      %v516 = vunpack.c.l.b16 %v272
      %v517 = vunpack.c.h.b16 %v272
      %v518 = vunpack.c.l.b16 %v273
      %v519 = vunpack.c.h.b16 %v273
      %v520 = vunpack.c.l.b16 %v274
      %v521 = vunpack.c.h.b16 %v274
      %v522 = vunpack.c.l.b16 %v275
      %v523 = vunpack.c.h.b16 %v275
      %v524 = vunpack.c.l.b16 %v276
      %v525 = vunpack.c.h.b16 %v276
      %v526 = vunpack.c.l.b16 %v277
      %v527 = vunpack.c.h.b16 %v277
      %v528 = vunpack.c.l.b16 %v278
      %v529 = vunpack.c.h.b16 %v278
      %v530 = vunpack.c.l.b16 %v279
      %v531 = vunpack.c.h.b16 %v279
      %v532 = vunpack.c.l.b16 %v280
      %v533 = vunpack.c.h.b16 %v280
      %v534 = vunpack.c.l.b16 %v281
      %v535 = vunpack.c.h.b16 %v281
      %v536 = vunpack.c.l.b16 %v282
      %v537 = vunpack.c.h.b16 %v282
      %v538 = vunpack.c.l.b16 %v283
      %v539 = vunpack.c.h.b16 %v283
      %v540 = vunpack.c.l.b16 %v284
      %v541 = vunpack.c.h.b16 %v284
      %v542 = vunpack.c.l.b16 %v285
      %v543 = vunpack.c.h.b16 %v285
      %v544 = vunpack.c.l.b16 %v286
      %v545 = vunpack.c.h.b16 %v286
      %v546 = vunpack.c.l.b16 %v287
      %v547 = vunpack.c.h.b16 %v287
      %v548 = vunpack.c.l.b16 %v288
      %v549 = vunpack.c.h.b16 %v288
      %v550 = vunpack.c.l.b16 %v289
      %v551 = vunpack.c.h.b16 %v289
      %v552 = vunpack.c.l.b16 %v290
      %v553 = vunpack.c.h.b16 %v290
      %v554 = vunpack.c.l.b16 %v291
      %v555 = vunpack.c.h.b16 %v291
      %v556 = vunpack.c.l.b16 %v292
      %v557 = vunpack.c.h.b16 %v292
      %v558 = vunpack.c.l.b16 %v293
      %v559 = vunpack.c.h.b16 %v293
      %v560 = vunpack.c.l.b16 %v294
      %v561 = vunpack.c.h.b16 %v294
      %v562 = vunpack.c.l.b16 %v295
      %v563 = vunpack.c.h.b16 %v295
      %v564 = vunpack.c.l.b16 %v296
      %v565 = vunpack.c.h.b16 %v296
      %v566 = vunpack.c.l.b16 %v297
      %v567 = vunpack.c.h.b16 %v297
      %v568 = vunpack.c.l.b16 %v298
      %v569 = vunpack.c.h.b16 %v298
      %v570 = vunpack.c.l.b16 %v299
      %v571 = vunpack.c.h.b16 %v299
      %v572 = vpack.c.b16 %v516, %v508
      %v573 = vpack.c.b16 %v517, %v509
      %v574 = vpack.c.b16 %v518, %v510
      %v575 = vpack.c.b16 %v519, %v511
      %v576 = vpack.c.b16 %v520, %v512
      %v577 = vpack.c.b16 %v521, %v513
      %v578 = vpack.c.b16 %v522, %v514
      %v579 = vpack.c.b16 %v523, %v515
      %v580 = vpack.c.b16 %v532, %v524
      %v581 = vpack.c.b16 %v533, %v525
      %v582 = vpack.c.b16 %v534, %v526
      %v583 = vpack.c.b16 %v535, %v527
      %v584 = vpack.c.b16 %v536, %v528
      %v585 = vpack.c.b16 %v537, %v529
      %v586 = vpack.c.b16 %v538, %v530
      %v587 = vpack.c.b16 %v539, %v531
      %v588 = vpack.c.b16 %v548, %v540
      %v589 = vpack.c.b16 %v549, %v541
      %v590 = vpack.c.b16 %v550, %v542
      %v591 = vpack.c.b16 %v551, %v543
      %v592 = vpack.c.b16 %v552, %v544
      %v593 = vpack.c.b16 %v553, %v545
      %v594 = vpack.c.b16 %v554, %v546
      %v595 = vpack.c.b16 %v555, %v547
      %v596 = vpack.c.b16 %v564, %v556
      %v597 = vpack.c.b16 %v565, %v557
      %v598 = vpack.c.b16 %v566, %v558
      %v599 = vpack.c.b16 %v567, %v559
      %v600 = vpack.c.b16 %v568, %v560
      %v601 = vpack.c.b16 %v569, %v561
      %v602 = vpack.c.b16 %v570, %v562
      %v603 = vpack.c.b16 %v571, %v563
      %v764 = vunpack.c.l.b16 %v300
      %v765 = vunpack.c.l.b16 %v301
      %v766 = vunpack.c.l.b16 %v302
      %v767 = vunpack.c.l.b16 %v303
      %v768 = vunpack.c.l.b16 %v304
      %v769 = vunpack.c.l.b16 %v305
      %v770 = vunpack.c.l.b16 %v306
      %v771 = vunpack.c.l.b16 %v307
      %v772 = vunpack.c.l.b16 %v308
      %v773 = vunpack.c.l.b16 %v309
      %v774 = vunpack.c.l.b16 %v310
      %v775 = vunpack.c.l.b16 %v311
      %v776 = vunpack.c.l.b16 %v312
      %v777 = vunpack.c.l.b16 %v313
      %v778 = vunpack.c.l.b16 %v314
      %v779 = vunpack.c.l.b16 %v315
      %v780 = vunpack.c.l.b16 %v316
      %v781 = vunpack.c.l.b16 %v317
      %v782 = vunpack.c.l.b16 %v318
      %v783 = vunpack.c.l.b16 %v319
      %v784 = vunpack.c.l.b16 %v320
      %v785 = vunpack.c.l.b16 %v321
      %v786 = vunpack.c.l.b16 %v322
      %v787 = vunpack.c.l.b16 %v323
      %v788 = vunpack.c.l.b16 %v324
      %v789 = vunpack.c.l.b16 %v325
      %v790 = vunpack.c.l.b16 %v326
      %v791 = vunpack.c.l.b16 %v327
      %v792 = vunpack.c.l.b16 %v328
      %v793 = vunpack.c.l.b16 %v329
      %v794 = vunpack.c.l.b16 %v330
      %v795 = vunpack.c.l.b16 %v331
      %v796 = vunpack.c.l.b16 %v332
      %v797 = vunpack.c.l.b16 %v333
      %v798 = vunpack.c.l.b16 %v334
      %v799 = vunpack.c.l.b16 %v335
      %v800 = vunpack.c.l.b16 %v336
      %v801 = vunpack.c.l.b16 %v337
      %v802 = vunpack.c.l.b16 %v338
      %v803 = vunpack.c.l.b16 %v339
      %v804 = vunpack.c.l.b16 %v340
      %v805 = vunpack.c.l.b16 %v341
      %v806 = vunpack.c.l.b16 %v342
      %v807 = vunpack.c.l.b16 %v343
      %v808 = vunpack.c.l.b16 %v344
      %v809 = vunpack.c.l.b16 %v345
      %v810 = vunpack.c.l.b16 %v346
      %v811 = vunpack.c.l.b16 %v347
      %v812 = vunpack.c.l.b16 %v348
      %v813 = vunpack.c.l.b16 %v349
      %v814 = vunpack.c.l.b16 %v350
      %v815 = vunpack.c.l.b16 %v351
      %v816 = vunpack.c.l.b16 %v352
      %v817 = vunpack.c.l.b16 %v353
      %v818 = vunpack.c.l.b16 %v354
      %v819 = vunpack.c.l.b16 %v355
      %v820 = vunpack.c.l.b16 %v356
      %v821 = vunpack.c.l.b16 %v357
      %v822 = vunpack.c.l.b16 %v358
      %v823 = vunpack.c.l.b16 %v359
      %v824 = vunpack.c.l.b16 %v360
      %v825 = vunpack.c.l.b16 %v361
      %v826 = vunpack.c.l.b16 %v362
      %v827 = vunpack.c.l.b16 %v363
      %v828 = vunpack.c.l.b16 %v364
      %v829 = vunpack.c.l.b16 %v365
      %v830 = vunpack.c.l.b16 %v366
      %v831 = vunpack.c.l.b16 %v367
      %v832 = vunpack.c.l.b16 %v368
      %v833 = vunpack.c.l.b16 %v369
      %v834 = vunpack.c.l.b16 %v370
      %v835 = vunpack.c.l.b16 %v371
      %v836 = vunpack.c.l.b16 %v372
      %v837 = vunpack.c.l.b16 %v373
      %v838 = vunpack.c.l.b16 %v374
      %v839 = vunpack.c.l.b16 %v375
      %v840 = vunpack.c.l.b16 %v376
      %v841 = vunpack.c.l.b16 %v377
      %v842 = vunpack.c.l.b16 %v378
      %v843 = vunpack.c.l.b16 %v379
      %v844 = vunpack.c.l.b16 %v380
      %v845 = vunpack.c.l.b16 %v381
      %v846 = vunpack.c.l.b16 %v382
      %v847 = vunpack.c.l.b16 %v383
      %v848 = vunpack.c.l.b16 %v384
      %v849 = vunpack.c.l.b16 %v385
      %v850 = vunpack.c.l.b16 %v386
      %v851 = vunpack.c.l.b16 %v387
      %v852 = vunpack.c.l.b16 %v388
      %v853 = vunpack.c.l.b16 %v389
      %v854 = vunpack.c.l.b16 %v390
      %v855 = vunpack.c.l.b16 %v391
      %v856 = vunpack.c.l.b16 %v392
      %v857 = vunpack.c.l.b16 %v393
      %v858 = vunpack.c.l.b16 %v394
      %v859 = vunpack.c.l.b16 %v395
      %v860 = vunpack.c.l.b16 %v396
      %v861 = vunpack.c.l.b16 %v397
      %v862 = vunpack.c.l.b16 %v398
      %v863 = vunpack.c.l.b16 %v399
      %v864 = vunpack.c.l.b16 %v400
      %v865 = vunpack.c.l.b16 %v401
      %v866 = vunpack.c.l.b16 %v402
      %v867 = vunpack.c.l.b16 %v403
      %v868 = vunpack.c.l.b16 %v404
      %v869 = vunpack.c.l.b16 %v405
      %v870 = vunpack.c.l.b16 %v406
      %v871 = vunpack.c.l.b16 %v407
      %v872 = vunpack.c.l.b16 %v408
      %v873 = vunpack.c.l.b16 %v409
      %v874 = vunpack.c.l.b16 %v410
      %v875 = vunpack.c.l.b16 %v411
      %v876 = vunpack.c.l.b16 %v412
      %v877 = vunpack.c.l.b16 %v413
      %v878 = vunpack.c.l.b16 %v414
      %v879 = vunpack.c.l.b16 %v415
      %v880 = vunpack.c.l.b16 %v416
      %v881 = vunpack.c.l.b16 %v417
      %v882 = vunpack.c.l.b16 %v418
      %v883 = vunpack.c.l.b16 %v419
      %v884 = vunpack.c.l.b16 %v420
      %v885 = vunpack.c.l.b16 %v421
      %v886 = vunpack.c.l.b16 %v422
      %v887 = vunpack.c.l.b16 %v423
      %v888 = vunpack.c.l.b16 %v424
      %v889 = vunpack.c.l.b16 %v425
      %v890 = vunpack.c.l.b16 %v426
      %v891 = vunpack.c.l.b16 %v427
      %v892 = vpack.c.b16 %v765, %v764
      %v893 = vpack.c.b16 %v767, %v766
      %v894 = vpack.c.b16 %v769, %v768
      %v895 = vpack.c.b16 %v771, %v770
      %v896 = vpack.c.b16 %v773, %v772
      %v897 = vpack.c.b16 %v775, %v774
      %v898 = vpack.c.b16 %v777, %v776
      %v899 = vpack.c.b16 %v779, %v778
      %v900 = vpack.c.b16 %v781, %v780
      %v901 = vpack.c.b16 %v783, %v782
      %v902 = vpack.c.b16 %v785, %v784
      %v903 = vpack.c.b16 %v787, %v786
      %v904 = vpack.c.b16 %v789, %v788
      %v905 = vpack.c.b16 %v791, %v790
      %v906 = vpack.c.b16 %v793, %v792
      %v907 = vpack.c.b16 %v795, %v794
      %v908 = vpack.c.b16 %v797, %v796
      %v909 = vpack.c.b16 %v799, %v798
      %v910 = vpack.c.b16 %v801, %v800
      %v911 = vpack.c.b16 %v803, %v802
      %v912 = vpack.c.b16 %v805, %v804
      %v913 = vpack.c.b16 %v807, %v806
      %v914 = vpack.c.b16 %v809, %v808
      %v915 = vpack.c.b16 %v811, %v810
      %v916 = vpack.c.b16 %v813, %v812
      %v917 = vpack.c.b16 %v815, %v814
      %v918 = vpack.c.b16 %v817, %v816
      %v919 = vpack.c.b16 %v819, %v818
      %v920 = vpack.c.b16 %v821, %v820
      %v921 = vpack.c.b16 %v823, %v822
      %v922 = vpack.c.b16 %v825, %v824
      %v923 = vpack.c.b16 %v827, %v826
      %v924 = vpack.c.b16 %v829, %v828
      %v925 = vpack.c.b16 %v831, %v830
      %v926 = vpack.c.b16 %v833, %v832
      %v927 = vpack.c.b16 %v835, %v834
      %v928 = vpack.c.b16 %v837, %v836
      %v929 = vpack.c.b16 %v839, %v838
      %v930 = vpack.c.b16 %v841, %v840
      %v931 = vpack.c.b16 %v843, %v842
      %v932 = vpack.c.b16 %v845, %v844
      %v933 = vpack.c.b16 %v847, %v846
      %v934 = vpack.c.b16 %v849, %v848
      %v935 = vpack.c.b16 %v851, %v850
      %v936 = vpack.c.b16 %v853, %v852
      %v937 = vpack.c.b16 %v855, %v854
      %v938 = vpack.c.b16 %v857, %v856
      %v939 = vpack.c.b16 %v859, %v858
      %v940 = vpack.c.b16 %v861, %v860
      %v941 = vpack.c.b16 %v863, %v862
      %v942 = vpack.c.b16 %v865, %v864
      %v943 = vpack.c.b16 %v867, %v866
      %v944 = vpack.c.b16 %v869, %v868
      %v945 = vpack.c.b16 %v871, %v870
      %v946 = vpack.c.b16 %v873, %v872
      %v947 = vpack.c.b16 %v875, %v874
      %v948 = vpack.c.b16 %v877, %v876
      %v949 = vpack.c.b16 %v879, %v878
      %v950 = vpack.c.b16 %v881, %v880
      %v951 = vpack.c.b16 %v883, %v882
      %v952 = vpack.c.b16 %v885, %v884
      %v953 = vpack.c.b16 %v887, %v886
      %v954 = vpack.c.b16 %v889, %v888
      %v955 = vpack.c.b16 %v891, %v890
      %1020 = vmatprep.subr.bf16.mxu0 0
      %1021 = vmatpush1.bf16.msra.mxu0 %v892
      %1022 = vmatprep.subr.bf16.mxu0 0
      %1023 = vmatpush1.bf16.msra.mxu0 %v893
      %1024 = vmatprep.subr.bf16.mxu0 0
      %1025 = vmatpush1.bf16.msra.mxu0 %v894
      %1026 = vmatprep.subr.bf16.mxu0 0
      %1027 = vmatpush1.bf16.msra.mxu0 %v895
      %1028 = vmatprep.subr.bf16.mxu0 0
      %1029 = vmatpush1.bf16.msra.mxu0 %v896
      %1030 = vmatprep.subr.bf16.mxu0 0
      %1031 = vmatpush1.bf16.msra.mxu0 %v897
      %1032 = vmatprep.subr.bf16.mxu0 0
      %1033 = vmatpush1.bf16.msra.mxu0 %v898
      %1034 = vmatprep.subr.bf16.mxu0 0
      %1035 = vmatpush1.bf16.msra.mxu0 %v899
      %1036 = vmatprep.subr.bf16.mxu0 0
      %1037 = vmatpush1.bf16.msra.mxu0 %v900
      %1038 = vmatprep.subr.bf16.mxu0 0
      %1039 = vmatpush1.bf16.msra.mxu0 %v901
      %1040 = vmatprep.subr.bf16.mxu0 0
      %1041 = vmatpush1.bf16.msra.mxu0 %v902
      %1042 = vmatprep.subr.bf16.mxu0 0
      %1043 = vmatpush1.bf16.msra.mxu0 %v903
      %1044 = vmatprep.subr.bf16.mxu0 0
      %1045 = vmatpush1.bf16.msra.mxu0 %v904
      %1046 = vmatprep.subr.bf16.mxu0 0
      %1047 = vmatpush1.bf16.msra.mxu0 %v905
      %1048 = vmatprep.subr.bf16.mxu0 0
      %1049 = vmatpush1.bf16.msra.mxu0 %v906
      %1050 = vmatprep.subr.bf16.mxu0 0
      %1051 = vmatpush1.bf16.msra.mxu0 %v907
      %1052 = vmatprep.mubr.bf16.mxu0 %v573
      %1053 = vmatmul.mubr.bf16.gmra.mrb[0].mxu0 %v572
      %v1054 = vpop.f32.mrb[0].mxu0
      %v1055 = vadd.f32 %v439, %v1054
      %v1056 = vpop.f32.mrb[0].mxu0
      %v1057 = vpop.f32.mrb[0].mxu0
      %v1058 = vadd.f32 %v444, %v1057
      %v1059 = vpop.f32.mrb[0].mxu0
      %1060 = vmatprep.mubr.bf16.mxu0 %v581
      %1061 = vmatmul.mubr.bf16.gmra.mrb[0].mxu0 %v580
      %v1062 = vpop.f32.mrb[0].mxu0
      %v1063 = vadd.f32 %v449, %v1062
      %v1064 = vpop.f32.mrb[0].mxu0
      %v1065 = vpop.f32.mrb[0].mxu0
      %v1066 = vadd.f32 %v454, %v1065
      %v1067 = vpop.f32.mrb[0].mxu0
      %1068 = vmatprep.mubr.bf16.mxu0 %v589
      %1069 = vmatmul.mubr.bf16.gmra.mrb[0].mxu0 %v588
      %v1070 = vpop.f32.mrb[0].mxu0
      %v1071 = vadd.f32 %v459, %v1070
      %v1072 = vpop.f32.mrb[0].mxu0
      %v1073 = vpop.f32.mrb[0].mxu0
      %v1074 = vadd.f32 %v464, %v1073
      %v1075 = vpop.f32.mrb[0].mxu0
      %1076 = vmatprep.mubr.bf16.mxu0 %v597
      %1077 = vmatmul.mubr.bf16.gmra.mrb[0].mxu0 %v596
      %v1078 = vpop.f32.mrb[0].mxu0
      %v1079 = vadd.f32 %v469, %v1078
      %v1080 = vpop.f32.mrb[0].mxu0
      %v1081 = vpop.f32.mrb[0].mxu0
      %v1082 = vadd.f32 %v474, %v1081
      %v1083 = vpop.f32.mrb[0].mxu0
      %1084 = vdwg.mxu0
      %1085 = vmatprep.subr.bf16.mxu0 0
      %1086 = vmatpush1.bf16.msra.mxu0 %v908
      %1087 = vmatprep.subr.bf16.mxu0 0
      %1088 = vmatpush1.bf16.msra.mxu0 %v909
      %1089 = vmatprep.subr.bf16.mxu0 0
      %1090 = vmatpush1.bf16.msra.mxu0 %v910
      %1091 = vmatprep.subr.bf16.mxu0 0
      %1092 = vmatpush1.bf16.msra.mxu0 %v911
      %1093 = vmatprep.subr.bf16.mxu0 0
      %1094 = vmatpush1.bf16.msra.mxu0 %v912
      %1095 = vmatprep.subr.bf16.mxu0 0
      %1096 = vmatpush1.bf16.msra.mxu0 %v913
      %1097 = vmatprep.subr.bf16.mxu0 0
      %1098 = vmatpush1.bf16.msra.mxu0 %v914
      %1099 = vmatprep.subr.bf16.mxu0 0
      %1100 = vmatpush1.bf16.msra.mxu0 %v915
      %1101 = vmatprep.subr.bf16.mxu0 0
      %1102 = vmatpush1.bf16.msra.mxu0 %v916
      %1103 = vmatprep.subr.bf16.mxu0 0
      %1104 = vmatpush1.bf16.msra.mxu0 %v917
      %1105 = vmatprep.subr.bf16.mxu0 0
      %1106 = vmatpush1.bf16.msra.mxu0 %v918
      %1107 = vmatprep.subr.bf16.mxu0 0
      %1108 = vmatpush1.bf16.msra.mxu0 %v919
      %1109 = vmatprep.subr.bf16.mxu0 0
      %1110 = vmatpush1.bf16.msra.mxu0 %v920
      %1111 = vmatprep.subr.bf16.mxu0 0
      %1112 = vmatpush1.bf16.msra.mxu0 %v921
      %1113 = vmatprep.subr.bf16.mxu0 0
      %1114 = vmatpush1.bf16.msra.mxu0 %v922
      %1115 = vmatprep.subr.bf16.mxu0 0
      %1116 = vmatpush1.bf16.msra.mxu0 %v923
      %1117 = vmatprep.mubr.bf16.mxu0 %v575
      %1118 = vmatmul.mubr.bf16.gmra.mrb[0].mxu0 %v574
      %v1119 = vpop.f32.mrb[0].mxu0
      %v1120 = vadd.f32 %v1055, %v1119
      %v1121 = vpop.f32.mrb[0].mxu0
      %v1122 = vpop.f32.mrb[0].mxu0
      %v1123 = vadd.f32 %v1058, %v1122
      %v1124 = vpop.f32.mrb[0].mxu0
      %1125 = vmatprep.mubr.bf16.mxu0 %v583
      %1126 = vmatmul.mubr.bf16.gmra.mrb[0].mxu0 %v582
      %v1127 = vpop.f32.mrb[0].mxu0
      %v1128 = vadd.f32 %v1063, %v1127
      %v1129 = vpop.f32.mrb[0].mxu0
      %v1130 = vpop.f32.mrb[0].mxu0
      %v1131 = vadd.f32 %v1066, %v1130
      %v1132 = vpop.f32.mrb[0].mxu0
      %1133 = vmatprep.mubr.bf16.mxu0 %v591
      %1134 = vmatmul.mubr.bf16.gmra.mrb[0].mxu0 %v590
      %v1135 = vpop.f32.mrb[0].mxu0
      %v1136 = vadd.f32 %v1071, %v1135
      %v1137 = vpop.f32.mrb[0].mxu0
      %v1138 = vpop.f32.mrb[0].mxu0
      %v1139 = vadd.f32 %v1074, %v1138
      %v1140 = vpop.f32.mrb[0].mxu0
      %1141 = vmatprep.mubr.bf16.mxu0 %v599
      %1142 = vmatmul.mubr.bf16.gmra.mrb[0].mxu0 %v598
      %v1143 = vpop.f32.mrb[0].mxu0
      %v1144 = vadd.f32 %v1079, %v1143
      %v1145 = vpop.f32.mrb[0].mxu0
      %v1146 = vpop.f32.mrb[0].mxu0
      %v1147 = vadd.f32 %v1082, %v1146
      %v1148 = vpop.f32.mrb[0].mxu0
      %1149 = vdwg.mxu0
      %1150 = vmatprep.subr.bf16.mxu0 0
      %1151 = vmatpush1.bf16.msra.mxu0 %v924
      %1152 = vmatprep.subr.bf16.mxu0 0
      %1153 = vmatpush1.bf16.msra.mxu0 %v925
      %1154 = vmatprep.subr.bf16.mxu0 0
      %1155 = vmatpush1.bf16.msra.mxu0 %v926
      %1156 = vmatprep.subr.bf16.mxu0 0
      %1157 = vmatpush1.bf16.msra.mxu0 %v927
      %1158 = vmatprep.subr.bf16.mxu0 0
      %1159 = vmatpush1.bf16.msra.mxu0 %v928
      %1160 = vmatprep.subr.bf16.mxu0 0
      %1161 = vmatpush1.bf16.msra.mxu0 %v929
      %1162 = vmatprep.subr.bf16.mxu0 0
      %1163 = vmatpush1.bf16.msra.mxu0 %v930
      %1164 = vmatprep.subr.bf16.mxu0 0
      %1165 = vmatpush1.bf16.msra.mxu0 %v931
      %1166 = vmatprep.subr.bf16.mxu0 0
      %1167 = vmatpush1.bf16.msra.mxu0 %v932
      %1168 = vmatprep.subr.bf16.mxu0 0
      %1169 = vmatpush1.bf16.msra.mxu0 %v933
      %1170 = vmatprep.subr.bf16.mxu0 0
      %1171 = vmatpush1.bf16.msra.mxu0 %v934
      %1172 = vmatprep.subr.bf16.mxu0 0
      %1173 = vmatpush1.bf16.msra.mxu0 %v935
      %1174 = vmatprep.subr.bf16.mxu0 0
      %1175 = vmatpush1.bf16.msra.mxu0 %v936
      %1176 = vmatprep.subr.bf16.mxu0 0
      %1177 = vmatpush1.bf16.msra.mxu0 %v937
      %1178 = vmatprep.subr.bf16.mxu0 0
      %1179 = vmatpush1.bf16.msra.mxu0 %v938
      %1180 = vmatprep.subr.bf16.mxu0 0
      %1181 = vmatpush1.bf16.msra.mxu0 %v939
      %1182 = vmatprep.mubr.bf16.mxu0 %v577
      %1183 = vmatmul.mubr.bf16.gmra.mrb[0].mxu0 %v576
      %v1184 = vpop.f32.mrb[0].mxu0
      %v1185 = vadd.f32 %v1120, %v1184
      %v1186 = vpop.f32.mrb[0].mxu0
      %v1187 = vpop.f32.mrb[0].mxu0
      %v1188 = vadd.f32 %v1123, %v1187
      %v1189 = vpop.f32.mrb[0].mxu0
      %1190 = vmatprep.mubr.bf16.mxu0 %v585
      %1191 = vmatmul.mubr.bf16.gmra.mrb[0].mxu0 %v584
      %v1192 = vpop.f32.mrb[0].mxu0
      %v1193 = vadd.f32 %v1128, %v1192
      %v1194 = vpop.f32.mrb[0].mxu0
      %v1195 = vpop.f32.mrb[0].mxu0
      %v1196 = vadd.f32 %v1131, %v1195
      %v1197 = vpop.f32.mrb[0].mxu0
      %1198 = vmatprep.mubr.bf16.mxu0 %v593
      %1199 = vmatmul.mubr.bf16.gmra.mrb[0].mxu0 %v592
      %v1200 = vpop.f32.mrb[0].mxu0
      %v1201 = vadd.f32 %v1136, %v1200
      %v1202 = vpop.f32.mrb[0].mxu0
      %v1203 = vpop.f32.mrb[0].mxu0
      %v1204 = vadd.f32 %v1139, %v1203
      %v1205 = vpop.f32.mrb[0].mxu0
      %1206 = vmatprep.mubr.bf16.mxu0 %v601
      %1207 = vmatmul.mubr.bf16.gmra.mrb[0].mxu0 %v600
      %v1208 = vpop.f32.mrb[0].mxu0
      %v1209 = vadd.f32 %v1144, %v1208
      %v1210 = vpop.f32.mrb[0].mxu0
      %v1211 = vpop.f32.mrb[0].mxu0
      %v1212 = vadd.f32 %v1147, %v1211
      %v1213 = vpop.f32.mrb[0].mxu0
      %1214 = vdwg.mxu0
      %1215 = vmatprep.subr.bf16.mxu0 0
      %1216 = vmatpush1.bf16.msra.mxu0 %v940
      %1217 = vmatprep.subr.bf16.mxu0 0
      %1218 = vmatpush1.bf16.msra.mxu0 %v941
      %1219 = vmatprep.subr.bf16.mxu0 0
      %1220 = vmatpush1.bf16.msra.mxu0 %v942
      %1221 = vmatprep.subr.bf16.mxu0 0
      %1222 = vmatpush1.bf16.msra.mxu0 %v943
      %1223 = vmatprep.subr.bf16.mxu0 0
      %1224 = vmatpush1.bf16.msra.mxu0 %v944
      %1225 = vmatprep.subr.bf16.mxu0 0
      %1226 = vmatpush1.bf16.msra.mxu0 %v945
      %1227 = vmatprep.subr.bf16.mxu0 0
      %1228 = vmatpush1.bf16.msra.mxu0 %v946
      %1229 = vmatprep.subr.bf16.mxu0 0
      %1230 = vmatpush1.bf16.msra.mxu0 %v947
      %1231 = vmatprep.subr.bf16.mxu0 0
      %1232 = vmatpush1.bf16.msra.mxu0 %v948
      %1233 = vmatprep.subr.bf16.mxu0 0
      %1234 = vmatpush1.bf16.msra.mxu0 %v949
      %1235 = vmatprep.subr.bf16.mxu0 0
      %1236 = vmatpush1.bf16.msra.mxu0 %v950
      %1237 = vmatprep.subr.bf16.mxu0 0
      %1238 = vmatpush1.bf16.msra.mxu0 %v951
      %1239 = vmatprep.subr.bf16.mxu0 0
      %1240 = vmatpush1.bf16.msra.mxu0 %v952
      %1241 = vmatprep.subr.bf16.mxu0 0
      %1242 = vmatpush1.bf16.msra.mxu0 %v953
      %1243 = vmatprep.subr.bf16.mxu0 0
      %1244 = vmatpush1.bf16.msra.mxu0 %v954
      %1245 = vmatprep.subr.bf16.mxu0 0
      %1246 = vmatpush1.bf16.msra.mxu0 %v955
      %1247 = vmatprep.mubr.bf16.mxu0 %v579
      %1248 = vmatmul.mubr.bf16.gmra.mrb[0].mxu0 %v578
      %v1249 = vpop.f32.mrb[0].mxu0
      %v1250 = vadd.f32 %v1185, %v1249
      %v1251 = vpop.f32.mrb[0].mxu0
      %v1252 = vpop.f32.mrb[0].mxu0
      %v1253 = vadd.f32 %v1188, %v1252
      %v1254 = vpop.f32.mrb[0].mxu0
      %1255 = vmatprep.mubr.bf16.mxu0 %v587
      %1256 = vmatmul.mubr.bf16.gmra.mrb[0].mxu0 %v586
      %v1257 = vpop.f32.mrb[0].mxu0
      %v1258 = vadd.f32 %v1193, %v1257
      %v1259 = vpop.f32.mrb[0].mxu0
      %v1260 = vpop.f32.mrb[0].mxu0
      %v1261 = vadd.f32 %v1196, %v1260
      %v1262 = vpop.f32.mrb[0].mxu0
      %1263 = vmatprep.mubr.bf16.mxu0 %v595
      %1264 = vmatmul.mubr.bf16.gmra.mrb[0].mxu0 %v594
      %v1265 = vpop.f32.mrb[0].mxu0
      %v1266 = vadd.f32 %v1201, %v1265
      %v1267 = vpop.f32.mrb[0].mxu0
      %v1268 = vpop.f32.mrb[0].mxu0
      %v1269 = vadd.f32 %v1204, %v1268
      %v1270 = vpop.f32.mrb[0].mxu0
      %1271 = vmatprep.mubr.bf16.mxu0 %v603
      %1272 = vmatmul.mubr.bf16.gmra.mrb[0].mxu0 %v602
      %v1273 = vpop.f32.mrb[0].mxu0
      %v1274 = vadd.f32 %v1209, %v1273
      %v1275 = vpop.f32.mrb[0].mxu0
      %v1276 = vpop.f32.mrb[0].mxu0
      %v1277 = vadd.f32 %v1212, %v1276
      %v1278 = vpop.f32.mrb[0].mxu0
      %1279 = vdwg.mxu0
      %v1280 = vmax.f32 %v1250, 0.0
      %v1281 = vmax.f32 %v1253, 0.0
      %v1282 = vmax.f32 %v1258, 0.0
      %v1283 = vmax.f32 %v1261, 0.0
      %v1284 = vmax.f32 %v1266, 0.0
      %v1285 = vmax.f32 %v1269, 0.0
      %v1286 = vmax.f32 %v1274, 0.0
      %v1287 = vmax.f32 %v1277, 0.0
      %v1288 = vpack.c.bf16 %v1281, %v1280
      %v1289 = vpack.c.bf16 %v1283, %v1282
      %v1290 = vpack.c.bf16 %v1285, %v1284
      %v1291 = vpack.c.bf16 %v1287, %v1286
      %v1296 = vunpack.c.l.b16 %v1288
      %v1297 = vunpack.c.h.b16 %v1288
      %v1298 = vunpack.c.l.b16 %v1289
      %v1299 = vunpack.c.h.b16 %v1289
      %v1300 = vunpack.c.l.b16 %v1290
      %v1301 = vunpack.c.h.b16 %v1290
      %v1302 = vunpack.c.l.b16 %v1291
      %v1303 = vunpack.c.h.b16 %v1291
      %v1304 = vpack.c.b16 %v1296, %v1296
      %v1305 = vpack.c.b16 %v1297, %v1297
      %v1306 = vpack.c.b16 %v1298, %v1298
      %v1307 = vpack.c.b16 %v1299, %v1299
      %v1308 = vpack.c.b16 %v1300, %v1300
      %v1309 = vpack.c.b16 %v1301, %v1301
      %v1310 = vpack.c.b16 %v1302, %v1302
      %v1311 = vpack.c.b16 %v1303, %v1303
      %1320 = vst [vmem:[%s265] sm:$0xf] %v1304
      %1321 = vst [vmem:[%s265 + $0x4] sm:$0xf] %v1305
      %1322 = vst [vmem:[%s265 + $0x8] sm:$0xf] %v1306
      %1323 = vst [vmem:[%s265 + $0xc] sm:$0xf] %v1307
      %1324 = vst [vmem:[%s265 + $0x10] sm:$0xf] %v1308
      %1325 = vst [vmem:[%s265 + $0x14] sm:$0xf] %v1309
      %1326 = vst [vmem:[%s265 + $0x18] sm:$0xf] %v1310
      %1327 = vst [vmem:[%s265 + $0x1c] sm:$0xf] %v1311
      %s1328 = smul.u32 8, %s21
      %p1329 = scmp.lt.s32.totalorder %s19, 1
      %s1330 = scalar_select %p1329, %s19, 1
      %p1331 = scmp.lt.s32.totalorder %s1328, 7
      %s1332 = scalar_select %p1331, %s1328, 7
      %p1333 = scmp.lt.s32.totalorder %s20, 0
      %s1334 = scalar_select %p1333, %s20, 0
      %s1335 = sadd.s32 %s1334, %s1332
      %s1336 = smul.addr %s1330, 8
      %s1337 = sadd.s32 %s1335, %s1336
      %s1338 = smul.addr %s1337, 4
      %s1339 = scalar_lea.vmem %s3, %s1338
      // Predicated region
      $region33: #{wav2letter_forward.18} parent=31 // pred_check
        %p1340 = pneg %p135
      $region34: #{wav2letter_forward.18} parent=31 // pred_check_branch
        %1342 = sbr.rel (%p1340) target = $region36
      $region35: #{wav2letter_forward.18} parent=31 // pred_region
        %s1343 = smul.u32 8, %s21
      $region36: #{wav2letter_forward.18} parent=31 // pred_fallthru
        _
    $region32: #{wav2letter_forward.18} parent=5 // pred_fallthru
      _
    %p1344 = scmp.le.s32.totalorder 2, %s9
    // Predicated region
    $region37: #{wav2letter_forward.18} parent=5 // pred_check
      %p1345 = pneg %p1344
    $region38: #{wav2letter_forward.18} parent=5 // pred_check_branch
      %1347 = sbr.rel (%p1345) target = $region40
    $region39: #{wav2letter_forward.18} parent=5 // pred_region
      %s1348 = ssub.s32 %s9, 2
      // Predicated region
      $region41: #{wav2letter_forward.18} parent=39 // pred_check
        %p1349 = pneg %p141
      $region42: #{wav2letter_forward.18} parent=39 // pred_check_branch
        %1351 = sbr.rel (%p1349) target = $region44
      $region43: #{wav2letter_forward.18} parent=39 // pred_region
        %s1352 = smul.u32 8, %s24
        %p1353 = scmp.lt.s32.totalorder %s22, 1
        %s1354 = scalar_select %p1353, %s22, 1
        %p1355 = scmp.lt.s32.totalorder %s1352, 7
        %s1356 = scalar_select %p1355, %s1352, 7
        %p1357 = scmp.lt.s32.totalorder %s23, 0
        %s1358 = scalar_select %p1357, %s23, 0
        %s1359 = sadd.s32 %s1358, %s1356
        %s1360 = smul.addr %s1354, 8
        %s1361 = sadd.s32 %s1359, %s1360
        %s1362 = smul.addr %s1361, 4
        %s1363 = scalar_lea.vmem %s3, %s1362
      $region44: #{wav2letter_forward.18} parent=39 // pred_fallthru
        _
    $region40: #{wav2letter_forward.18} parent=5 // pred_fallthru
      _
  $region6: #{wav2letter_forward.18} parent=0 // loop_footer
    %s13 = sadd.s32 1, %s9
  $region7: #{wav2letter_forward.18} parent=0 // loop_footer_branch
    %8 = sbr.rel target = $region3
  $region8: #{wav2letter_forward.18} parent=0 // loop_exit
    _

</llo_original>
